<compile_context>
chip_gen: v5e
topology: v5e:2x2
jax: 0.10.0
libtpu: 0.0.40
codegen_flags: <defaults>
</compile_context>

<pallas_src>
import functools

import jax
import jax.numpy as jnp
import numpy as np
from jax.experimental import pallas as pl
from jax.experimental.pallas import tpu as pltpu

EPS = 1e-5


# ------------------------------ small helpers -------------------------------- #

def _vmem_limit(blocks, scratch_bytes=0):
    """vmem_limit_bytes from the actual pipelined block sizes.

    blocks: iterable of (shape, dtype) for every in/out block of the pass.
    2x for double buffering, 2x headroom for compiler temporaries (im2col patches,
    relayouts), clamped to [24 MiB, 64 MiB] (v7x physical VMEM is 64 MiB; v5e/v6e
    have 128 MiB so this is conservative there).
    """
    blk = sum(int(np.prod(s)) * np.dtype(d).itemsize for s, d in blocks)
    need = 2 * (2 * blk + scratch_bytes) + (8 << 20)
    return int(min(max(need, 24 << 20), 64 << 20))


def _fold_bn(stats, gamma, beta, count):
    """Fold batch statistics + affine params into per-channel scale/shift (fp32).

    Tiny (C,)-sized XLA ops between pallas_calls; negligible HBM traffic.
    """
    mean = stats[0] / count
    var = stats[1] / count - mean * mean          # biased variance (PyTorch training fwd)
    scale = gamma * jax.lax.rsqrt(var + EPS)
    shift = beta - mean * scale
    return scale, shift


# ----------------------------- in-kernel helpers ------------------------------ #

def _conv3x3_from_padded(pad_ref, w_ref, src, *, Hh, Wh, Cin):
    """3x3 'same' conv of src via a zero-padded bf16 VMEM scratch.

    pad_ref : VMEM scratch (Hh+2, Wh+2, Cin) bf16 (1-px halo handled here, no HBM pad)
    w_ref   : (3, 3, Cin, Cout) bf16, layout (ky, dx, ci, co)
    src     : (Hh, Wh, Cin) value
    returns : (Hh*Wh, Cout) fp32 MXU accumulator
    """
    # Zero only the 1-px border; the interior is fully overwritten every grid step.
    zrow = jnp.zeros((1, Wh + 2, Cin), pad_ref.dtype)
    zcol = jnp.zeros((Hh + 2, 1, Cin), pad_ref.dtype)
    pad_ref[0:1] = zrow
    pad_ref[Hh + 1:Hh + 2] = zrow
    pad_ref[:, 0:1] = zcol
    pad_ref[:, Wh + 1:Wh + 2] = zcol
    pad_ref[1:Hh + 1, 1:Wh + 1] = src.astype(pad_ref.dtype)

    Cout = w_ref.shape[-1]
    acc = jnp.zeros((Hh * Wh, Cout), jnp.float32)
    fat_k = Cin < 128          # fat K=3*Cin only pays off below the MXU depth
    for ky in range(3):        # static unroll (3 taps)
        rows = pad_ref[ky:ky + Hh]                               # (Hh, Wh+2, Cin) bf16
        if fat_k:
            patch = jnp.concatenate(                              # im2col along dx
                [rows[:, 0:Wh], rows[:, 1:Wh + 1], rows[:, 2:Wh + 2]],
                axis=-1).reshape(Hh * Wh, 3 * Cin)
            acc = acc + jnp.dot(patch, w_ref[ky].reshape(3 * Cin, Cout),
                                preferred_element_type=jnp.float32)
        else:
            for dx in range(3):
                patch = rows[:, dx:dx + Wh].reshape(Hh * Wh, Cin)
                acc = acc + jnp.dot(patch, w_ref[ky, dx],
                                    preferred_element_type=jnp.float32)
    return acc


def _partial_stats(acc):
    """Per-grid-step BN partial statistics [sum; sumsq] in fp32 -> (2, Cout)."""
    return jnp.concatenate([jnp.sum(acc, axis=0, keepdims=True),
                            jnp.sum(acc * acc, axis=0, keepdims=True)], axis=0)


# --------------------------------- kernels ------------------------------------ #

def _pool_conv_kernel(x_ref, w_ref, y_ref, stats_ref, pad_ref, *, Hh, Wh, Cin):
    # x_ref : (1, 2*Hh, Wh, 2*Cin) bf16 -- NHWC image, W-pairs folded into channels
    # y_ref : (1, Hh*Wh, Cmid) bf16     -- pre-BN conv1 output
    # stats : (1, 2, Cmid) f32          -- per-step [sum; sumsq]
    x = x_ref[0]                                            # (2*Hh, Wh, 2*Cin)
    xh = jnp.maximum(x[:, :, :Cin], x[:, :, Cin:])          # horizontal 2-max
    xh = xh.reshape(Hh, 2, Wh, Cin)                         # split row pairs (free)
    pooled = jnp.maximum(xh[:, 0], xh[:, 1])                # vertical 2-max -> (Hh, Wh, Cin)

    acc = _conv3x3_from_padded(pad_ref, w_ref, pooled, Hh=Hh, Wh=Wh, Cin=Cin)
    y_ref[0] = acc.astype(y_ref.dtype)                      # bf16 store (fp32 stats below)
    stats_ref[0] = _partial_stats(acc)


def _bn_relu_conv_kernel(y_ref, scale_ref, shift_ref, w_ref, o_ref, stats_ref,
                         pad_ref, *, Hh, Wh, Cin):
    # y_ref       : (1, Hh*Wh, Cin) bf16 -- pre-BN conv1 output
    # scale/shift : (1, Cin) f32         -- folded BN1 (g*rsqrt(var+eps), b-mean*scale)
    a = jnp.maximum(y_ref[0].astype(jnp.float32) * scale_ref[...] + shift_ref[...],
                    0.0)                                    # BN + ReLU in fp32
    a = a.reshape(Hh, Wh, Cin)                              # free split of the major dim
    acc = _conv3x3_from_padded(pad_ref, w_ref, a, Hh=Hh, Wh=Wh, Cin=Cin)
    o_ref[0] = acc.astype(o_ref.dtype)
    stats_ref[0] = _partial_stats(acc)


def _bn_relu_transpose_kernel(y_ref, scale_ref, shift_ref, o_ref):
    # y_ref : (1, Hh*Wh, Cout) bf16;  o_ref : (1, Cout, Hh*Wh) f32  (NCHW tile)
    a = jnp.maximum(y_ref[0].astype(jnp.float32) * scale_ref[...] + shift_ref[...], 0.0)
    o_ref[0] = a.T.astype(o_ref.dtype)                      # fused NHWC->NCHW transpose


# --------------------------------- wrapper ------------------------------------ #

def down_forward(x_nchw, params):
    """Down.forward: MaxPool2d(2) -> (Conv3x3->BN->ReLU) x 2.  NCHW in/out (fp32)."""
    N, Cin, H, W = x_nchw.shape
    assert H % 2 == 0 and W % 2 == 0
    Cmid = params["w1"].shape[0]
    Cout = params["w2"].shape[0]
    Hh, Wh = H // 2, W // 2
    HW = Hh * Wh
    count = float(N * HW)

    # NCHW -> NHWC (module-boundary layout glue) + bf16 cast for the MXU.  The
    # W-pair fold into channels below is a free row-major reshape, so the 2x2
    # maxpool becomes two elementwise maxes inside pass A.
    x = jnp.transpose(x_nchw, (0, 2, 3, 1)).astype(jnp.bfloat16)
    x = x.reshape(N, H, Wh, 2 * Cin)

    # (Cout, Cin, 3, 3) -> (ky, dx, ci, co); kernels fold (dx, ci) into K=3*Cin
    # only when Cin < 128.
    def fold_w(w):
        return jnp.transpose(w, (2, 3, 1, 0)).astype(jnp.bfloat16)

    w1 = fold_w(params["w1"])
    w2 = fold_w(params["w2"])

    # Per-step partial stats -> no revisited output blocks -> every axis parallel
    # (sharded across both TensorCores on v7x, neutral on v5e/v6e).
    par = ("parallel",)

    # --- pass A: fused maxpool + conv1 -> pre-BN y1 (bf16), partial stats ------- #
    vmem_a = _vmem_limit(
        [((1, H, Wh, 2 * Cin), jnp.bfloat16), ((3, 3, Cin, Cmid), jnp.bfloat16),
         ((1, HW, Cmid), jnp.bfloat16), ((1, 2, Cmid), jnp.float32)],
        scratch_bytes=(Hh + 2) * (Wh + 2) * Cin * 2)
    y1, ps1 = pl.pallas_call(
        functools.partial(_pool_conv_kernel, Hh=Hh, Wh=Wh, Cin=Cin),
        out_shape=(jax.ShapeDtypeStruct((N, HW, Cmid), jnp.bfloat16),
                   jax.ShapeDtypeStruct((N, 2, Cmid), jnp.float32)),
        grid=(N,),
        in_specs=[pl.BlockSpec((1, H, Wh, 2 * Cin), lambda n: (n, 0, 0, 0)),
                  pl.BlockSpec((3, 3, Cin, Cmid), lambda n: (0, 0, 0, 0))],
        out_specs=(pl.BlockSpec((1, HW, Cmid), lambda n: (n, 0, 0)),
                   pl.BlockSpec((1, 2, Cmid), lambda n: (n, 0, 0))),
        scratch_shapes=[pltpu.VMEM((Hh + 2, Wh + 2, Cin), jnp.bfloat16)],
        compiler_params=pltpu.CompilerParams(dimension_semantics=par,
                                             vmem_limit_bytes=vmem_a),
    )(x, w1)

    sc1, sh1 = _fold_bn(jnp.sum(ps1, axis=0), params["g1"], params["b1"], count)

    # --- pass B: BN1 + ReLU + conv2 fused -> pre-BN y2 (bf16), partial stats ---- #
    vmem_b = _vmem_limit(
        [((1, HW, Cmid), jnp.bfloat16), ((1, Cmid), jnp.float32),
         ((1, Cmid), jnp.float32), ((3, 3, Cmid, Cout), jnp.bfloat16),
         ((1, HW, Cout), jnp.bfloat16), ((1, 2, Cout), jnp.float32)],
        scratch_bytes=(Hh + 2) * (Wh + 2) * Cmid * 2)
    y2, ps2 = pl.pallas_call(
        functools.partial(_bn_relu_conv_kernel, Hh=Hh, Wh=Wh, Cin=Cmid),
        out_shape=(jax.ShapeDtypeStruct((N, HW, Cout), jnp.bfloat16),
                   jax.ShapeDtypeStruct((N, 2, Cout), jnp.float32)),
        grid=(N,),
        in_specs=[pl.BlockSpec((1, HW, Cmid), lambda n: (n, 0, 0)),
                  pl.BlockSpec((1, Cmid), lambda n: (0, 0)),
                  pl.BlockSpec((1, Cmid), lambda n: (0, 0)),
                  pl.BlockSpec((3, 3, Cmid, Cout), lambda n: (0, 0, 0, 0))],
        out_specs=(pl.BlockSpec((1, HW, Cout), lambda n: (n, 0, 0)),
                   pl.BlockSpec((1, 2, Cout), lambda n: (n, 0, 0))),
        scratch_shapes=[pltpu.VMEM((Hh + 2, Wh + 2, Cmid), jnp.bfloat16)],
        compiler_params=pltpu.CompilerParams(dimension_semantics=par,
                                             vmem_limit_bytes=vmem_b),
    )(y1, sc1.reshape(1, Cmid), sh1.reshape(1, Cmid), w2)

    sc2, sh2 = _fold_bn(jnp.sum(ps2, axis=0), params["g2"], params["b2"], count)

    # --- pass C: BN2 + ReLU + fused NHWC->NCHW store (last dim = Hh*Wh) --------- #
    vmem_c = _vmem_limit(
        [((1, HW, Cout), jnp.bfloat16), ((1, Cout), jnp.float32),
         ((1, Cout), jnp.float32), ((1, Cout, HW), jnp.float32)])
    out = pl.pallas_call(
        _bn_relu_transpose_kernel,
        out_shape=jax.ShapeDtypeStruct((N, Cout, HW), jnp.float32),
        grid=(N,),
        in_specs=[pl.BlockSpec((1, HW, Cout), lambda n: (n, 0, 0)),
                  pl.BlockSpec((1, Cout), lambda n: (0, 0)),
                  pl.BlockSpec((1, Cout), lambda n: (0, 0))],
        out_specs=pl.BlockSpec((1, Cout, HW), lambda n: (n, 0, 0)),
        compiler_params=pltpu.CompilerParams(dimension_semantics=par,
                                             vmem_limit_bytes=vmem_c),
    )(y2, sc2.reshape(1, Cout), sh2.reshape(1, Cout))

    return out.reshape(N, Cout, Hh, Wh)     # free row-major split; already NCHW


# ---------------------------- pure-JAX reference ------------------------------- #

def _ref_conv_bn_relu(h, w, g, b):
    # Mirrors the kernels' dtype policy: bf16 matmul inputs with fp32 MXU
    # accumulation, fp32 one-pass batch statistics (biased variance) taken from the
    # fp32 conv output, bf16 HBM storage of the pre-BN intermediate, fp32 BN+ReLU.
    y = jax.lax.conv_general_dilated(
        h.astype(jnp.bfloat16), w.astype(jnp.bfloat16),
        window_strides=(1, 1), padding=((1, 1), (1, 1)),
        dimension_numbers=("NCHW", "OIHW", "NCHW"),
        preferred_element_type=jnp.float32)
    cnt = y.shape[0] * y.shape[2] * y.shape[3]
    mean = jnp.sum(y, axis=(0, 2, 3)) / cnt
    var = jnp.sum(y * y, axis=(0, 2, 3)) / cnt - mean * mean
    scale = g * jax.lax.rsqrt(var + EPS)
    shift = b - mean * scale
    yq = y.astype(jnp.bfloat16).astype(jnp.float32)      # bf16 intermediate storage
    return jnp.maximum(yq * scale.reshape(1, -1, 1, 1) + shift.reshape(1, -1, 1, 1), 0.0)


def ref_down(x, params):
    p = jax.lax.reduce_window(x, -jnp.inf, jax.lax.max,
                              (1, 1, 2, 2), (1, 1, 2, 2), "VALID")
    a = _ref_conv_bn_relu(p, params["w1"], params["g1"], params["b1"])
    return _ref_conv_bn_relu(a, params["w2"], params["g2"], params["b2"])


# ----------------------------------- main -------------------------------------- #

if __name__ == "__main__":
    N, Cin, H, W = 2, 4, 16, 16
    Cout = 8                       # Down(in_channels=4, out_channels=8); mid == out

    key = jax.random.PRNGKey(0)
    k_x, k_w1, k_w2, k_g1, k_b1, k_g2, k_b2 = jax.random.split(key, 7)

    x = jax.random.normal(k_x, (N, Cin, H, W), jnp.float32)
    params = {
        # Conv2d(kernel_size=3, padding=1, bias=False): weight (Cout, Cin, 3, 3)
        "w1": jax.random.normal(k_w1, (Cout, Cin, 3, 3), jnp.float32) / np.sqrt(Cin * 9),
        "w2": jax.random.normal(k_w2, (Cout, Cout, 3, 3), jnp.float32) / np.sqrt(Cout * 9),
        # BatchNorm2d affine parameters
        "g1": 1.0 + 0.1 * jax.random.normal(k_g1, (Cout,), jnp.float32),
        "b1": 0.1 * jax.random.normal(k_b1, (Cout,), jnp.float32),
        "g2": 1.0 + 0.1 * jax.random.normal(k_g2, (Cout,), jnp.float32),
        "b2": 0.1 * jax.random.normal(k_b2, (Cout,), jnp.float32),
    }

    out = jax.block_until_ready(jax.jit(down_forward)(x, params))
    assert out.shape == (N, Cout, H // 2, W // 2), out.shape

    ref = jax.block_until_ready(ref_down(x, params))
    # Both paths use bf16 matmul inputs / bf16 intermediates with fp32 accumulation
    # and fp32 batch statistics; remaining differences are summation-order only.
    np.testing.assert_allclose(np.asarray(out), np.asarray(ref), rtol=3e-3, atol=3e-3)

    print("KERNEL_OK")
</pallas_src>

<mosaic_0001>
module attributes {stable_mosaic.version = 11 : i64} {
  func.func @_pool_conv_kernel(%arg0: i32, %arg1: memref<1x16x8x8xbf16, #tpu.memory_space<vmem>>, %arg2: memref<3x3x4x8xbf16, #tpu.memory_space<vmem>>, %arg3: memref<1x64x8xbf16, #tpu.memory_space<vmem>>, %arg4: memref<1x2x8xf32, #tpu.memory_space<vmem>>, %arg5: memref<10x10x4xbf16, #tpu.memory_space<vmem>>) attributes {dimension_semantics = [#tpu.dimension_semantics<parallel>], iteration_bounds = array<i64: 2>, scalar_prefetch = 0 : i64, scratch_operands = 1 : i64, tpu.core_type = #tpu.core_type<tc>, window_params = [{transform_indices = @transform_0, window_bounds = array<i64: 1, 16, 8, 8>}, {pipeline_mode = #tpu.pipeline_mode<synchronous>, transform_indices = @transform_1, window_bounds = array<i64: 3, 3, 4, 8>}, {transform_indices = @transform_2, window_bounds = array<i64: 1, 64, 8>}, {transform_indices = @transform_3, window_bounds = array<i64: 1, 2, 8>}]} {
    %c0 = arith.constant 0 : index
    %c0_0 = arith.constant 0 : index
    %c0_1 = arith.constant 0 : index
    %c0_2 = arith.constant 0 : index
    %0 = vector.load %arg1[%c0, %c0_0, %c0_1, %c0_2] : memref<1x16x8x8xbf16, #tpu.memory_space<vmem>>, vector<1x16x8x8xbf16>
    %1 = vector.shape_cast %0 : vector<1x16x8x8xbf16> to vector<16x8x8xbf16>
    %2 = vector.extract_strided_slice %1 {offsets = [0, 0, 0], sizes = [16, 8, 4], strides = [1, 1, 1]} : vector<16x8x8xbf16> to vector<16x8x4xbf16>
    %3 = vector.extract_strided_slice %1 {offsets = [0, 0, 4], sizes = [16, 8, 4], strides = [1, 1, 1]} : vector<16x8x8xbf16> to vector<16x8x4xbf16>
    %4 = arith.maximumf %2, %3 : vector<16x8x4xbf16>
    %5 = vector.shape_cast %4 : vector<16x8x4xbf16> to vector<8x2x8x4xbf16>
    %6 = vector.extract_strided_slice %5 {offsets = [0, 0, 0, 0], sizes = [8, 1, 8, 4], strides = [1, 1, 1, 1]} : vector<8x2x8x4xbf16> to vector<8x1x8x4xbf16>
    %7 = vector.shape_cast %6 : vector<8x1x8x4xbf16> to vector<8x8x4xbf16>
    %8 = vector.extract_strided_slice %5 {offsets = [0, 1, 0, 0], sizes = [8, 1, 8, 4], strides = [1, 1, 1, 1]} : vector<8x2x8x4xbf16> to vector<8x1x8x4xbf16>
    %9 = vector.shape_cast %8 : vector<8x1x8x4xbf16> to vector<8x8x4xbf16>
    %10 = arith.maximumf %7, %9 : vector<8x8x4xbf16>
    %cst = arith.constant 0.000000e+00 : bf16
    %11 = vector.broadcast %cst : bf16 to vector<1x10x4xbf16>
    %cst_3 = arith.constant 0.000000e+00 : bf16
    %12 = vector.broadcast %cst_3 : bf16 to vector<10x1x4xbf16>
    %c0_4 = arith.constant 0 : index
    %c0_5 = arith.constant 0 : index
    %c0_6 = arith.constant 0 : index
    %13 = vector.load %arg5[%c0_4, %c0_5, %c0_6] : memref<10x10x4xbf16, #tpu.memory_space<vmem>>, vector<1x10x4xbf16>
    tpu.vector_store %arg5[%c0_4, %c0_5, %c0_6], %11 {strides = array<i32>} : memref<10x10x4xbf16, #tpu.memory_space<vmem>>, vector<1x10x4xbf16>,
    %c9 = arith.constant 9 : index
    %c0_7 = arith.constant 0 : index
    %c0_8 = arith.constant 0 : index
    %14 = vector.load %arg5[%c9, %c0_7, %c0_8] : memref<10x10x4xbf16, #tpu.memory_space<vmem>>, vector<1x10x4xbf16>
    tpu.vector_store %arg5[%c9, %c0_7, %c0_8], %11 {strides = array<i32>} : memref<10x10x4xbf16, #tpu.memory_space<vmem>>, vector<1x10x4xbf16>,
    %c0_9 = arith.constant 0 : index
    %c0_10 = arith.constant 0 : index
    %c0_11 = arith.constant 0 : index
    %15 = vector.load %arg5[%c0_9, %c0_10, %c0_11] : memref<10x10x4xbf16, #tpu.memory_space<vmem>>, vector<10x1x4xbf16>
    tpu.vector_store %arg5[%c0_9, %c0_10, %c0_11], %12 {strides = array<i32>} : memref<10x10x4xbf16, #tpu.memory_space<vmem>>, vector<10x1x4xbf16>,
    %c0_12 = arith.constant 0 : index
    %c9_13 = arith.constant 9 : index
    %c0_14 = arith.constant 0 : index
    %16 = vector.load %arg5[%c0_12, %c9_13, %c0_14] : memref<10x10x4xbf16, #tpu.memory_space<vmem>>, vector<10x1x4xbf16>
    tpu.vector_store %arg5[%c0_12, %c9_13, %c0_14], %12 {strides = array<i32>} : memref<10x10x4xbf16, #tpu.memory_space<vmem>>, vector<10x1x4xbf16>,
    %c1 = arith.constant 1 : index
    %c1_15 = arith.constant 1 : index
    %c0_16 = arith.constant 0 : index
    %17 = vector.load %arg5[%c1, %c1_15, %c0_16] : memref<10x10x4xbf16, #tpu.memory_space<vmem>>, vector<8x8x4xbf16>
    tpu.vector_store %arg5[%c1, %c1_15, %c0_16], %10 {strides = array<i32>} : memref<10x10x4xbf16, #tpu.memory_space<vmem>>, vector<8x8x4xbf16>,
    %cst_17 = arith.constant 0.000000e+00 : f32
    %18 = vector.broadcast %cst_17 : f32 to vector<64x8xf32>
    %c0_18 = arith.constant 0 : index
    %c0_19 = arith.constant 0 : index
    %c0_20 = arith.constant 0 : index
    %19 = vector.load %arg5[%c0_18, %c0_19, %c0_20] : memref<10x10x4xbf16, #tpu.memory_space<vmem>>, vector<8x10x4xbf16>
    %20 = vector.extract_strided_slice %19 {offsets = [0, 0, 0], sizes = [8, 8, 4], strides = [1, 1, 1]} : vector<8x10x4xbf16> to vector<8x8x4xbf16>
    %21 = vector.extract_strided_slice %19 {offsets = [0, 1, 0], sizes = [8, 8, 4], strides = [1, 1, 1]} : vector<8x10x4xbf16> to vector<8x8x4xbf16>
    %22 = vector.extract_strided_slice %19 {offsets = [0, 2, 0], sizes = [8, 8, 4], strides = [1, 1, 1]} : vector<8x10x4xbf16> to vector<8x8x4xbf16>
    %23 = tpu.concatenate %20, %21, %22 in 2 : vector<8x8x4xbf16>, vector<8x8x4xbf16>, vector<8x8x4xbf16> -> vector<8x8x12xbf16>
    %24 = vector.shape_cast %23 : vector<8x8x12xbf16> to vector<64x12xbf16>
    %c0_21 = arith.constant 0 : index
    %c0_22 = arith.constant 0 : index
    %c0_23 = arith.constant 0 : index
    %c0_24 = arith.constant 0 : index
    %25 = vector.load %arg2[%c0_21, %c0_22, %c0_23, %c0_24] : memref<3x3x4x8xbf16, #tpu.memory_space<vmem>>, vector<1x3x4x8xbf16>
    %26 = vector.shape_cast %25 : vector<1x3x4x8xbf16> to vector<3x4x8xbf16>
    %27 = vector.shape_cast %26 : vector<3x4x8xbf16> to vector<12x8xbf16>
    %cst_25 = arith.constant dense<0.000000e+00> : vector<64x8xf32>
    %28 = tpu.matmul %24, %27, %cst_25 {dimension_numbers = #tpu.dot_dimension_numbers<[1], [0], [0], [1], [0, 0, 1, 1], [], []>} : vector<64x12xbf16>, vector<12x8xbf16>, vector<64x8xf32> -> vector<64x8xf32>
    %29 = arith.addf %18, %28 : vector<64x8xf32>
    %c1_26 = arith.constant 1 : index
    %c0_27 = arith.constant 0 : index
    %c0_28 = arith.constant 0 : index
    %30 = vector.load %arg5[%c1_26, %c0_27, %c0_28] : memref<10x10x4xbf16, #tpu.memory_space<vmem>>, vector<8x10x4xbf16>
    %31 = vector.extract_strided_slice %30 {offsets = [0, 0, 0], sizes = [8, 8, 4], strides = [1, 1, 1]} : vector<8x10x4xbf16> to vector<8x8x4xbf16>
    %32 = vector.extract_strided_slice %30 {offsets = [0, 1, 0], sizes = [8, 8, 4], strides = [1, 1, 1]} : vector<8x10x4xbf16> to vector<8x8x4xbf16>
    %33 = vector.extract_strided_slice %30 {offsets = [0, 2, 0], sizes = [8, 8, 4], strides = [1, 1, 1]} : vector<8x10x4xbf16> to vector<8x8x4xbf16>
    %34 = tpu.concatenate %31, %32, %33 in 2 : vector<8x8x4xbf16>, vector<8x8x4xbf16>, vector<8x8x4xbf16> -> vector<8x8x12xbf16>
    %35 = vector.shape_cast %34 : vector<8x8x12xbf16> to vector<64x12xbf16>
    %c1_29 = arith.constant 1 : index
    %c0_30 = arith.constant 0 : index
    %c0_31 = arith.constant 0 : index
    %c0_32 = arith.constant 0 : index
    %36 = vector.load %arg2[%c1_29, %c0_30, %c0_31, %c0_32] : memref<3x3x4x8xbf16, #tpu.memory_space<vmem>>, vector<1x3x4x8xbf16>
    %37 = vector.shape_cast %36 : vector<1x3x4x8xbf16> to vector<3x4x8xbf16>
    %38 = vector.shape_cast %37 : vector<3x4x8xbf16> to vector<12x8xbf16>
    %cst_33 = arith.constant dense<0.000000e+00> : vector<64x8xf32>
    %39 = tpu.matmul %35, %38, %cst_33 {dimension_numbers = #tpu.dot_dimension_numbers<[1], [0], [0], [1], [0, 0, 1, 1], [], []>} : vector<64x12xbf16>, vector<12x8xbf16>, vector<64x8xf32> -> vector<64x8xf32>
    %40 = arith.addf %29, %39 : vector<64x8xf32>
    %c2 = arith.constant 2 : index
    %c0_34 = arith.constant 0 : index
    %c0_35 = arith.constant 0 : index
    %41 = vector.load %arg5[%c2, %c0_34, %c0_35] : memref<10x10x4xbf16, #tpu.memory_space<vmem>>, vector<8x10x4xbf16>
    %42 = vector.extract_strided_slice %41 {offsets = [0, 0, 0], sizes = [8, 8, 4], strides = [1, 1, 1]} : vector<8x10x4xbf16> to vector<8x8x4xbf16>
    %43 = vector.extract_strided_slice %41 {offsets = [0, 1, 0], sizes = [8, 8, 4], strides = [1, 1, 1]} : vector<8x10x4xbf16> to vector<8x8x4xbf16>
    %44 = vector.extract_strided_slice %41 {offsets = [0, 2, 0], sizes = [8, 8, 4], strides = [1, 1, 1]} : vector<8x10x4xbf16> to vector<8x8x4xbf16>
    %45 = tpu.concatenate %42, %43, %44 in 2 : vector<8x8x4xbf16>, vector<8x8x4xbf16>, vector<8x8x4xbf16> -> vector<8x8x12xbf16>
    %46 = vector.shape_cast %45 : vector<8x8x12xbf16> to vector<64x12xbf16>
    %c2_36 = arith.constant 2 : index
    %c0_37 = arith.constant 0 : index
    %c0_38 = arith.constant 0 : index
    %c0_39 = arith.constant 0 : index
    %47 = vector.load %arg2[%c2_36, %c0_37, %c0_38, %c0_39] : memref<3x3x4x8xbf16, #tpu.memory_space<vmem>>, vector<1x3x4x8xbf16>
    %48 = vector.shape_cast %47 : vector<1x3x4x8xbf16> to vector<3x4x8xbf16>
    %49 = vector.shape_cast %48 : vector<3x4x8xbf16> to vector<12x8xbf16>
    %cst_40 = arith.constant dense<0.000000e+00> : vector<64x8xf32>
    %50 = tpu.matmul %46, %49, %cst_40 {dimension_numbers = #tpu.dot_dimension_numbers<[1], [0], [0], [1], [0, 0, 1, 1], [], []>} : vector<64x12xbf16>, vector<12x8xbf16>, vector<64x8xf32> -> vector<64x8xf32>
    %51 = arith.addf %40, %50 : vector<64x8xf32>
    %52 = arith.truncf %51 : vector<64x8xf32> to vector<64x8xbf16>
    %c0_41 = arith.constant 0 : index
    %c0_42 = arith.constant 0 : index
    %c0_43 = arith.constant 0 : index
    %53 = vector.load %arg3[%c0_41, %c0_42, %c0_43] : memref<1x64x8xbf16, #tpu.memory_space<vmem>>, vector<1x64x8xbf16>
    %54 = vector.shape_cast %53 : vector<1x64x8xbf16> to vector<64x8xbf16>
    %55 = vector.shape_cast %52 : vector<64x8xbf16> to vector<1x64x8xbf16>
    tpu.vector_store %arg3[%c0_41, %c0_42, %c0_43], %55 {strides = array<i32>} : memref<1x64x8xbf16, #tpu.memory_space<vmem>>, vector<1x64x8xbf16>,
    %cst_44 = arith.constant dense<0.000000e+00> : vector<8xf32>
    %56 = vector.multi_reduction <add>, %51, %cst_44 [0] : vector<64x8xf32> to vector<8xf32>
    %57 = vector.shape_cast %56 : vector<8xf32> to vector<1x8xf32>
    %58 = arith.mulf %51, %51 : vector<64x8xf32>
    %cst_45 = arith.constant dense<0.000000e+00> : vector<8xf32>
    %59 = vector.multi_reduction <add>, %58, %cst_45 [0] : vector<64x8xf32> to vector<8xf32>
    %60 = vector.shape_cast %59 : vector<8xf32> to vector<1x8xf32>
    %61 = tpu.concatenate %57, %60 in 0 : vector<1x8xf32>, vector<1x8xf32> -> vector<2x8xf32>
    %c0_46 = arith.constant 0 : index
    %c0_47 = arith.constant 0 : index
    %c0_48 = arith.constant 0 : index
    %62 = vector.load %arg4[%c0_46, %c0_47, %c0_48] : memref<1x2x8xf32, #tpu.memory_space<vmem>>, vector<1x2x8xf32>
    %63 = vector.shape_cast %62 : vector<1x2x8xf32> to vector<2x8xf32>
    %64 = vector.shape_cast %61 : vector<2x8xf32> to vector<1x2x8xf32>
    tpu.vector_store %arg4[%c0_46, %c0_47, %c0_48], %64 {strides = array<i32>} : memref<1x2x8xf32, #tpu.memory_space<vmem>>, vector<1x2x8xf32>,
    return
  }
  func.func @transform_0(%arg0: i32) -> (i32, i32, i32, i32) {
    %c0_i32 = arith.constant 0 : i32
    %c0_i32_0 = arith.constant 0 : i32
    %c0_i32_1 = arith.constant 0 : i32
    %c0_i32_2 = arith.constant 0 : i32
    return %arg0, %c0_i32, %c0_i32_0, %c0_i32_1 : i32, i32, i32, i32
  }
  func.func @transform_1(%arg0: i32) -> (i32, i32, i32, i32) {
    %c0_i32 = arith.constant 0 : i32
    %c0_i32_0 = arith.constant 0 : i32
    %c0_i32_1 = arith.constant 0 : i32
    %c0_i32_2 = arith.constant 0 : i32
    %c0_i32_3 = arith.constant 0 : i32
    return %c0_i32, %c0_i32_0, %c0_i32_1, %c0_i32_2 : i32, i32, i32, i32
  }
  func.func @transform_2(%arg0: i32) -> (i32, i32, i32) {
    %c0_i32 = arith.constant 0 : i32
    %c0_i32_0 = arith.constant 0 : i32
    %c0_i32_1 = arith.constant 0 : i32
    return %arg0, %c0_i32, %c0_i32_0 : i32, i32, i32
  }
  func.func @transform_3(%arg0: i32) -> (i32, i32, i32) {
    %c0_i32 = arith.constant 0 : i32
    %c0_i32_0 = arith.constant 0 : i32
    %c0_i32_1 = arith.constant 0 : i32
    return %arg0, %c0_i32, %c0_i32_0 : i32, i32, i32
  }
}

module attributes {stable_mosaic.version = 11 : i64} {
  func.func @_bn_relu_transpose_kernel(%arg0: i32, %arg1: memref<1x64x8xbf16, #tpu.memory_space<vmem>>, %arg2: memref<1x8xf32, #tpu.memory_space<vmem>>, %arg3: memref<1x8xf32, #tpu.memory_space<vmem>>, %arg4: memref<1x8x64xf32, #tpu.memory_space<vmem>>) attributes {dimension_semantics = [#tpu.dimension_semantics<parallel>], iteration_bounds = array<i64: 2>, scalar_prefetch = 0 : i64, scratch_operands = 0 : i64, tpu.core_type = #tpu.core_type<tc>, window_params = [{transform_indices = @transform_0, window_bounds = array<i64: 1, 64, 8>}, {pipeline_mode = #tpu.pipeline_mode<synchronous>, transform_indices = @transform_1, window_bounds = array<i64: 1, 8>}, {pipeline_mode = #tpu.pipeline_mode<synchronous>, transform_indices = @transform_2, window_bounds = array<i64: 1, 8>}, {transform_indices = @transform_3, window_bounds = array<i64: 1, 8, 64>}]} {
    %c0 = arith.constant 0 : index
    %c0_0 = arith.constant 0 : index
    %c0_1 = arith.constant 0 : index
    %0 = vector.load %arg1[%c0, %c0_0, %c0_1] : memref<1x64x8xbf16, #tpu.memory_space<vmem>>, vector<1x64x8xbf16>
    %1 = vector.shape_cast %0 : vector<1x64x8xbf16> to vector<64x8xbf16>
    %2 = arith.extf %1 : vector<64x8xbf16> to vector<64x8xf32>
    %c0_2 = arith.constant 0 : index
    %c0_3 = arith.constant 0 : index
    %3 = vector.load %arg2[%c0_2, %c0_3] : memref<1x8xf32, #tpu.memory_space<vmem>>, vector<1x8xf32>
    %4 = vector.broadcast %3 : vector<1x8xf32> to vector<64x8xf32>
    %5 = arith.mulf %2, %4 : vector<64x8xf32>
    %c0_4 = arith.constant 0 : index
    %c0_5 = arith.constant 0 : index
    %6 = vector.load %arg3[%c0_4, %c0_5] : memref<1x8xf32, #tpu.memory_space<vmem>>, vector<1x8xf32>
    %7 = vector.broadcast %6 : vector<1x8xf32> to vector<64x8xf32>
    %8 = arith.addf %5, %7 : vector<64x8xf32>
    %cst = arith.constant 0.000000e+00 : f32
    %9 = vector.broadcast %cst : f32 to vector<64x8xf32>
    %10 = arith.maximumf %8, %9 : vector<64x8xf32>
    %11 = tpu.transpose %10, [1, 0] : vector<64x8xf32> -> vector<8x64xf32>
    %c0_6 = arith.constant 0 : index
    %c0_7 = arith.constant 0 : index
    %c0_8 = arith.constant 0 : index
    %12 = vector.load %arg4[%c0_6, %c0_7, %c0_8] : memref<1x8x64xf32, #tpu.memory_space<vmem>>, vector<1x8x64xf32>
    %13 = vector.shape_cast %12 : vector<1x8x64xf32> to vector<8x64xf32>
    %14 = vector.shape_cast %11 : vector<8x64xf32> to vector<1x8x64xf32>
    tpu.vector_store %arg4[%c0_6, %c0_7, %c0_8], %14 {strides = array<i32>} : memref<1x8x64xf32, #tpu.memory_space<vmem>>, vector<1x8x64xf32>,
    return
  }
  func.func @transform_0(%arg0: i32) -> (i32, i32, i32) {
    %c0_i32 = arith.constant 0 : i32
    %c0_i32_0 = arith.constant 0 : i32
    %c0_i32_1 = arith.constant 0 : i32
    return %arg0, %c0_i32, %c0_i32_0 : i32, i32, i32
  }
  func.func @transform_1(%arg0: i32) -> (i32, i32) {
    %c0_i32 = arith.constant 0 : i32
    %c0_i32_0 = arith.constant 0 : i32
    %c0_i32_1 = arith.constant 0 : i32
    return %c0_i32, %c0_i32_0 : i32, i32
  }
  func.func @transform_2(%arg0: i32) -> (i32, i32) {
    %c0_i32 = arith.constant 0 : i32
    %c0_i32_0 = arith.constant 0 : i32
    %c0_i32_1 = arith.constant 0 : i32
    return %c0_i32, %c0_i32_0 : i32, i32
  }
  func.func @transform_3(%arg0: i32) -> (i32, i32, i32) {
    %c0_i32 = arith.constant 0 : i32
    %c0_i32_0 = arith.constant 0 : i32
    %c0_i32_1 = arith.constant 0 : i32
    return %arg0, %c0_i32, %c0_i32_0 : i32, i32, i32
  }
}

module attributes {stable_mosaic.version = 11 : i64} {
  func.func @_bn_relu_conv_kernel(%arg0: i32, %arg1: memref<1x64x8xbf16, #tpu.memory_space<vmem>>, %arg2: memref<1x8xf32, #tpu.memory_space<vmem>>, %arg3: memref<1x8xf32, #tpu.memory_space<vmem>>, %arg4: memref<3x3x8x8xbf16, #tpu.memory_space<vmem>>, %arg5: memref<1x64x8xbf16, #tpu.memory_space<vmem>>, %arg6: memref<1x2x8xf32, #tpu.memory_space<vmem>>, %arg7: memref<10x10x8xbf16, #tpu.memory_space<vmem>>) attributes {dimension_semantics = [#tpu.dimension_semantics<parallel>], iteration_bounds = array<i64: 2>, scalar_prefetch = 0 : i64, scratch_operands = 1 : i64, tpu.core_type = #tpu.core_type<tc>, window_params = [{transform_indices = @transform_0, window_bounds = array<i64: 1, 64, 8>}, {pipeline_mode = #tpu.pipeline_mode<synchronous>, transform_indices = @transform_1, window_bounds = array<i64: 1, 8>}, {pipeline_mode = #tpu.pipeline_mode<synchronous>, transform_indices = @transform_2, window_bounds = array<i64: 1, 8>}, {pipeline_mode = #tpu.pipeline_mode<synchronous>, transform_indices = @transform_3, window_bounds = array<i64: 3, 3, 8, 8>}, {transform_indices = @transform_4, window_bounds = array<i64: 1, 64, 8>}, {transform_indices = @transform_5, window_bounds = array<i64: 1, 2, 8>}]} {
    %c0 = arith.constant 0 : index
    %c0_0 = arith.constant 0 : index
    %c0_1 = arith.constant 0 : index
    %0 = vector.load %arg1[%c0, %c0_0, %c0_1] : memref<1x64x8xbf16, #tpu.memory_space<vmem>>, vector<1x64x8xbf16>
    %1 = vector.shape_cast %0 : vector<1x64x8xbf16> to vector<64x8xbf16>
    %2 = arith.extf %1 : vector<64x8xbf16> to vector<64x8xf32>
    %c0_2 = arith.constant 0 : index
    %c0_3 = arith.constant 0 : index
    %3 = vector.load %arg2[%c0_2, %c0_3] : memref<1x8xf32, #tpu.memory_space<vmem>>, vector<1x8xf32>
    %4 = vector.broadcast %3 : vector<1x8xf32> to vector<64x8xf32>
    %5 = arith.mulf %2, %4 : vector<64x8xf32>
    %c0_4 = arith.constant 0 : index
    %c0_5 = arith.constant 0 : index
    %6 = vector.load %arg3[%c0_4, %c0_5] : memref<1x8xf32, #tpu.memory_space<vmem>>, vector<1x8xf32>
    %7 = vector.broadcast %6 : vector<1x8xf32> to vector<64x8xf32>
    %8 = arith.addf %5, %7 : vector<64x8xf32>
    %cst = arith.constant 0.000000e+00 : f32
    %9 = vector.broadcast %cst : f32 to vector<64x8xf32>
    %10 = arith.maximumf %8, %9 : vector<64x8xf32>
    %11 = vector.shape_cast %10 : vector<64x8xf32> to vector<8x8x8xf32>
    %cst_6 = arith.constant 0.000000e+00 : bf16
    %12 = vector.broadcast %cst_6 : bf16 to vector<1x10x8xbf16>
    %cst_7 = arith.constant 0.000000e+00 : bf16
    %13 = vector.broadcast %cst_7 : bf16 to vector<10x1x8xbf16>
    %c0_8 = arith.constant 0 : index
    %c0_9 = arith.constant 0 : index
    %c0_10 = arith.constant 0 : index
    %14 = vector.load %arg7[%c0_8, %c0_9, %c0_10] : memref<10x10x8xbf16, #tpu.memory_space<vmem>>, vector<1x10x8xbf16>
    tpu.vector_store %arg7[%c0_8, %c0_9, %c0_10], %12 {strides = array<i32>} : memref<10x10x8xbf16, #tpu.memory_space<vmem>>, vector<1x10x8xbf16>,
    %c9 = arith.constant 9 : index
    %c0_11 = arith.constant 0 : index
    %c0_12 = arith.constant 0 : index
    %15 = vector.load %arg7[%c9, %c0_11, %c0_12] : memref<10x10x8xbf16, #tpu.memory_space<vmem>>, vector<1x10x8xbf16>
    tpu.vector_store %arg7[%c9, %c0_11, %c0_12], %12 {strides = array<i32>} : memref<10x10x8xbf16, #tpu.memory_space<vmem>>, vector<1x10x8xbf16>,
    %c0_13 = arith.constant 0 : index
    %c0_14 = arith.constant 0 : index
    %c0_15 = arith.constant 0 : index
    %16 = vector.load %arg7[%c0_13, %c0_14, %c0_15] : memref<10x10x8xbf16, #tpu.memory_space<vmem>>, vector<10x1x8xbf16>
    tpu.vector_store %arg7[%c0_13, %c0_14, %c0_15], %13 {strides = array<i32>} : memref<10x10x8xbf16, #tpu.memory_space<vmem>>, vector<10x1x8xbf16>,
    %c0_16 = arith.constant 0 : index
    %c9_17 = arith.constant 9 : index
    %c0_18 = arith.constant 0 : index
    %17 = vector.load %arg7[%c0_16, %c9_17, %c0_18] : memref<10x10x8xbf16, #tpu.memory_space<vmem>>, vector<10x1x8xbf16>
    tpu.vector_store %arg7[%c0_16, %c9_17, %c0_18], %13 {strides = array<i32>} : memref<10x10x8xbf16, #tpu.memory_space<vmem>>, vector<10x1x8xbf16>,
    %18 = arith.truncf %11 : vector<8x8x8xf32> to vector<8x8x8xbf16>
    %c1 = arith.constant 1 : index
    %c1_19 = arith.constant 1 : index
    %c0_20 = arith.constant 0 : index
    %19 = vector.load %arg7[%c1, %c1_19, %c0_20] : memref<10x10x8xbf16, #tpu.memory_space<vmem>>, vector<8x8x8xbf16>
    tpu.vector_store %arg7[%c1, %c1_19, %c0_20], %18 {strides = array<i32>} : memref<10x10x8xbf16, #tpu.memory_space<vmem>>, vector<8x8x8xbf16>,
    %cst_21 = arith.constant 0.000000e+00 : f32
    %20 = vector.broadcast %cst_21 : f32 to vector<64x8xf32>
    %c0_22 = arith.constant 0 : index
    %c0_23 = arith.constant 0 : index
    %c0_24 = arith.constant 0 : index
    %21 = vector.load %arg7[%c0_22, %c0_23, %c0_24] : memref<10x10x8xbf16, #tpu.memory_space<vmem>>, vector<8x10x8xbf16>
    %22 = vector.extract_strided_slice %21 {offsets = [0, 0, 0], sizes = [8, 8, 8], strides = [1, 1, 1]} : vector<8x10x8xbf16> to vector<8x8x8xbf16>
    %23 = vector.extract_strided_slice %21 {offsets = [0, 1, 0], sizes = [8, 8, 8], strides = [1, 1, 1]} : vector<8x10x8xbf16> to vector<8x8x8xbf16>
    %24 = vector.extract_strided_slice %21 {offsets = [0, 2, 0], sizes = [8, 8, 8], strides = [1, 1, 1]} : vector<8x10x8xbf16> to vector<8x8x8xbf16>
    %25 = tpu.concatenate %22, %23, %24 in 2 : vector<8x8x8xbf16>, vector<8x8x8xbf16>, vector<8x8x8xbf16> -> vector<8x8x24xbf16>
    %26 = vector.shape_cast %25 : vector<8x8x24xbf16> to vector<64x24xbf16>
    %c0_25 = arith.constant 0 : index
    %c0_26 = arith.constant 0 : index
    %c0_27 = arith.constant 0 : index
    %c0_28 = arith.constant 0 : index
    %27 = vector.load %arg4[%c0_25, %c0_26, %c0_27, %c0_28] : memref<3x3x8x8xbf16, #tpu.memory_space<vmem>>, vector<1x3x8x8xbf16>
    %28 = vector.shape_cast %27 : vector<1x3x8x8xbf16> to vector<3x8x8xbf16>
    %29 = vector.shape_cast %28 : vector<3x8x8xbf16> to vector<24x8xbf16>
    %cst_29 = arith.constant dense<0.000000e+00> : vector<64x8xf32>
    %30 = tpu.matmul %26, %29, %cst_29 {dimension_numbers = #tpu.dot_dimension_numbers<[1], [0], [0], [1], [0, 0, 1, 1], [], []>} : vector<64x24xbf16>, vector<24x8xbf16>, vector<64x8xf32> -> vector<64x8xf32>
    %31 = arith.addf %20, %30 : vector<64x8xf32>
    %c1_30 = arith.constant 1 : index
    %c0_31 = arith.constant 0 : index
    %c0_32 = arith.constant 0 : index
    %32 = vector.load %arg7[%c1_30, %c0_31, %c0_32] : memref<10x10x8xbf16, #tpu.memory_space<vmem>>, vector<8x10x8xbf16>
    %33 = vector.extract_strided_slice %32 {offsets = [0, 0, 0], sizes = [8, 8, 8], strides = [1, 1, 1]} : vector<8x10x8xbf16> to vector<8x8x8xbf16>
    %34 = vector.extract_strided_slice %32 {offsets = [0, 1, 0], sizes = [8, 8, 8], strides = [1, 1, 1]} : vector<8x10x8xbf16> to vector<8x8x8xbf16>
    %35 = vector.extract_strided_slice %32 {offsets = [0, 2, 0], sizes = [8, 8, 8], strides = [1, 1, 1]} : vector<8x10x8xbf16> to vector<8x8x8xbf16>
    %36 = tpu.concatenate %33, %34, %35 in 2 : vector<8x8x8xbf16>, vector<8x8x8xbf16>, vector<8x8x8xbf16> -> vector<8x8x24xbf16>
    %37 = vector.shape_cast %36 : vector<8x8x24xbf16> to vector<64x24xbf16>
    %c1_33 = arith.constant 1 : index
    %c0_34 = arith.constant 0 : index
    %c0_35 = arith.constant 0 : index
    %c0_36 = arith.constant 0 : index
    %38 = vector.load %arg4[%c1_33, %c0_34, %c0_35, %c0_36] : memref<3x3x8x8xbf16, #tpu.memory_space<vmem>>, vector<1x3x8x8xbf16>
    %39 = vector.shape_cast %38 : vector<1x3x8x8xbf16> to vector<3x8x8xbf16>
    %40 = vector.shape_cast %39 : vector<3x8x8xbf16> to vector<24x8xbf16>
    %cst_37 = arith.constant dense<0.000000e+00> : vector<64x8xf32>
    %41 = tpu.matmul %37, %40, %cst_37 {dimension_numbers = #tpu.dot_dimension_numbers<[1], [0], [0], [1], [0, 0, 1, 1], [], []>} : vector<64x24xbf16>, vector<24x8xbf16>, vector<64x8xf32> -> vector<64x8xf32>
    %42 = arith.addf %31, %41 : vector<64x8xf32>
    %c2 = arith.constant 2 : index
    %c0_38 = arith.constant 0 : index
    %c0_39 = arith.constant 0 : index
    %43 = vector.load %arg7[%c2, %c0_38, %c0_39] : memref<10x10x8xbf16, #tpu.memory_space<vmem>>, vector<8x10x8xbf16>
    %44 = vector.extract_strided_slice %43 {offsets = [0, 0, 0], sizes = [8, 8, 8], strides = [1, 1, 1]} : vector<8x10x8xbf16> to vector<8x8x8xbf16>
    %45 = vector.extract_strided_slice %43 {offsets = [0, 1, 0], sizes = [8, 8, 8], strides = [1, 1, 1]} : vector<8x10x8xbf16> to vector<8x8x8xbf16>
    %46 = vector.extract_strided_slice %43 {offsets = [0, 2, 0], sizes = [8, 8, 8], strides = [1, 1, 1]} : vector<8x10x8xbf16> to vector<8x8x8xbf16>
    %47 = tpu.concatenate %44, %45, %46 in 2 : vector<8x8x8xbf16>, vector<8x8x8xbf16>, vector<8x8x8xbf16> -> vector<8x8x24xbf16>
    %48 = vector.shape_cast %47 : vector<8x8x24xbf16> to vector<64x24xbf16>
    %c2_40 = arith.constant 2 : index
    %c0_41 = arith.constant 0 : index
    %c0_42 = arith.constant 0 : index
    %c0_43 = arith.constant 0 : index
    %49 = vector.load %arg4[%c2_40, %c0_41, %c0_42, %c0_43] : memref<3x3x8x8xbf16, #tpu.memory_space<vmem>>, vector<1x3x8x8xbf16>
    %50 = vector.shape_cast %49 : vector<1x3x8x8xbf16> to vector<3x8x8xbf16>
    %51 = vector.shape_cast %50 : vector<3x8x8xbf16> to vector<24x8xbf16>
    %cst_44 = arith.constant dense<0.000000e+00> : vector<64x8xf32>
    %52 = tpu.matmul %48, %51, %cst_44 {dimension_numbers = #tpu.dot_dimension_numbers<[1], [0], [0], [1], [0, 0, 1, 1], [], []>} : vector<64x24xbf16>, vector<24x8xbf16>, vector<64x8xf32> -> vector<64x8xf32>
    %53 = arith.addf %42, %52 : vector<64x8xf32>
    %54 = arith.truncf %53 : vector<64x8xf32> to vector<64x8xbf16>
    %c0_45 = arith.constant 0 : index
    %c0_46 = arith.constant 0 : index
    %c0_47 = arith.constant 0 : index
    %55 = vector.load %arg5[%c0_45, %c0_46, %c0_47] : memref<1x64x8xbf16, #tpu.memory_space<vmem>>, vector<1x64x8xbf16>
    %56 = vector.shape_cast %55 : vector<1x64x8xbf16> to vector<64x8xbf16>
    %57 = vector.shape_cast %54 : vector<64x8xbf16> to vector<1x64x8xbf16>
    tpu.vector_store %arg5[%c0_45, %c0_46, %c0_47], %57 {strides = array<i32>} : memref<1x64x8xbf16, #tpu.memory_space<vmem>>, vector<1x64x8xbf16>,
    %cst_48 = arith.constant dense<0.000000e+00> : vector<8xf32>
    %58 = vector.multi_reduction <add>, %53, %cst_48 [0] : vector<64x8xf32> to vector<8xf32>
    %59 = vector.shape_cast %58 : vector<8xf32> to vector<1x8xf32>
    %60 = arith.mulf %53, %53 : vector<64x8xf32>
    %cst_49 = arith.constant dense<0.000000e+00> : vector<8xf32>
    %61 = vector.multi_reduction <add>, %60, %cst_49 [0] : vector<64x8xf32> to vector<8xf32>
    %62 = vector.shape_cast %61 : vector<8xf32> to vector<1x8xf32>
    %63 = tpu.concatenate %59, %62 in 0 : vector<1x8xf32>, vector<1x8xf32> -> vector<2x8xf32>
    %c0_50 = arith.constant 0 : index
    %c0_51 = arith.constant 0 : index
    %c0_52 = arith.constant 0 : index
    %64 = vector.load %arg6[%c0_50, %c0_51, %c0_52] : memref<1x2x8xf32, #tpu.memory_space<vmem>>, vector<1x2x8xf32>
    %65 = vector.shape_cast %64 : vector<1x2x8xf32> to vector<2x8xf32>
    %66 = vector.shape_cast %63 : vector<2x8xf32> to vector<1x2x8xf32>
    tpu.vector_store %arg6[%c0_50, %c0_51, %c0_52], %66 {strides = array<i32>} : memref<1x2x8xf32, #tpu.memory_space<vmem>>, vector<1x2x8xf32>,
    return
  }
  func.func @transform_0(%arg0: i32) -> (i32, i32, i32) {
    %c0_i32 = arith.constant 0 : i32
    %c0_i32_0 = arith.constant 0 : i32
    %c0_i32_1 = arith.constant 0 : i32
    return %arg0, %c0_i32, %c0_i32_0 : i32, i32, i32
  }
  func.func @transform_1(%arg0: i32) -> (i32, i32) {
    %c0_i32 = arith.constant 0 : i32
    %c0_i32_0 = arith.constant 0 : i32
    %c0_i32_1 = arith.constant 0 : i32
    return %c0_i32, %c0_i32_0 : i32, i32
  }
  func.func @transform_2(%arg0: i32) -> (i32, i32) {
    %c0_i32 = arith.constant 0 : i32
    %c0_i32_0 = arith.constant 0 : i32
    %c0_i32_1 = arith.constant 0 : i32
    return %c0_i32, %c0_i32_0 : i32, i32
  }
  func.func @transform_3(%arg0: i32) -> (i32, i32, i32, i32) {
    %c0_i32 = arith.constant 0 : i32
    %c0_i32_0 = arith.constant 0 : i32
    %c0_i32_1 = arith.constant 0 : i32
    %c0_i32_2 = arith.constant 0 : i32
    %c0_i32_3 = arith.constant 0 : i32
    return %c0_i32, %c0_i32_0, %c0_i32_1, %c0_i32_2 : i32, i32, i32, i32
  }
  func.func @transform_4(%arg0: i32) -> (i32, i32, i32) {
    %c0_i32 = arith.constant 0 : i32
    %c0_i32_0 = arith.constant 0 : i32
    %c0_i32_1 = arith.constant 0 : i32
    return %arg0, %c0_i32, %c0_i32_0 : i32, i32, i32
  }
  func.func @transform_5(%arg0: i32) -> (i32, i32, i32) {
    %c0_i32 = arith.constant 0 : i32
    %c0_i32_0 = arith.constant 0 : i32
    %c0_i32_1 = arith.constant 0 : i32
    return %arg0, %c0_i32, %c0_i32_0 : i32, i32, i32
  }
}

</mosaic_0001>

<llo_original>
// kernel: down_forward.5
$region0: #{down_forward.5}
  #allocation0 [shape = 'u32[]', space=smem, size = 0x4, offset = 0x4, fixed_abs, tag = 'smem constant byte address 0x4 - core index']
  #allocation1 [shape = 'u32[72,128]{1,0:T(1,128)}', space=vmem, size = 0x9000, scoped, tag = 'internal scratch']
  %s0 = inlined_call_operand.vmem [shape: bf16[2,64,8], index: 0, kind: input, shape index: {}]
  %s1 = inlined_call_operand.vmem [shape: f32[1,8], index: 1, kind: input, shape index: {}]
  %s2 = inlined_call_operand.vmem [shape: f32[1,8], index: 2, kind: input, shape index: {}]
  %s3 = inlined_call_operand.vmem [shape: f32[2,8,64], index: 3, kind: output, shape index: {}]
  %s4 = sld [smem:[#allocation0]]
  $region45: #{down_forward.5} parent=0
    _
  %s6 = ssub.s32 1, %s4
  %s7 = scalar_select 0, %s6, %s4
  loop: start=0, step=1, limit=4
  $region2: #{down_forward.5} parent=0 // loop_pre_header
    _
  $region3: #{down_forward.5} parent=0 // loop_header
    %s9 = sphi 0, %s13
    %p10 = scmp.ge.s32.totalorder %s9, 4
    %s19 = sphi 0, %s21
    %s22 = sphi 0, %s19
    %s23 = sphi 0, %s22
    %s39 = sphi 0, %s23
    %s43 = sphi 0, %s43
    %s45 = sphi 0, %s43
    %s46 = sphi 0, %s45
    %s60 = sphi 0, %s46
    %s64 = sphi 0, %s64
    %s66 = sphi 0, %s64
    %s67 = sphi 0, %s66
    %s81 = sphi 0, %s67
    %s87 = sphi 0, %s89
    %s90 = sphi 0, %s87
    %s91 = sphi 0, %s90
    %s107 = sphi 0, %s91
  $region4: #{down_forward.5} parent=0 // loop_header_branch
    %12 = sbr.rel (%p10) target = $region8
  $region5: #{down_forward.5} parent=0 // loop_body
    %s14 = ssub.s32 %s9, 1
    %s15 = ssub.s32 %s9, 2
    %s16 = sadd.s32 %s9, 1
    %s17 = ssub.s32 %s9, %s16
    %p18 = scmp.eq.s32.totalorder %s17, 0
    %s20 = sadd.s32 %s19, 1
    %s21 = scalar_select %p18, %s19, %s20
    %p24 = pneg %p18
    %p25 = scmp.eq.s32.totalorder %s9, 1
    %p26 = por %p24, %p25
    %p27 = scmp.ne.s32.totalorder %s19, %s22
    %p28 = scmp.eq.s32.totalorder %s9, 0
    %p29 = por %p27, %p28
    %p30 = scmp.ne.s32.totalorder %s19, %s22
    %p31 = scmp.eq.s32.totalorder %s14, 1
    %p32 = por %p30, %p31
    %p33 = scmp.ne.s32.totalorder %s22, %s23
    %p34 = scmp.eq.s32.totalorder %s14, 0
    %p35 = por %p33, %p34
    %p36 = scmp.ne.s32.totalorder %s22, %s23
    %p37 = scmp.eq.s32.totalorder %s15, 1
    %p38 = por %p36, %p37
    %p40 = scmp.ne.s32.totalorder %s23, %s39
    %p41 = scmp.eq.s32.totalorder %s15, 0
    %p42 = por %p40, %p41
    %s44 = sadd.s32 %s43, 1
    %p47 = scmp.eq.s32.totalorder %s9, 1
    %p48 = scmp.ne.s32.totalorder %s43, %s45
    %p49 = scmp.eq.s32.totalorder %s9, 0
    %p50 = por %p48, %p49
    %p51 = scmp.ne.s32.totalorder %s43, %s45
    %p52 = scmp.eq.s32.totalorder %s14, 1
    %p53 = por %p51, %p52
    %p54 = scmp.ne.s32.totalorder %s45, %s46
    %p55 = scmp.eq.s32.totalorder %s14, 0
    %p56 = por %p54, %p55
    %p57 = scmp.ne.s32.totalorder %s45, %s46
    %p58 = scmp.eq.s32.totalorder %s15, 1
    %p59 = por %p57, %p58
    %p61 = scmp.ne.s32.totalorder %s46, %s60
    %p62 = scmp.eq.s32.totalorder %s15, 0
    %p63 = por %p61, %p62
    %s65 = sadd.s32 %s64, 1
    %p68 = scmp.eq.s32.totalorder %s9, 1
    %p69 = scmp.ne.s32.totalorder %s64, %s66
    %p70 = scmp.eq.s32.totalorder %s9, 0
    %p71 = por %p69, %p70
    %p72 = scmp.ne.s32.totalorder %s64, %s66
    %p73 = scmp.eq.s32.totalorder %s14, 1
    %p74 = por %p72, %p73
    %p75 = scmp.ne.s32.totalorder %s66, %s67
    %p76 = scmp.eq.s32.totalorder %s14, 0
    %p77 = por %p75, %p76
    %p78 = scmp.ne.s32.totalorder %s66, %s67
    %p79 = scmp.eq.s32.totalorder %s15, 1
    %p80 = por %p78, %p79
    %p82 = scmp.ne.s32.totalorder %s67, %s81
    %p83 = scmp.eq.s32.totalorder %s15, 0
    %p84 = por %p82, %p83
    %s85 = ssub.s32 %s9, %s16
    %p86 = scmp.eq.s32.totalorder %s85, 0
    %s88 = sadd.s32 %s87, 1
    %s89 = scalar_select %p86, %s87, %s88
    %p92 = pneg %p86
    %p93 = scmp.eq.s32.totalorder %s9, 1
    %p94 = por %p92, %p93
    %p95 = scmp.ne.s32.totalorder %s87, %s90
    %p96 = scmp.eq.s32.totalorder %s9, 0
    %p97 = por %p95, %p96
    %p98 = scmp.ne.s32.totalorder %s87, %s90
    %p99 = scmp.eq.s32.totalorder %s14, 1
    %p100 = por %p98, %p99
    %p101 = scmp.ne.s32.totalorder %s90, %s91
    %p102 = scmp.eq.s32.totalorder %s14, 0
    %p103 = por %p101, %p102
    %p104 = scmp.ne.s32.totalorder %s90, %s91
    %p105 = scmp.eq.s32.totalorder %s15, 1
    %p106 = por %p104, %p105
    %p108 = scmp.ne.s32.totalorder %s91, %s107
    %p109 = scmp.eq.s32.totalorder %s15, 0
    %p110 = por %p108, %p109
    %p111 = scmp.le.s32.totalorder 1, %s9
    %p112 = scmp.lt.s32.totalorder %s9, 3
    %p113 = pnand %p111, %p112
    %p114 = pneg %p113
    // Predicated region
    $region9: #{down_forward.5} parent=5 // pred_check
      _
    $region10: #{down_forward.5} parent=5 // pred_check_branch
      %116 = sbr.rel (%p113) target = $region12
    $region11: #{down_forward.5} parent=5 // pred_region
      %s117 = ssub.s32 %s9, 1
      // Predicated region
      $region13: #{down_forward.5} parent=11 // pred_check
        %p118 = pneg %p56
      $region14: #{down_forward.5} parent=11 // pred_check_branch
        %120 = sbr.rel (%p118) target = $region16
      $region15: #{down_forward.5} parent=11 // pred_region
        _
      $region16: #{down_forward.5} parent=11 // pred_fallthru
        _
      // Predicated region
      $region17: #{down_forward.5} parent=11 // pred_check
        %p121 = pneg %p77
      $region18: #{down_forward.5} parent=11 // pred_check_branch
        %123 = sbr.rel (%p121) target = $region20
      $region19: #{down_forward.5} parent=11 // pred_region
        _
      $region20: #{down_forward.5} parent=11 // pred_fallthru
        _
    $region12: #{down_forward.5} parent=5 // pred_fallthru
      _
    %p124 = scmp.lt.s32.totalorder %s9, 2
    // Predicated region
    $region21: #{down_forward.5} parent=5 // pred_check
      %p125 = pneg %p124
    $region22: #{down_forward.5} parent=5 // pred_check_branch
      %127 = sbr.rel (%p125) target = $region24
    $region23: #{down_forward.5} parent=5 // pred_region
      // Predicated region
      $region25: #{down_forward.5} parent=23 // pred_check
        %p128 = pneg %p29
      $region26: #{down_forward.5} parent=23 // pred_check_branch
        %130 = sbr.rel (%p128) target = $region28
      $region27: #{down_forward.5} parent=23 // pred_region
        %p131 = scmp.lt.s32.totalorder %s9, 1
        %s132 = scalar_select %p131, %s9, 1
        %s133 = smul.addr %s132, 8
        %s134 = smul.addr %s133, 4
        %s135 = scalar_lea.vmem %s0, %s134
      $region28: #{down_forward.5} parent=23 // pred_fallthru
        _
    $region24: #{down_forward.5} parent=5 // pred_fallthru
      _
    %p136 = scmp.le.s32.totalorder 1, %s9
    %p137 = scmp.lt.s32.totalorder %s9, 3
    %p138 = pnand %p136, %p137
    %p139 = pneg %p138
    // Predicated region
    $region29: #{down_forward.5} parent=5 // pred_check
      _
    $region30: #{down_forward.5} parent=5 // pred_check_branch
      %141 = sbr.rel (%p138) target = $region32
    $region31: #{down_forward.5} parent=5 // pred_region
      %s142 = ssub.s32 %s9, 1
      %p143 = scmp.lt.s32.totalorder %s14, 1
      %s144 = scalar_select %p143, %s14, 1
      %s145 = smul.addr %s144, 8
      %s146 = smul.addr %s145, 4
      %s147 = scalar_lea.vmem %s0, %s146
      %p148 = pneg %p35
      %p149 = pneg %p32
      %p150 = pneg %p56
      %p151 = pneg %p53
      %p152 = pneg %p77
      %p153 = pneg %p74
      %p154 = pneg %p103
      %p155 = pneg %p100
      %p156 = scmp.lt.s32.totalorder %s14, 1
      %s157 = scalar_select %p156, %s14, 1
      %s158 = smul.addr %s157, 8
      %s159 = scalar_lea.vmem %s3, %s158
      %p160 = scmp.lt.s32.totalorder %s14, 1
      %s161 = scalar_select %p160, %s14, 1
      %s162 = smul.addr %s161, 8
      %s163 = smul.addr %s162, 4
      %s164 = scalar_lea.vmem %s0, %s163
      %p165 = scmp.lt.s32.totalorder %s14, 1
      %s166 = scalar_select %p165, %s14, 1
      %s167 = smul.addr %s166, 8
      %s168 = scalar_lea.vmem %s3, %s167
      %v169 = vld [vmem:[%s164] sm:$0xf]
      %v170 = vld [vmem:[%s164 + $0x4] sm:$0xf]
      %v171 = vld [vmem:[%s164 + $0x8] sm:$0xf]
      %v172 = vld [vmem:[%s164 + $0xc] sm:$0xf]
      %v173 = vld [vmem:[%s164 + $0x10] sm:$0xf]
      %v174 = vld [vmem:[%s164 + $0x14] sm:$0xf]
      %v175 = vld [vmem:[%s164 + $0x18] sm:$0xf]
      %v176 = vld [vmem:[%s164 + $0x1c] sm:$0xf]
      %v177 = vunpack.c.l.bf16 %v169
      %v178 = vunpack.c.l.bf16 %v170
      %v179 = vunpack.c.l.bf16 %v171
      %v180 = vunpack.c.l.bf16 %v172
      %v181 = vunpack.c.l.bf16 %v173
      %v182 = vunpack.c.l.bf16 %v174
      %v183 = vunpack.c.l.bf16 %v175
      %v184 = vunpack.c.l.bf16 %v176
      %v185 = vld [vmem:[%s1] sm:$0x1]
      %v187 = vperm.slane %v185, 0
      %v189 = vmul.f32 %v177, %v187
      %v190 = vmul.f32 %v178, %v187
      %v191 = vmul.f32 %v179, %v187
      %v192 = vmul.f32 %v180, %v187
      %v193 = vmul.f32 %v181, %v187
      %v194 = vmul.f32 %v182, %v187
      %v195 = vmul.f32 %v183, %v187
      %v196 = vmul.f32 %v184, %v187
      %v197 = vld [vmem:[%s2] sm:$0x1]
      %v199 = vperm.slane %v197, 0
      %v201 = vadd.f32 %v189, %v199
      %v202 = vadd.f32 %v190, %v199
      %v203 = vadd.f32 %v191, %v199
      %v204 = vadd.f32 %v192, %v199
      %v205 = vadd.f32 %v193, %v199
      %v206 = vadd.f32 %v194, %v199
      %v207 = vadd.f32 %v195, %v199
      %v208 = vadd.f32 %v196, %v199
      %v209 = vmax.f32 %v201, 0.0
      %v210 = vmax.f32 %v202, 0.0
      %v211 = vmax.f32 %v203, 0.0
      %v212 = vmax.f32 %v204, 0.0
      %v213 = vmax.f32 %v205, 0.0
      %v214 = vmax.f32 %v206, 0.0
      %v215 = vmax.f32 %v207, 0.0
      %v216 = vmax.f32 %v208, 0.0
      %217 = vxpose.xlu0.b32.start [1/16] %v209, 128
      %218 = vxpose.xlu0.b32.cont [2/16] %v210, 128
      %219 = vxpose.xlu0.b32.cont [3/16] %v211, 128
      %220 = vxpose.xlu0.b32.cont [4/16] %v212, 128
      %221 = vxpose.xlu0.b32.cont [5/16] %v213, 128
      %222 = vxpose.xlu0.b32.cont [6/16] %v214, 128
      %223 = vxpose.xlu0.b32.cont [7/16] %v215, 128
      %224 = vxpose.xlu0.b32.cont [8/16] %v216, 128
      %225 = vxpose.xlu0.b32.cont [9/16] 0.0, 128
      %226 = vxpose.xlu0.b32.cont [10/16] 0.0, 128
      %227 = vxpose.xlu0.b32.cont [11/16] 0.0, 128
      %228 = vxpose.xlu0.b32.cont [12/16] 0.0, 128
      %229 = vxpose.xlu0.b32.cont [13/16] 0.0, 128
      %230 = vxpose.xlu0.b32.cont [14/16] 0.0, 128
      %231 = vxpose.xlu0.b32.cont [15/16] 0.0, 128
      %232 = vxpose.xlu0.b32.end [16/16] 0.0, 128
      %v233 = vpop.trf.xlu0
      %v234 = vpop.trf.xlu0
      %v235 = vpop.trf.xlu0
      %v236 = vpop.trf.xlu0
      %v237 = vpop.trf.xlu0
      %v238 = vpop.trf.xlu0
      %v239 = vpop.trf.xlu0
      %v240 = vpop.trf.xlu0
      %v241 = vpop.trf.xlu0
      %v242 = vpop.trf.xlu0
      %v243 = vpop.trf.xlu0
      %v244 = vpop.trf.xlu0
      %v245 = vpop.trf.xlu0
      %v246 = vpop.trf.xlu0
      %v247 = vpop.trf.xlu0
      %v248 = vpop.trf.xlu0
      %vm249 = vcmask 523264
      %250 = vst.msk [vmem:[%s168] sm:$0xff] %vm249, %v233
      %p251 = scmp.lt.s32.totalorder %s14, 1
      %s252 = scalar_select %p251, %s14, 1
      %s253 = smul.addr %s252, 8
      %s254 = scalar_lea.vmem %s3, %s253
      // Predicated region
      $region33: #{down_forward.5} parent=31 // pred_check
        %p255 = pneg %p100
      $region34: #{down_forward.5} parent=31 // pred_check_branch
        %257 = sbr.rel (%p255) target = $region36
      $region35: #{down_forward.5} parent=31 // pred_region
        _
      $region36: #{down_forward.5} parent=31 // pred_fallthru
        _
    $region32: #{down_forward.5} parent=5 // pred_fallthru
      _
    %p258 = scmp.le.s32.totalorder 2, %s9
    // Predicated region
    $region37: #{down_forward.5} parent=5 // pred_check
      %p259 = pneg %p258
    $region38: #{down_forward.5} parent=5 // pred_check_branch
      %261 = sbr.rel (%p259) target = $region40
    $region39: #{down_forward.5} parent=5 // pred_region
      %s262 = ssub.s32 %s9, 2
      // Predicated region
      $region41: #{down_forward.5} parent=39 // pred_check
        %p263 = pneg %p106
      $region42: #{down_forward.5} parent=39 // pred_check_branch
        %265 = sbr.rel (%p263) target = $region44
      $region43: #{down_forward.5} parent=39 // pred_region
        %p266 = scmp.lt.s32.totalorder %s15, 1
        %s267 = scalar_select %p266, %s15, 1
        %s268 = smul.addr %s267, 8
        %s269 = scalar_lea.vmem %s3, %s268
      $region44: #{down_forward.5} parent=39 // pred_fallthru
        _
    $region40: #{down_forward.5} parent=5 // pred_fallthru
      _
  $region6: #{down_forward.5} parent=0 // loop_footer
    %s13 = sadd.s32 1, %s9
  $region7: #{down_forward.5} parent=0 // loop_footer_branch
    %8 = sbr.rel target = $region3
  $region8: #{down_forward.5} parent=0 // loop_exit
    _

// kernel: down_forward.4
$region0: #{down_forward.4}
  #allocation0 [shape = 'u32[]', space=smem, size = 0x4, offset = 0x4, fixed_abs, tag = 'smem constant byte address 0x4 - core index']
  #allocation1 [shape = 'u32[72,128]{1,0:T(1,128)}', space=vmem, size = 0x9000, scoped, tag = 'internal scratch']
  #allocation2 [shape = 'bf16[10,10,8]{2,1,0:T(8,128)(2,1)}', space=vmem, size = 0xa000, scoped, tag = 'scratch operand']
  %s0 = inlined_call_operand.vmem [shape: bf16[2,64,8], index: 0, kind: input, shape index: {}]
  %s1 = inlined_call_operand.vmem [shape: f32[1,8], index: 1, kind: input, shape index: {}]
  %s2 = inlined_call_operand.vmem [shape: f32[1,8], index: 2, kind: input, shape index: {}]
  %s3 = inlined_call_operand.vmem [shape: bf16[3,3,8,8], index: 3, kind: input, shape index: {}]
  %s4 = inlined_call_operand.vmem [shape: bf16[2,64,8], index: 4, kind: output, shape index: {0}]
  %s5 = inlined_call_operand.vmem [shape: f32[2,2,8], index: 5, kind: output, shape index: {1}]
  %6 = xla_tuple %s4, %s5
  %s7 = sld [smem:[#allocation0]]
  $region57: #{down_forward.4} parent=0
    _
  %s9 = ssub.s32 1, %s7
  %s10 = scalar_select 0, %s9, %s7
  loop: start=0, step=1, limit=4
  $region2: #{down_forward.4} parent=0 // loop_pre_header
    _
  $region3: #{down_forward.4} parent=0 // loop_header
    %s12 = sphi 0, %s16
    %p13 = scmp.ge.s32.totalorder %s12, 4
    %s22 = sphi 0, %s24
    %s25 = sphi 0, %s22
    %s26 = sphi 0, %s25
    %s42 = sphi 0, %s26
    %s46 = sphi 0, %s46
    %s48 = sphi 0, %s46
    %s49 = sphi 0, %s48
    %s63 = sphi 0, %s49
    %s67 = sphi 0, %s67
    %s69 = sphi 0, %s67
    %s70 = sphi 0, %s69
    %s84 = sphi 0, %s70
    %s88 = sphi 0, %s88
    %s90 = sphi 0, %s88
    %s91 = sphi 0, %s90
    %s105 = sphi 0, %s91
    %s111 = sphi 0, %s113
    %s114 = sphi 0, %s111
    %s115 = sphi 0, %s114
    %s131 = sphi 0, %s115
    %s137 = sphi 0, %s139
    %s140 = sphi 0, %s137
    %s141 = sphi 0, %s140
    %s157 = sphi 0, %s141
  $region4: #{down_forward.4} parent=0 // loop_header_branch
    %15 = sbr.rel (%p13) target = $region8
  $region5: #{down_forward.4} parent=0 // loop_body
    %s17 = ssub.s32 %s12, 1
    %s18 = ssub.s32 %s12, 2
    %s19 = sadd.s32 %s12, 1
    %s20 = ssub.s32 %s12, %s19
    %p21 = scmp.eq.s32.totalorder %s20, 0
    %s23 = sadd.s32 %s22, 1
    %s24 = scalar_select %p21, %s22, %s23
    %p27 = pneg %p21
    %p28 = scmp.eq.s32.totalorder %s12, 1
    %p29 = por %p27, %p28
    %p30 = scmp.ne.s32.totalorder %s22, %s25
    %p31 = scmp.eq.s32.totalorder %s12, 0
    %p32 = por %p30, %p31
    %p33 = scmp.ne.s32.totalorder %s22, %s25
    %p34 = scmp.eq.s32.totalorder %s17, 1
    %p35 = por %p33, %p34
    %p36 = scmp.ne.s32.totalorder %s25, %s26
    %p37 = scmp.eq.s32.totalorder %s17, 0
    %p38 = por %p36, %p37
    %p39 = scmp.ne.s32.totalorder %s25, %s26
    %p40 = scmp.eq.s32.totalorder %s18, 1
    %p41 = por %p39, %p40
    %p43 = scmp.ne.s32.totalorder %s26, %s42
    %p44 = scmp.eq.s32.totalorder %s18, 0
    %p45 = por %p43, %p44
    %s47 = sadd.s32 %s46, 1
    %p50 = scmp.eq.s32.totalorder %s12, 1
    %p51 = scmp.ne.s32.totalorder %s46, %s48
    %p52 = scmp.eq.s32.totalorder %s12, 0
    %p53 = por %p51, %p52
    %p54 = scmp.ne.s32.totalorder %s46, %s48
    %p55 = scmp.eq.s32.totalorder %s17, 1
    %p56 = por %p54, %p55
    %p57 = scmp.ne.s32.totalorder %s48, %s49
    %p58 = scmp.eq.s32.totalorder %s17, 0
    %p59 = por %p57, %p58
    %p60 = scmp.ne.s32.totalorder %s48, %s49
    %p61 = scmp.eq.s32.totalorder %s18, 1
    %p62 = por %p60, %p61
    %p64 = scmp.ne.s32.totalorder %s49, %s63
    %p65 = scmp.eq.s32.totalorder %s18, 0
    %p66 = por %p64, %p65
    %s68 = sadd.s32 %s67, 1
    %p71 = scmp.eq.s32.totalorder %s12, 1
    %p72 = scmp.ne.s32.totalorder %s67, %s69
    %p73 = scmp.eq.s32.totalorder %s12, 0
    %p74 = por %p72, %p73
    %p75 = scmp.ne.s32.totalorder %s67, %s69
    %p76 = scmp.eq.s32.totalorder %s17, 1
    %p77 = por %p75, %p76
    %p78 = scmp.ne.s32.totalorder %s69, %s70
    %p79 = scmp.eq.s32.totalorder %s17, 0
    %p80 = por %p78, %p79
    %p81 = scmp.ne.s32.totalorder %s69, %s70
    %p82 = scmp.eq.s32.totalorder %s18, 1
    %p83 = por %p81, %p82
    %p85 = scmp.ne.s32.totalorder %s70, %s84
    %p86 = scmp.eq.s32.totalorder %s18, 0
    %p87 = por %p85, %p86
    %s89 = sadd.s32 %s88, 1
    %p92 = scmp.eq.s32.totalorder %s12, 1
    %p93 = scmp.ne.s32.totalorder %s88, %s90
    %p94 = scmp.eq.s32.totalorder %s12, 0
    %p95 = por %p93, %p94
    %p96 = scmp.ne.s32.totalorder %s88, %s90
    %p97 = scmp.eq.s32.totalorder %s17, 1
    %p98 = por %p96, %p97
    %p99 = scmp.ne.s32.totalorder %s90, %s91
    %p100 = scmp.eq.s32.totalorder %s17, 0
    %p101 = por %p99, %p100
    %p102 = scmp.ne.s32.totalorder %s90, %s91
    %p103 = scmp.eq.s32.totalorder %s18, 1
    %p104 = por %p102, %p103
    %p106 = scmp.ne.s32.totalorder %s91, %s105
    %p107 = scmp.eq.s32.totalorder %s18, 0
    %p108 = por %p106, %p107
    %s109 = ssub.s32 %s12, %s19
    %p110 = scmp.eq.s32.totalorder %s109, 0
    %s112 = sadd.s32 %s111, 1
    %s113 = scalar_select %p110, %s111, %s112
    %p116 = pneg %p110
    %p117 = scmp.eq.s32.totalorder %s12, 1
    %p118 = por %p116, %p117
    %p119 = scmp.ne.s32.totalorder %s111, %s114
    %p120 = scmp.eq.s32.totalorder %s12, 0
    %p121 = por %p119, %p120
    %p122 = scmp.ne.s32.totalorder %s111, %s114
    %p123 = scmp.eq.s32.totalorder %s17, 1
    %p124 = por %p122, %p123
    %p125 = scmp.ne.s32.totalorder %s114, %s115
    %p126 = scmp.eq.s32.totalorder %s17, 0
    %p127 = por %p125, %p126
    %p128 = scmp.ne.s32.totalorder %s114, %s115
    %p129 = scmp.eq.s32.totalorder %s18, 1
    %p130 = por %p128, %p129
    %p132 = scmp.ne.s32.totalorder %s115, %s131
    %p133 = scmp.eq.s32.totalorder %s18, 0
    %p134 = por %p132, %p133
    %s135 = ssub.s32 %s12, %s19
    %p136 = scmp.eq.s32.totalorder %s135, 0
    %s138 = sadd.s32 %s137, 1
    %s139 = scalar_select %p136, %s137, %s138
    %p142 = pneg %p136
    %p143 = scmp.eq.s32.totalorder %s12, 1
    %p144 = por %p142, %p143
    %p145 = scmp.ne.s32.totalorder %s137, %s140
    %p146 = scmp.eq.s32.totalorder %s12, 0
    %p147 = por %p145, %p146
    %p148 = scmp.ne.s32.totalorder %s137, %s140
    %p149 = scmp.eq.s32.totalorder %s17, 1
    %p150 = por %p148, %p149
    %p151 = scmp.ne.s32.totalorder %s140, %s141
    %p152 = scmp.eq.s32.totalorder %s17, 0
    %p153 = por %p151, %p152
    %p154 = scmp.ne.s32.totalorder %s140, %s141
    %p155 = scmp.eq.s32.totalorder %s18, 1
    %p156 = por %p154, %p155
    %p158 = scmp.ne.s32.totalorder %s141, %s157
    %p159 = scmp.eq.s32.totalorder %s18, 0
    %p160 = por %p158, %p159
    %p161 = scmp.le.s32.totalorder 1, %s12
    %p162 = scmp.lt.s32.totalorder %s12, 3
    %p163 = pnand %p161, %p162
    %p164 = pneg %p163
    // Predicated region
    $region9: #{down_forward.4} parent=5 // pred_check
      _
    $region10: #{down_forward.4} parent=5 // pred_check_branch
      %166 = sbr.rel (%p163) target = $region12
    $region11: #{down_forward.4} parent=5 // pred_region
      %s167 = ssub.s32 %s12, 1
      // Predicated region
      $region13: #{down_forward.4} parent=11 // pred_check
        %p168 = pneg %p59
      $region14: #{down_forward.4} parent=11 // pred_check_branch
        %170 = sbr.rel (%p168) target = $region16
      $region15: #{down_forward.4} parent=11 // pred_region
        _
      $region16: #{down_forward.4} parent=11 // pred_fallthru
        _
      // Predicated region
      $region17: #{down_forward.4} parent=11 // pred_check
        %p171 = pneg %p80
      $region18: #{down_forward.4} parent=11 // pred_check_branch
        %173 = sbr.rel (%p171) target = $region20
      $region19: #{down_forward.4} parent=11 // pred_region
        _
      $region20: #{down_forward.4} parent=11 // pred_fallthru
        _
      // Predicated region
      $region21: #{down_forward.4} parent=11 // pred_check
        %p174 = pneg %p101
      $region22: #{down_forward.4} parent=11 // pred_check_branch
        %176 = sbr.rel (%p174) target = $region24
      $region23: #{down_forward.4} parent=11 // pred_region
        _
      $region24: #{down_forward.4} parent=11 // pred_fallthru
        _
    $region12: #{down_forward.4} parent=5 // pred_fallthru
      _
    %p177 = scmp.lt.s32.totalorder %s12, 2
    // Predicated region
    $region25: #{down_forward.4} parent=5 // pred_check
      %p178 = pneg %p177
    $region26: #{down_forward.4} parent=5 // pred_check_branch
      %180 = sbr.rel (%p178) target = $region28
    $region27: #{down_forward.4} parent=5 // pred_region
      // Predicated region
      $region29: #{down_forward.4} parent=27 // pred_check
        %p181 = pneg %p32
      $region30: #{down_forward.4} parent=27 // pred_check_branch
        %183 = sbr.rel (%p181) target = $region32
      $region31: #{down_forward.4} parent=27 // pred_region
        %p184 = scmp.lt.s32.totalorder %s12, 1
        %s185 = scalar_select %p184, %s12, 1
        %s186 = smul.addr %s185, 8
        %s187 = smul.addr %s186, 4
        %s188 = scalar_lea.vmem %s0, %s187
      $region32: #{down_forward.4} parent=27 // pred_fallthru
        _
    $region28: #{down_forward.4} parent=5 // pred_fallthru
      _
    %p189 = scmp.le.s32.totalorder 1, %s12
    %p190 = scmp.lt.s32.totalorder %s12, 3
    %p191 = pnand %p189, %p190
    %p192 = pneg %p191
    // Predicated region
    $region33: #{down_forward.4} parent=5 // pred_check
      _
    $region34: #{down_forward.4} parent=5 // pred_check_branch
      %194 = sbr.rel (%p191) target = $region36
    $region35: #{down_forward.4} parent=5 // pred_region
      %s195 = ssub.s32 %s12, 1
      %p196 = scmp.lt.s32.totalorder %s17, 1
      %s197 = scalar_select %p196, %s17, 1
      %s198 = smul.addr %s197, 8
      %s199 = smul.addr %s198, 4
      %s200 = scalar_lea.vmem %s0, %s199
      %p201 = pneg %p38
      %p202 = pneg %p35
      %p203 = pneg %p59
      %p204 = pneg %p56
      %p205 = pneg %p80
      %p206 = pneg %p77
      %p207 = pneg %p101
      %p208 = pneg %p98
      %p209 = pneg %p127
      %p210 = pneg %p124
      %p211 = scmp.lt.s32.totalorder %s17, 1
      %s212 = scalar_select %p211, %s17, 1
      %s213 = smul.addr %s212, 8
      %s214 = smul.addr %s213, 4
      %s215 = scalar_lea.vmem %s4, %s214
      %p216 = pneg %p153
      %p217 = pneg %p150
      %p218 = scmp.lt.s32.totalorder %s17, 1
      %s219 = scalar_select %p218, %s17, 1
      %s220 = smul.addr %s219, 2
      %s221 = scalar_lea.vmem %s5, %s220
      %p222 = scmp.lt.s32.totalorder %s17, 1
      %s223 = scalar_select %p222, %s17, 1
      %s224 = smul.addr %s223, 8
      %s225 = smul.addr %s224, 4
      %s226 = scalar_lea.vmem %s0, %s225
      %p227 = scmp.lt.s32.totalorder %s17, 1
      %s228 = scalar_select %p227, %s17, 1
      %s229 = smul.addr %s228, 8
      %s230 = smul.addr %s229, 4
      %s231 = scalar_lea.vmem %s4, %s230
      %p232 = scmp.lt.s32.totalorder %s17, 1
      %s233 = scalar_select %p232, %s17, 1
      %s234 = smul.addr %s233, 2
      %s235 = scalar_lea.vmem %s5, %s234
      %v237 = vld [vmem:[%s226] sm:$0xf]
      %v238 = vld [vmem:[%s226 + $0x4] sm:$0xf]
      %v239 = vld [vmem:[%s226 + $0x8] sm:$0xf]
      %v240 = vld [vmem:[%s226 + $0xc] sm:$0xf]
      %v241 = vld [vmem:[%s226 + $0x10] sm:$0xf]
      %v242 = vld [vmem:[%s226 + $0x14] sm:$0xf]
      %v243 = vld [vmem:[%s226 + $0x18] sm:$0xf]
      %v244 = vld [vmem:[%s226 + $0x1c] sm:$0xf]
      %v245 = vunpack.c.l.bf16 %v237
      %v246 = vunpack.c.l.bf16 %v238
      %v247 = vunpack.c.l.bf16 %v239
      %v248 = vunpack.c.l.bf16 %v240
      %v249 = vunpack.c.l.bf16 %v241
      %v250 = vunpack.c.l.bf16 %v242
      %v251 = vunpack.c.l.bf16 %v243
      %v252 = vunpack.c.l.bf16 %v244
      %v253 = vld [vmem:[%s1] sm:$0x1]
      %v255 = vperm.slane %v253, 0
      %v257 = vmul.f32 %v245, %v255
      %v258 = vmul.f32 %v246, %v255
      %v259 = vmul.f32 %v247, %v255
      %v260 = vmul.f32 %v248, %v255
      %v261 = vmul.f32 %v249, %v255
      %v262 = vmul.f32 %v250, %v255
      %v263 = vmul.f32 %v251, %v255
      %v264 = vmul.f32 %v252, %v255
      %v265 = vld [vmem:[%s2] sm:$0x1]
      %v267 = vperm.slane %v265, 0
      %v269 = vadd.f32 %v257, %v267
      %v270 = vadd.f32 %v258, %v267
      %v271 = vadd.f32 %v259, %v267
      %v272 = vadd.f32 %v260, %v267
      %v273 = vadd.f32 %v261, %v267
      %v274 = vadd.f32 %v262, %v267
      %v275 = vadd.f32 %v263, %v267
      %v276 = vadd.f32 %v264, %v267
      %v277 = vmax.f32 %v269, 0.0
      %v278 = vmax.f32 %v270, 0.0
      %v279 = vmax.f32 %v271, 0.0
      %v280 = vmax.f32 %v272, 0.0
      %v281 = vmax.f32 %v273, 0.0
      %v282 = vmax.f32 %v274, 0.0
      %v283 = vmax.f32 %v275, 0.0
      %v284 = vmax.f32 %v276, 0.0
      %vm285 = vcmask 60416
      %286 = vst.msk [vmem:[#allocation2] sm:$0xf] %vm285, 0
      %vm287 = vcmask 57344
      %288 = vst.msk [vmem:[#allocation2 + $0x4] sm:$0x1] %vm287, 0
      %s289 = scalar_lea.vmem [#allocation2], 72
      %290 = vst.msk [vmem:[%s289] sm:$0xf] %vm285, 0
      %291 = vst.msk [vmem:[%s289 + $0x4] sm:$0x1] %vm287, 0
      %vm292 = vcmask 57344
      %vm293 = vsmask.f32 256
      %vm294 = vmand %vm292, %vm293
      %v295 = vld [vmem:[#allocation2] sm:$0x1]
      %v296 = vsel %vm294, 0, %v295
      %297 = vst [vmem:[#allocation2] sm:$0x1] %v296
      %v298 = vld [vmem:[#allocation2 + $0x8] sm:$0x1]
      %v299 = vsel %vm294, 0, %v298
      %300 = vst [vmem:[#allocation2 + $0x8] sm:$0x1] %v299
      %v301 = vld [vmem:[#allocation2 + $0x10] sm:$0x1]
      %v302 = vsel %vm294, 0, %v301
      %303 = vst [vmem:[#allocation2 + $0x10] sm:$0x1] %v302
      %v304 = vld [vmem:[#allocation2 + $0x18] sm:$0x1]
      %v305 = vsel %vm294, 0, %v304
      %306 = vst [vmem:[#allocation2 + $0x18] sm:$0x1] %v305
      %v307 = vld [vmem:[#allocation2 + $0x20] sm:$0x1]
      %v308 = vsel %vm294, 0, %v307
      %309 = vst [vmem:[#allocation2 + $0x20] sm:$0x1] %v308
      %v310 = vld [vmem:[#allocation2 + $0x28] sm:$0x1]
      %v311 = vsel %vm294, 0, %v310
      %312 = vst [vmem:[#allocation2 + $0x28] sm:$0x1] %v311
      %v313 = vld [vmem:[#allocation2 + $0x30] sm:$0x1]
      %v314 = vsel %vm294, 0, %v313
      %315 = vst [vmem:[#allocation2 + $0x30] sm:$0x1] %v314
      %v316 = vld [vmem:[#allocation2 + $0x38] sm:$0x1]
      %v317 = vsel %vm294, 0, %v316
      %318 = vst [vmem:[#allocation2 + $0x38] sm:$0x1] %v317
      %v319 = vld [vmem:[#allocation2 + $0x40] sm:$0x1]
      %v320 = vsel %vm294, 0, %v319
      %321 = vst [vmem:[#allocation2 + $0x40] sm:$0x1] %v320
      %v322 = vld [vmem:[#allocation2 + $0x48] sm:$0x1]
      %v323 = vsel %vm294, 0, %v322
      %324 = vst [vmem:[#allocation2 + $0x48] sm:$0x1] %v323
      %vm325 = vsmask.f32 7938
      %vm326 = vmand %vm292, %vm325
      %v327 = vld [vmem:[#allocation2 + $0x4] sm:$0x1]
      %v328 = vsel %vm326, 0, %v327
      %329 = vst [vmem:[#allocation2 + $0x4] sm:$0x1] %v328
      %v330 = vld [vmem:[#allocation2 + $0xc] sm:$0x1]
      %v331 = vsel %vm326, 0, %v330
      %332 = vst [vmem:[#allocation2 + $0xc] sm:$0x1] %v331
      %v333 = vld [vmem:[#allocation2 + $0x14] sm:$0x1]
      %v334 = vsel %vm326, 0, %v333
      %335 = vst [vmem:[#allocation2 + $0x14] sm:$0x1] %v334
      %v336 = vld [vmem:[#allocation2 + $0x1c] sm:$0x1]
      %v337 = vsel %vm326, 0, %v336
      %338 = vst [vmem:[#allocation2 + $0x1c] sm:$0x1] %v337
      %v339 = vld [vmem:[#allocation2 + $0x24] sm:$0x1]
      %v340 = vsel %vm326, 0, %v339
      %341 = vst [vmem:[#allocation2 + $0x24] sm:$0x1] %v340
      %v342 = vld [vmem:[#allocation2 + $0x2c] sm:$0x1]
      %v343 = vsel %vm326, 0, %v342
      %344 = vst [vmem:[#allocation2 + $0x2c] sm:$0x1] %v343
      %v345 = vld [vmem:[#allocation2 + $0x34] sm:$0x1]
      %v346 = vsel %vm326, 0, %v345
      %347 = vst [vmem:[#allocation2 + $0x34] sm:$0x1] %v346
      %v348 = vld [vmem:[#allocation2 + $0x3c] sm:$0x1]
      %v349 = vsel %vm326, 0, %v348
      %350 = vst [vmem:[#allocation2 + $0x3c] sm:$0x1] %v349
      %v351 = vld [vmem:[#allocation2 + $0x44] sm:$0x1]
      %v352 = vsel %vm326, 0, %v351
      %353 = vst [vmem:[#allocation2 + $0x44] sm:$0x1] %v352
      %v354 = vld [vmem:[#allocation2 + $0x4c] sm:$0x1]
      %v355 = vsel %vm326, 0, %v354
      %356 = vst [vmem:[#allocation2 + $0x4c] sm:$0x1] %v355
      %v357 = vpack.c.bf16 %v277, %v277
      %v358 = vpack.c.bf16 %v278, %v278
      %v359 = vpack.c.bf16 %v279, %v279
      %v360 = vpack.c.bf16 %v280, %v280
      %v361 = vpack.c.bf16 %v281, %v281
      %v362 = vpack.c.bf16 %v282, %v282
      %v363 = vpack.c.bf16 %v283, %v283
      %v364 = vpack.c.bf16 %v284, %v284
      %v366 = vshrl.u32 %v357, 16
      %v368 = vrot.slane %v366, 7
      %v369 = vshll.u32 %v357, 16
      %v371 = vor.u32 %v368, %v369
      %v372 = vrot.slane %v368, 4
      %v374 = vshrl.u32 %v358, 16
      %v376 = vrot.slane %v374, 7
      %v377 = vshll.u32 %v358, 16
      %v379 = vor.u32 %v376, %v377
      %v380 = vrot.slane %v376, 4
      %v382 = vshrl.u32 %v359, 16
      %v384 = vrot.slane %v382, 7
      %v385 = vshll.u32 %v359, 16
      %v387 = vor.u32 %v384, %v385
      %v388 = vrot.slane %v384, 4
      %v390 = vshrl.u32 %v360, 16
      %v392 = vrot.slane %v390, 7
      %v393 = vshll.u32 %v360, 16
      %v395 = vor.u32 %v392, %v393
      %v396 = vrot.slane %v392, 4
      %v398 = vshrl.u32 %v361, 16
      %v400 = vrot.slane %v398, 7
      %v401 = vshll.u32 %v361, 16
      %v403 = vor.u32 %v400, %v401
      %v404 = vrot.slane %v400, 4
      %v406 = vshrl.u32 %v362, 16
      %v408 = vrot.slane %v406, 7
      %v409 = vshll.u32 %v362, 16
      %v411 = vor.u32 %v408, %v409
      %v412 = vrot.slane %v408, 4
      %v414 = vshrl.u32 %v363, 16
      %v416 = vrot.slane %v414, 7
      %v417 = vshll.u32 %v363, 16
      %v419 = vor.u32 %v416, %v417
      %v420 = vrot.slane %v416, 4
      %v422 = vshrl.u32 %v364, 16
      %v424 = vrot.slane %v422, 7
      %v425 = vshll.u32 %v364, 16
      %v427 = vor.u32 %v424, %v425
      %v428 = vrot.slane %v424, 4
      %s445 = scalar_lea.vmem [#allocation2], 8
      %vm446 = vcmask 60416
      %vm447 = vmand %vm446, %vm325
      %v448 = vld [vmem:[%s445] sm:$0xf]
      %v449 = vsel %vm447, %v371, %v448
      %450 = vst [vmem:[%s445] sm:$0xf] %v449
      %v451 = vld [vmem:[%s445 + $0x4] sm:$0x1]
      %v452 = vsel %vm294, %v372, %v451
      %453 = vst [vmem:[%s445 + $0x4] sm:$0x1] %v452
      %v454 = vld [vmem:[%s445 + $0x8] sm:$0xf]
      %v455 = vsel %vm447, %v379, %v454
      %456 = vst [vmem:[%s445 + $0x8] sm:$0xf] %v455
      %v457 = vld [vmem:[%s445 + $0xc] sm:$0x1]
      %v458 = vsel %vm294, %v380, %v457
      %459 = vst [vmem:[%s445 + $0xc] sm:$0x1] %v458
      %v460 = vld [vmem:[%s445 + $0x10] sm:$0xf]
      %v461 = vsel %vm447, %v387, %v460
      %462 = vst [vmem:[%s445 + $0x10] sm:$0xf] %v461
      %v463 = vld [vmem:[%s445 + $0x14] sm:$0x1]
      %v464 = vsel %vm294, %v388, %v463
      %465 = vst [vmem:[%s445 + $0x14] sm:$0x1] %v464
      %v466 = vld [vmem:[%s445 + $0x18] sm:$0xf]
      %v467 = vsel %vm447, %v395, %v466
      %468 = vst [vmem:[%s445 + $0x18] sm:$0xf] %v467
      %v469 = vld [vmem:[%s445 + $0x1c] sm:$0x1]
      %v470 = vsel %vm294, %v396, %v469
      %471 = vst [vmem:[%s445 + $0x1c] sm:$0x1] %v470
      %v472 = vld [vmem:[%s445 + $0x20] sm:$0xf]
      %v473 = vsel %vm447, %v403, %v472
      %474 = vst [vmem:[%s445 + $0x20] sm:$0xf] %v473
      %v475 = vld [vmem:[%s445 + $0x24] sm:$0x1]
      %v476 = vsel %vm294, %v404, %v475
      %477 = vst [vmem:[%s445 + $0x24] sm:$0x1] %v476
      %v478 = vld [vmem:[%s445 + $0x28] sm:$0xf]
      %v479 = vsel %vm447, %v411, %v478
      %480 = vst [vmem:[%s445 + $0x28] sm:$0xf] %v479
      %v481 = vld [vmem:[%s445 + $0x2c] sm:$0x1]
      %v482 = vsel %vm294, %v412, %v481
      %483 = vst [vmem:[%s445 + $0x2c] sm:$0x1] %v482
      %v484 = vld [vmem:[%s445 + $0x30] sm:$0xf]
      %v485 = vsel %vm447, %v419, %v484
      %486 = vst [vmem:[%s445 + $0x30] sm:$0xf] %v485
      %v487 = vld [vmem:[%s445 + $0x34] sm:$0x1]
      %v488 = vsel %vm294, %v420, %v487
      %489 = vst [vmem:[%s445 + $0x34] sm:$0x1] %v488
      %v490 = vld [vmem:[%s445 + $0x38] sm:$0xf]
      %v491 = vsel %vm447, %v427, %v490
      %492 = vst [vmem:[%s445 + $0x38] sm:$0xf] %v491
      %v493 = vld [vmem:[%s445 + $0x3c] sm:$0x1]
      %v494 = vsel %vm294, %v428, %v493
      %495 = vst [vmem:[%s445 + $0x3c] sm:$0x1] %v494
      %v496 = vld [vmem:[#allocation2] sm:$0xf]
      %v497 = vld [vmem:[#allocation2 + $0x4] sm:$0x1]
      %v498 = vld [vmem:[#allocation2 + $0x8] sm:$0xf]
      %v499 = vld [vmem:[#allocation2 + $0xc] sm:$0x1]
      %v500 = vld [vmem:[#allocation2 + $0x10] sm:$0xf]
      %v501 = vld [vmem:[#allocation2 + $0x14] sm:$0x1]
      %v502 = vld [vmem:[#allocation2 + $0x18] sm:$0xf]
      %v503 = vld [vmem:[#allocation2 + $0x1c] sm:$0x1]
      %v504 = vld [vmem:[#allocation2 + $0x20] sm:$0xf]
      %v505 = vld [vmem:[#allocation2 + $0x24] sm:$0x1]
      %v506 = vld [vmem:[#allocation2 + $0x28] sm:$0xf]
      %v507 = vld [vmem:[#allocation2 + $0x2c] sm:$0x1]
      %v508 = vld [vmem:[#allocation2 + $0x30] sm:$0xf]
      %v509 = vld [vmem:[#allocation2 + $0x34] sm:$0x1]
      %v510 = vld [vmem:[#allocation2 + $0x38] sm:$0xf]
      %v511 = vld [vmem:[#allocation2 + $0x3c] sm:$0x1]
      %v528 = vunpack.c.l.b16 %v496
      %v529 = vunpack.c.l.b16 %v497
      %v530 = vunpack.c.l.b16 %v498
      %v531 = vunpack.c.l.b16 %v499
      %v532 = vunpack.c.l.b16 %v500
      %v533 = vunpack.c.l.b16 %v501
      %v534 = vunpack.c.l.b16 %v502
      %v535 = vunpack.c.l.b16 %v503
      %v536 = vunpack.c.l.b16 %v504
      %v537 = vunpack.c.l.b16 %v505
      %v538 = vunpack.c.l.b16 %v506
      %v539 = vunpack.c.l.b16 %v507
      %v540 = vunpack.c.l.b16 %v508
      %v541 = vunpack.c.l.b16 %v509
      %v542 = vunpack.c.l.b16 %v510
      %v543 = vunpack.c.l.b16 %v511
      %v544 = vpack.c.b16 %v529, %v528
      %v545 = vpack.c.b16 %v531, %v530
      %v546 = vpack.c.b16 %v533, %v532
      %v547 = vpack.c.b16 %v535, %v534
      %v548 = vpack.c.b16 %v537, %v536
      %v549 = vpack.c.b16 %v539, %v538
      %v550 = vpack.c.b16 %v541, %v540
      %v551 = vpack.c.b16 %v543, %v542
      %v553 = vshrl.u32 %v544, 16
      %v555 = vshll.u32 %v544, 16
      %v557 = vrot.slane %v555, 1
      %v558 = vor.u32 %v553, %v557
      %v560 = vshrl.u32 %v545, 16
      %v562 = vshll.u32 %v545, 16
      %v564 = vrot.slane %v562, 1
      %v565 = vor.u32 %v560, %v564
      %v567 = vshrl.u32 %v546, 16
      %v569 = vshll.u32 %v546, 16
      %v571 = vrot.slane %v569, 1
      %v572 = vor.u32 %v567, %v571
      %v574 = vshrl.u32 %v547, 16
      %v576 = vshll.u32 %v547, 16
      %v578 = vrot.slane %v576, 1
      %v579 = vor.u32 %v574, %v578
      %v581 = vshrl.u32 %v548, 16
      %v583 = vshll.u32 %v548, 16
      %v585 = vrot.slane %v583, 1
      %v586 = vor.u32 %v581, %v585
      %v588 = vshrl.u32 %v549, 16
      %v590 = vshll.u32 %v549, 16
      %v592 = vrot.slane %v590, 1
      %v593 = vor.u32 %v588, %v592
      %v595 = vshrl.u32 %v550, 16
      %v597 = vshll.u32 %v550, 16
      %v599 = vrot.slane %v597, 1
      %v600 = vor.u32 %v595, %v599
      %v602 = vshrl.u32 %v551, 16
      %v604 = vshll.u32 %v551, 16
      %v606 = vrot.slane %v604, 1
      %v607 = vor.u32 %v602, %v606
      %608 = vrot.lane.b32.xlu0 %v558, 8
      %v609 = vpop.permute.xlu0 %608
      %610 = vrot.lane.b32.xlu0 %v565, 8
      %v611 = vpop.permute.xlu0 %610
      %612 = vrot.lane.b32.xlu0 %v572, 8
      %v613 = vpop.permute.xlu0 %612
      %614 = vrot.lane.b32.xlu0 %v579, 8
      %v615 = vpop.permute.xlu0 %614
      %616 = vrot.lane.b32.xlu0 %v586, 8
      %v617 = vpop.permute.xlu0 %616
      %618 = vrot.lane.b32.xlu0 %v593, 8
      %v619 = vpop.permute.xlu0 %618
      %620 = vrot.lane.b32.xlu0 %v600, 8
      %v621 = vpop.permute.xlu0 %620
      %622 = vrot.lane.b32.xlu0 %v607, 8
      %v623 = vpop.permute.xlu0 %622
      %v624 = vrot.slane %v544, 1
      %v625 = vrot.slane %v545, 1
      %v626 = vrot.slane %v546, 1
      %v627 = vrot.slane %v547, 1
      %v628 = vrot.slane %v548, 1
      %v629 = vrot.slane %v549, 1
      %v630 = vrot.slane %v550, 1
      %v631 = vrot.slane %v551, 1
      %632 = vrot.lane.b32.xlu0 %v624, 16
      %v633 = vpop.permute.xlu0 %632
      %634 = vrot.lane.b32.xlu0 %v625, 16
      %v635 = vpop.permute.xlu0 %634
      %636 = vrot.lane.b32.xlu0 %v626, 16
      %v637 = vpop.permute.xlu0 %636
      %638 = vrot.lane.b32.xlu0 %v627, 16
      %v639 = vpop.permute.xlu0 %638
      %640 = vrot.lane.b32.xlu0 %v628, 16
      %v641 = vpop.permute.xlu0 %640
      %642 = vrot.lane.b32.xlu0 %v629, 16
      %v643 = vpop.permute.xlu0 %642
      %644 = vrot.lane.b32.xlu0 %v630, 16
      %v645 = vpop.permute.xlu0 %644
      %646 = vrot.lane.b32.xlu0 %v631, 16
      %v647 = vpop.permute.xlu0 %646
      %vm648 = vcmask 64512
      %v651 = vsel %vm648, %v496, %v609
      %v654 = vsel %vm648, %v498, %v611
      %v657 = vsel %vm648, %v500, %v613
      %v660 = vsel %vm648, %v502, %v615
      %v663 = vsel %vm648, %v504, %v617
      %v666 = vsel %vm648, %v506, %v619
      %v669 = vsel %vm648, %v508, %v621
      %v672 = vsel %vm648, %v510, %v623
      %vm673 = vcmask 130048
      %v675 = vsel %vm673, %v651, %v633
      %v677 = vsel %vm673, %v654, %v635
      %v679 = vsel %vm673, %v657, %v637
      %v681 = vsel %vm673, %v660, %v639
      %v683 = vsel %vm673, %v663, %v641
      %v685 = vsel %vm673, %v666, %v643
      %v687 = vsel %vm673, %v669, %v645
      %v689 = vsel %vm673, %v672, %v647
      %v690 = vld [vmem:[%s3] sm:$0xf]
      %v691 = vld [vmem:[%s3 + $0x4] sm:$0xf]
      %v692 = vld [vmem:[%s3 + $0x8] sm:$0xf]
      %v693 = vld [vmem:[%s445] sm:$0xf]
      %v694 = vld [vmem:[%s445 + $0x4] sm:$0x1]
      %v695 = vld [vmem:[%s445 + $0x8] sm:$0xf]
      %v696 = vld [vmem:[%s445 + $0xc] sm:$0x1]
      %v697 = vld [vmem:[%s445 + $0x10] sm:$0xf]
      %v698 = vld [vmem:[%s445 + $0x14] sm:$0x1]
      %v699 = vld [vmem:[%s445 + $0x18] sm:$0xf]
      %v700 = vld [vmem:[%s445 + $0x1c] sm:$0x1]
      %v701 = vld [vmem:[%s445 + $0x20] sm:$0xf]
      %v702 = vld [vmem:[%s445 + $0x24] sm:$0x1]
      %v703 = vld [vmem:[%s445 + $0x28] sm:$0xf]
      %v704 = vld [vmem:[%s445 + $0x2c] sm:$0x1]
      %v705 = vld [vmem:[%s445 + $0x30] sm:$0xf]
      %v706 = vld [vmem:[%s445 + $0x34] sm:$0x1]
      %v707 = vld [vmem:[%s445 + $0x38] sm:$0xf]
      %v708 = vld [vmem:[%s445 + $0x3c] sm:$0x1]
      %v725 = vunpack.c.l.b16 %v693
      %v726 = vunpack.c.l.b16 %v694
      %v727 = vunpack.c.l.b16 %v695
      %v728 = vunpack.c.l.b16 %v696
      %v729 = vunpack.c.l.b16 %v697
      %v730 = vunpack.c.l.b16 %v698
      %v731 = vunpack.c.l.b16 %v699
      %v732 = vunpack.c.l.b16 %v700
      %v733 = vunpack.c.l.b16 %v701
      %v734 = vunpack.c.l.b16 %v702
      %v735 = vunpack.c.l.b16 %v703
      %v736 = vunpack.c.l.b16 %v704
      %v737 = vunpack.c.l.b16 %v705
      %v738 = vunpack.c.l.b16 %v706
      %v739 = vunpack.c.l.b16 %v707
      %v740 = vunpack.c.l.b16 %v708
      %v741 = vpack.c.b16 %v726, %v725
      %v742 = vpack.c.b16 %v728, %v727
      %v743 = vpack.c.b16 %v730, %v729
      %v744 = vpack.c.b16 %v732, %v731
      %v745 = vpack.c.b16 %v734, %v733
      %v746 = vpack.c.b16 %v736, %v735
      %v747 = vpack.c.b16 %v738, %v737
      %v748 = vpack.c.b16 %v740, %v739
      %v750 = vshrl.u32 %v741, 16
      %v752 = vshll.u32 %v741, 16
      %v754 = vrot.slane %v752, 1
      %v755 = vor.u32 %v750, %v754
      %v757 = vshrl.u32 %v742, 16
      %v759 = vshll.u32 %v742, 16
      %v761 = vrot.slane %v759, 1
      %v762 = vor.u32 %v757, %v761
      %v764 = vshrl.u32 %v743, 16
      %v766 = vshll.u32 %v743, 16
      %v768 = vrot.slane %v766, 1
      %v769 = vor.u32 %v764, %v768
      %v771 = vshrl.u32 %v744, 16
      %v773 = vshll.u32 %v744, 16
      %v775 = vrot.slane %v773, 1
      %v776 = vor.u32 %v771, %v775
      %v778 = vshrl.u32 %v745, 16
      %v780 = vshll.u32 %v745, 16
      %v782 = vrot.slane %v780, 1
      %v783 = vor.u32 %v778, %v782
      %v785 = vshrl.u32 %v746, 16
      %v787 = vshll.u32 %v746, 16
      %v789 = vrot.slane %v787, 1
      %v790 = vor.u32 %v785, %v789
      %v792 = vshrl.u32 %v747, 16
      %v794 = vshll.u32 %v747, 16
      %v796 = vrot.slane %v794, 1
      %v797 = vor.u32 %v792, %v796
      %v799 = vshrl.u32 %v748, 16
      %v801 = vshll.u32 %v748, 16
      %v803 = vrot.slane %v801, 1
      %v804 = vor.u32 %v799, %v803
      %805 = vrot.lane.b32.xlu0 %v755, 8
      %v806 = vpop.permute.xlu0 %805
      %807 = vrot.lane.b32.xlu0 %v762, 8
      %v808 = vpop.permute.xlu0 %807
      %809 = vrot.lane.b32.xlu0 %v769, 8
      %v810 = vpop.permute.xlu0 %809
      %811 = vrot.lane.b32.xlu0 %v776, 8
      %v812 = vpop.permute.xlu0 %811
      %813 = vrot.lane.b32.xlu0 %v783, 8
      %v814 = vpop.permute.xlu0 %813
      %815 = vrot.lane.b32.xlu0 %v790, 8
      %v816 = vpop.permute.xlu0 %815
      %817 = vrot.lane.b32.xlu0 %v797, 8
      %v818 = vpop.permute.xlu0 %817
      %819 = vrot.lane.b32.xlu0 %v804, 8
      %v820 = vpop.permute.xlu0 %819
      %v821 = vrot.slane %v741, 1
      %v822 = vrot.slane %v742, 1
      %v823 = vrot.slane %v743, 1
      %v824 = vrot.slane %v744, 1
      %v825 = vrot.slane %v745, 1
      %v826 = vrot.slane %v746, 1
      %v827 = vrot.slane %v747, 1
      %v828 = vrot.slane %v748, 1
      %829 = vrot.lane.b32.xlu0 %v821, 16
      %v830 = vpop.permute.xlu0 %829
      %831 = vrot.lane.b32.xlu0 %v822, 16
      %v832 = vpop.permute.xlu0 %831
      %833 = vrot.lane.b32.xlu0 %v823, 16
      %v834 = vpop.permute.xlu0 %833
      %835 = vrot.lane.b32.xlu0 %v824, 16
      %v836 = vpop.permute.xlu0 %835
      %837 = vrot.lane.b32.xlu0 %v825, 16
      %v838 = vpop.permute.xlu0 %837
      %839 = vrot.lane.b32.xlu0 %v826, 16
      %v840 = vpop.permute.xlu0 %839
      %841 = vrot.lane.b32.xlu0 %v827, 16
      %v842 = vpop.permute.xlu0 %841
      %843 = vrot.lane.b32.xlu0 %v828, 16
      %v844 = vpop.permute.xlu0 %843
      %v847 = vsel %vm648, %v693, %v806
      %v850 = vsel %vm648, %v695, %v808
      %v853 = vsel %vm648, %v697, %v810
      %v856 = vsel %vm648, %v699, %v812
      %v859 = vsel %vm648, %v701, %v814
      %v862 = vsel %vm648, %v703, %v816
      %v865 = vsel %vm648, %v705, %v818
      %v868 = vsel %vm648, %v707, %v820
      %v870 = vsel %vm673, %v847, %v830
      %v872 = vsel %vm673, %v850, %v832
      %v874 = vsel %vm673, %v853, %v834
      %v876 = vsel %vm673, %v856, %v836
      %v878 = vsel %vm673, %v859, %v838
      %v880 = vsel %vm673, %v862, %v840
      %v882 = vsel %vm673, %v865, %v842
      %v884 = vsel %vm673, %v868, %v844
      %s885 = scalar_lea.vmem %s3, 12
      %v886 = vld [vmem:[%s885] sm:$0xf]
      %v887 = vld [vmem:[%s885 + $0x4] sm:$0xf]
      %v888 = vld [vmem:[%s885 + $0x8] sm:$0xf]
      %v897 = vunpack.c.l.b16 %v870
      %v898 = vunpack.c.l.b16 %v872
      %v899 = vunpack.c.l.b16 %v874
      %v900 = vunpack.c.l.b16 %v876
      %v901 = vunpack.c.l.b16 %v878
      %v902 = vunpack.c.l.b16 %v880
      %v903 = vunpack.c.l.b16 %v882
      %v904 = vunpack.c.l.b16 %v884
      %v905 = vpack.c.b16 %v898, %v897
      %v906 = vpack.c.b16 %v900, %v899
      %v907 = vpack.c.b16 %v902, %v901
      %v908 = vpack.c.b16 %v904, %v903
      %v912 = vunpack.c.l.b16 %v886
      %v913 = vunpack.c.l.b16 %v887
      %v914 = vunpack.c.l.b16 %v888
      %v915 = vpack.c.b16 %v913, %v912
      %v916 = vpack.c.b16 %v914, %v914
      %vm918 = vcmask 195584
      %v920 = vsel %vm918, %v905, 0
      %v923 = vsel %vm918, %v906, 0
      %v926 = vsel %vm918, %v907, 0
      %v929 = vsel %vm918, %v908, 0
      %vm931 = vcmask 1043456
      %v933 = vsel %vm931, %v916, 0
      %935 = vmatpush.bf16.msra.mxu0 0
      %936 = vmatpush.bf16.msra.mxu0 0
      %937 = vmatpush.bf16.msra.mxu0 0
      %938 = vmatpush.bf16.msra.mxu0 0
      %939 = vmatpush.bf16.msra.mxu0 0
      %940 = vmatpush.bf16.msra.mxu0 0
      %941 = vmatpush.bf16.msra.mxu0 %v933
      %942 = vmatpush.bf16.msra.mxu0 %v915
      %943 = vmatmul.bf16.gmra.mxu0 %v920
      %v944 = vpop.f32.mrf.mxu0
      %v945 = vadd.f32 0.0, %v944
      %v946 = vpop.f32.mrf.mxu0
      %v947 = vadd.f32 0.0, %v946
      %948 = vmatmul.bf16.gmra.mxu0 %v923
      %v949 = vpop.f32.mrf.mxu0
      %v950 = vadd.f32 0.0, %v949
      %v951 = vpop.f32.mrf.mxu0
      %v952 = vadd.f32 0.0, %v951
      %953 = vmatmul.bf16.gmra.mxu0 %v926
      %v954 = vpop.f32.mrf.mxu0
      %v955 = vadd.f32 0.0, %v954
      %v956 = vpop.f32.mrf.mxu0
      %v957 = vadd.f32 0.0, %v956
      %958 = vmatmul.bf16.gmra.mxu0 %v929
      %v959 = vpop.f32.mrf.mxu0
      %v960 = vadd.f32 0.0, %v959
      %v961 = vpop.f32.mrf.mxu0
      %v962 = vadd.f32 0.0, %v961
      %963 = vdwg.mxu0
      %v972 = vunpack.c.l.b16 %v675
      %v973 = vunpack.c.l.b16 %v677
      %v974 = vunpack.c.l.b16 %v679
      %v975 = vunpack.c.l.b16 %v681
      %v976 = vunpack.c.l.b16 %v683
      %v977 = vunpack.c.l.b16 %v685
      %v978 = vunpack.c.l.b16 %v687
      %v979 = vunpack.c.l.b16 %v689
      %v980 = vpack.c.b16 %v973, %v972
      %v981 = vpack.c.b16 %v975, %v974
      %v982 = vpack.c.b16 %v977, %v976
      %v983 = vpack.c.b16 %v979, %v978
      %v987 = vunpack.c.l.b16 %v690
      %v988 = vunpack.c.l.b16 %v691
      %v989 = vunpack.c.l.b16 %v692
      %v990 = vpack.c.b16 %v988, %v987
      %v991 = vpack.c.b16 %v989, %v989
      %v994 = vsel %vm918, %v980, 0
      %v997 = vsel %vm918, %v981, 0
      %v1000 = vsel %vm918, %v982, 0
      %v1003 = vsel %vm918, %v983, 0
      %v1006 = vsel %vm931, %v991, 0
      %1008 = vmatpush.bf16.msra.mxu0 0
      %1009 = vmatpush.bf16.msra.mxu0 0
      %1010 = vmatpush.bf16.msra.mxu0 0
      %1011 = vmatpush.bf16.msra.mxu0 0
      %1012 = vmatpush.bf16.msra.mxu0 0
      %1013 = vmatpush.bf16.msra.mxu0 0
      %1014 = vmatpush.bf16.msra.mxu0 %v1006
      %1015 = vmatpush.bf16.msra.mxu0 %v990
      %1016 = vmatmul.bf16.gmra.mxu0 %v994
      %v1017 = vpop.f32.mrf.mxu0
      %v1018 = vadd.f32 %v945, %v1017
      %v1019 = vpop.f32.mrf.mxu0
      %v1020 = vadd.f32 %v947, %v1019
      %1021 = vmatmul.bf16.gmra.mxu0 %v997
      %v1022 = vpop.f32.mrf.mxu0
      %v1023 = vadd.f32 %v950, %v1022
      %v1024 = vpop.f32.mrf.mxu0
      %v1025 = vadd.f32 %v952, %v1024
      %1026 = vmatmul.bf16.gmra.mxu0 %v1000
      %v1027 = vpop.f32.mrf.mxu0
      %v1028 = vadd.f32 %v955, %v1027
      %v1029 = vpop.f32.mrf.mxu0
      %v1030 = vadd.f32 %v957, %v1029
      %1031 = vmatmul.bf16.gmra.mxu0 %v1003
      %v1032 = vpop.f32.mrf.mxu0
      %v1033 = vadd.f32 %v960, %v1032
      %v1034 = vpop.f32.mrf.mxu0
      %v1035 = vadd.f32 %v962, %v1034
      %1036 = vdwg.mxu0
      %s1037 = scalar_lea.vmem [#allocation2], 16
      %v1038 = vld [vmem:[%s1037] sm:$0xf]
      %v1039 = vld [vmem:[%s1037 + $0x4] sm:$0x1]
      %v1040 = vld [vmem:[%s1037 + $0x8] sm:$0xf]
      %v1041 = vld [vmem:[%s1037 + $0xc] sm:$0x1]
      %v1042 = vld [vmem:[%s1037 + $0x10] sm:$0xf]
      %v1043 = vld [vmem:[%s1037 + $0x14] sm:$0x1]
      %v1044 = vld [vmem:[%s1037 + $0x18] sm:$0xf]
      %v1045 = vld [vmem:[%s1037 + $0x1c] sm:$0x1]
      %v1046 = vld [vmem:[%s1037 + $0x20] sm:$0xf]
      %v1047 = vld [vmem:[%s1037 + $0x24] sm:$0x1]
      %v1048 = vld [vmem:[%s1037 + $0x28] sm:$0xf]
      %v1049 = vld [vmem:[%s1037 + $0x2c] sm:$0x1]
      %v1050 = vld [vmem:[%s1037 + $0x30] sm:$0xf]
      %v1051 = vld [vmem:[%s1037 + $0x34] sm:$0x1]
      %v1052 = vld [vmem:[%s1037 + $0x38] sm:$0xf]
      %v1053 = vld [vmem:[%s1037 + $0x3c] sm:$0x1]
      %v1070 = vunpack.c.l.b16 %v1038
      %v1071 = vunpack.c.l.b16 %v1039
      %v1072 = vunpack.c.l.b16 %v1040
      %v1073 = vunpack.c.l.b16 %v1041
      %v1074 = vunpack.c.l.b16 %v1042
      %v1075 = vunpack.c.l.b16 %v1043
      %v1076 = vunpack.c.l.b16 %v1044
      %v1077 = vunpack.c.l.b16 %v1045
      %v1078 = vunpack.c.l.b16 %v1046
      %v1079 = vunpack.c.l.b16 %v1047
      %v1080 = vunpack.c.l.b16 %v1048
      %v1081 = vunpack.c.l.b16 %v1049
      %v1082 = vunpack.c.l.b16 %v1050
      %v1083 = vunpack.c.l.b16 %v1051
      %v1084 = vunpack.c.l.b16 %v1052
      %v1085 = vunpack.c.l.b16 %v1053
      %v1086 = vpack.c.b16 %v1071, %v1070
      %v1087 = vpack.c.b16 %v1073, %v1072
      %v1088 = vpack.c.b16 %v1075, %v1074
      %v1089 = vpack.c.b16 %v1077, %v1076
      %v1090 = vpack.c.b16 %v1079, %v1078
      %v1091 = vpack.c.b16 %v1081, %v1080
      %v1092 = vpack.c.b16 %v1083, %v1082
      %v1093 = vpack.c.b16 %v1085, %v1084
      %v1095 = vshrl.u32 %v1086, 16
      %v1097 = vshll.u32 %v1086, 16
      %v1099 = vrot.slane %v1097, 1
      %v1100 = vor.u32 %v1095, %v1099
      %v1102 = vshrl.u32 %v1087, 16
      %v1104 = vshll.u32 %v1087, 16
      %v1106 = vrot.slane %v1104, 1
      %v1107 = vor.u32 %v1102, %v1106
      %v1109 = vshrl.u32 %v1088, 16
      %v1111 = vshll.u32 %v1088, 16
      %v1113 = vrot.slane %v1111, 1
      %v1114 = vor.u32 %v1109, %v1113
      %v1116 = vshrl.u32 %v1089, 16
      %v1118 = vshll.u32 %v1089, 16
      %v1120 = vrot.slane %v1118, 1
      %v1121 = vor.u32 %v1116, %v1120
      %v1123 = vshrl.u32 %v1090, 16
      %v1125 = vshll.u32 %v1090, 16
      %v1127 = vrot.slane %v1125, 1
      %v1128 = vor.u32 %v1123, %v1127
      %v1130 = vshrl.u32 %v1091, 16
      %v1132 = vshll.u32 %v1091, 16
      %v1134 = vrot.slane %v1132, 1
      %v1135 = vor.u32 %v1130, %v1134
      %v1137 = vshrl.u32 %v1092, 16
      %v1139 = vshll.u32 %v1092, 16
      %v1141 = vrot.slane %v1139, 1
      %v1142 = vor.u32 %v1137, %v1141
      %v1144 = vshrl.u32 %v1093, 16
      %v1146 = vshll.u32 %v1093, 16
      %v1148 = vrot.slane %v1146, 1
      %v1149 = vor.u32 %v1144, %v1148
      %1150 = vrot.lane.b32.xlu0 %v1100, 8
      %v1151 = vpop.permute.xlu0 %1150
      %1152 = vrot.lane.b32.xlu0 %v1107, 8
      %v1153 = vpop.permute.xlu0 %1152
      %1154 = vrot.lane.b32.xlu0 %v1114, 8
      %v1155 = vpop.permute.xlu0 %1154
      %1156 = vrot.lane.b32.xlu0 %v1121, 8
      %v1157 = vpop.permute.xlu0 %1156
      %1158 = vrot.lane.b32.xlu0 %v1128, 8
      %v1159 = vpop.permute.xlu0 %1158
      %1160 = vrot.lane.b32.xlu0 %v1135, 8
      %v1161 = vpop.permute.xlu0 %1160
      %1162 = vrot.lane.b32.xlu0 %v1142, 8
      %v1163 = vpop.permute.xlu0 %1162
      %1164 = vrot.lane.b32.xlu0 %v1149, 8
      %v1165 = vpop.permute.xlu0 %1164
      %v1166 = vrot.slane %v1086, 1
      %v1167 = vrot.slane %v1087, 1
      %v1168 = vrot.slane %v1088, 1
      %v1169 = vrot.slane %v1089, 1
      %v1170 = vrot.slane %v1090, 1
      %v1171 = vrot.slane %v1091, 1
      %v1172 = vrot.slane %v1092, 1
      %v1173 = vrot.slane %v1093, 1
      %1174 = vrot.lane.b32.xlu0 %v1166, 16
      %v1175 = vpop.permute.xlu0 %1174
      %1176 = vrot.lane.b32.xlu0 %v1167, 16
      %v1177 = vpop.permute.xlu0 %1176
      %1178 = vrot.lane.b32.xlu0 %v1168, 16
      %v1179 = vpop.permute.xlu0 %1178
      %1180 = vrot.lane.b32.xlu0 %v1169, 16
      %v1181 = vpop.permute.xlu0 %1180
      %1182 = vrot.lane.b32.xlu0 %v1170, 16
      %v1183 = vpop.permute.xlu0 %1182
      %1184 = vrot.lane.b32.xlu0 %v1171, 16
      %v1185 = vpop.permute.xlu0 %1184
      %1186 = vrot.lane.b32.xlu0 %v1172, 16
      %v1187 = vpop.permute.xlu0 %1186
      %1188 = vrot.lane.b32.xlu0 %v1173, 16
      %v1189 = vpop.permute.xlu0 %1188
      %v1192 = vsel %vm648, %v1038, %v1151
      %v1195 = vsel %vm648, %v1040, %v1153
      %v1198 = vsel %vm648, %v1042, %v1155
      %v1201 = vsel %vm648, %v1044, %v1157
      %v1204 = vsel %vm648, %v1046, %v1159
      %v1207 = vsel %vm648, %v1048, %v1161
      %v1210 = vsel %vm648, %v1050, %v1163
      %v1213 = vsel %vm648, %v1052, %v1165
      %v1215 = vsel %vm673, %v1192, %v1175
      %v1217 = vsel %vm673, %v1195, %v1177
      %v1219 = vsel %vm673, %v1198, %v1179
      %v1221 = vsel %vm673, %v1201, %v1181
      %v1223 = vsel %vm673, %v1204, %v1183
      %v1225 = vsel %vm673, %v1207, %v1185
      %v1227 = vsel %vm673, %v1210, %v1187
      %v1229 = vsel %vm673, %v1213, %v1189
      %s1230 = scalar_lea.vmem %s3, 24
      %v1231 = vld [vmem:[%s1230] sm:$0xf]
      %v1232 = vld [vmem:[%s1230 + $0x4] sm:$0xf]
      %v1233 = vld [vmem:[%s1230 + $0x8] sm:$0xf]
      %v1242 = vunpack.c.l.b16 %v1215
      %v1243 = vunpack.c.l.b16 %v1217
      %v1244 = vunpack.c.l.b16 %v1219
      %v1245 = vunpack.c.l.b16 %v1221
      %v1246 = vunpack.c.l.b16 %v1223
      %v1247 = vunpack.c.l.b16 %v1225
      %v1248 = vunpack.c.l.b16 %v1227
      %v1249 = vunpack.c.l.b16 %v1229
      %v1250 = vpack.c.b16 %v1243, %v1242
      %v1251 = vpack.c.b16 %v1245, %v1244
      %v1252 = vpack.c.b16 %v1247, %v1246
      %v1253 = vpack.c.b16 %v1249, %v1248
      %v1257 = vunpack.c.l.b16 %v1231
      %v1258 = vunpack.c.l.b16 %v1232
      %v1259 = vunpack.c.l.b16 %v1233
      %v1260 = vpack.c.b16 %v1258, %v1257
      %v1261 = vpack.c.b16 %v1259, %v1259
      %v1264 = vsel %vm918, %v1250, 0
      %v1267 = vsel %vm918, %v1251, 0
      %v1270 = vsel %vm918, %v1252, 0
      %v1273 = vsel %vm918, %v1253, 0
      %v1276 = vsel %vm931, %v1261, 0
      %1278 = vmatpush.bf16.msra.mxu0 0
      %1279 = vmatpush.bf16.msra.mxu0 0
      %1280 = vmatpush.bf16.msra.mxu0 0
      %1281 = vmatpush.bf16.msra.mxu0 0
      %1282 = vmatpush.bf16.msra.mxu0 0
      %1283 = vmatpush.bf16.msra.mxu0 0
      %1284 = vmatpush.bf16.msra.mxu0 %v1276
      %1285 = vmatpush.bf16.msra.mxu0 %v1260
      %1286 = vmatmul.bf16.gmra.mxu0 %v1264
      %v1287 = vpop.f32.mrf.mxu0
      %v1288 = vadd.f32 0.0, %v1287
      %v1289 = vpop.f32.mrf.mxu0
      %v1290 = vadd.f32 0.0, %v1289
      %1291 = vmatmul.bf16.gmra.mxu0 %v1267
      %v1292 = vpop.f32.mrf.mxu0
      %v1293 = vadd.f32 0.0, %v1292
      %v1294 = vpop.f32.mrf.mxu0
      %v1295 = vadd.f32 0.0, %v1294
      %1296 = vmatmul.bf16.gmra.mxu0 %v1270
      %v1297 = vpop.f32.mrf.mxu0
      %v1298 = vadd.f32 0.0, %v1297
      %v1299 = vpop.f32.mrf.mxu0
      %v1300 = vadd.f32 0.0, %v1299
      %1301 = vmatmul.bf16.gmra.mxu0 %v1273
      %v1302 = vpop.f32.mrf.mxu0
      %v1303 = vadd.f32 0.0, %v1302
      %v1304 = vpop.f32.mrf.mxu0
      %v1305 = vadd.f32 0.0, %v1304
      %1306 = vdwg.mxu0
      %v1307 = vadd.f32 %v1018, %v1288
      %v1308 = vadd.f32 %v1020, %v1290
      %v1309 = vadd.f32 %v1023, %v1293
      %v1310 = vadd.f32 %v1025, %v1295
      %v1311 = vadd.f32 %v1028, %v1298
      %v1312 = vadd.f32 %v1030, %v1300
      %v1313 = vadd.f32 %v1033, %v1303
      %v1314 = vadd.f32 %v1035, %v1305
      %v1315 = vpack.c.bf16 %v1307, %v1307
      %v1316 = vpack.c.bf16 %v1308, %v1308
      %v1317 = vpack.c.bf16 %v1309, %v1309
      %v1318 = vpack.c.bf16 %v1310, %v1310
      %v1319 = vpack.c.bf16 %v1311, %v1311
      %v1320 = vpack.c.bf16 %v1312, %v1312
      %v1321 = vpack.c.bf16 %v1313, %v1313
      %v1322 = vpack.c.bf16 %v1314, %v1314
      %1323 = vst.msk [vmem:[%s231] sm:$0xf] %vm285, %v1315
      %1324 = vst.msk [vmem:[%s231 + $0x4] sm:$0xf] %vm285, %v1316
      %1325 = vst.msk [vmem:[%s231 + $0x8] sm:$0xf] %vm285, %v1317
      %1326 = vst.msk [vmem:[%s231 + $0xc] sm:$0xf] %vm285, %v1318
      %1327 = vst.msk [vmem:[%s231 + $0x10] sm:$0xf] %vm285, %v1319
      %1328 = vst.msk [vmem:[%s231 + $0x14] sm:$0xf] %vm285, %v1320
      %1329 = vst.msk [vmem:[%s231 + $0x18] sm:$0xf] %vm285, %v1321
      %1330 = vst.msk [vmem:[%s231 + $0x1c] sm:$0xf] %vm285, %v1322
      %v1331 = vsel %vm648, %v1307, 0.0
      %v1332 = vsel %vm648, %v1308, 0.0
      %v1333 = vadd.f32 %v1331, %v1332
      %v1334 = vsel %vm648, %v1309, 0.0
      %v1335 = vadd.f32 %v1333, %v1334
      %v1336 = vsel %vm648, %v1310, 0.0
      %v1337 = vadd.f32 %v1335, %v1336
      %v1338 = vsel %vm648, %v1311, 0.0
      %v1339 = vadd.f32 %v1337, %v1338
      %v1340 = vsel %vm648, %v1312, 0.0
      %v1341 = vadd.f32 %v1339, %v1340
      %v1342 = vsel %vm648, %v1313, 0.0
      %v1343 = vadd.f32 %v1341, %v1342
      %v1344 = vsel %vm648, %v1314, 0.0
      %v1345 = vadd.f32 %v1343, %v1344
      %v1346 = vrot.slane %v1345, 4
      %v1347 = vadd.f32 %v1345, %v1346
      %v1348 = vrot.slane %v1347, 2
      %v1349 = vadd.f32 %v1347, %v1348
      %v1350 = vrot.slane %v1349, 1
      %v1351 = vadd.f32 %v1349, %v1350
      %v1352 = vmul.f32 %v1307, %v1307
      %v1353 = vmul.f32 %v1308, %v1308
      %v1354 = vmul.f32 %v1309, %v1309
      %v1355 = vmul.f32 %v1310, %v1310
      %v1356 = vmul.f32 %v1311, %v1311
      %v1357 = vmul.f32 %v1312, %v1312
      %v1358 = vmul.f32 %v1313, %v1313
      %v1359 = vmul.f32 %v1314, %v1314
      %v1360 = vsel %vm648, %v1352, 0.0
      %v1361 = vsel %vm648, %v1353, 0.0
      %v1362 = vadd.f32 %v1360, %v1361
      %v1363 = vsel %vm648, %v1354, 0.0
      %v1364 = vadd.f32 %v1362, %v1363
      %v1365 = vsel %vm648, %v1355, 0.0
      %v1366 = vadd.f32 %v1364, %v1365
      %v1367 = vsel %vm648, %v1356, 0.0
      %v1368 = vadd.f32 %v1366, %v1367
      %v1369 = vsel %vm648, %v1357, 0.0
      %v1370 = vadd.f32 %v1368, %v1369
      %v1371 = vsel %vm648, %v1358, 0.0
      %v1372 = vadd.f32 %v1370, %v1371
      %v1373 = vsel %vm648, %v1359, 0.0
      %v1374 = vadd.f32 %v1372, %v1373
      %v1375 = vrot.slane %v1374, 4
      %v1376 = vadd.f32 %v1374, %v1375
      %v1377 = vrot.slane %v1376, 2
      %v1378 = vadd.f32 %v1376, %v1377
      %v1379 = vrot.slane %v1378, 1
      %v1380 = vadd.f32 %v1378, %v1379
      %vm1381 = vcmask 1040384
      %v1382 = vsel %vm1381, %v1351, %v1380
      %vm1383 = vcmask 58368
      %1384 = vst.msk [vmem:[%s235] sm:$0x3] %vm1383, %v1382
      %p1385 = scmp.lt.s32.totalorder %s17, 1
      %s1386 = scalar_select %p1385, %s17, 1
      %s1387 = smul.addr %s1386, 8
      %s1388 = smul.addr %s1387, 4
      %s1389 = scalar_lea.vmem %s4, %s1388
      %p1390 = scmp.lt.s32.totalorder %s17, 1
      %s1391 = scalar_select %p1390, %s17, 1
      %s1392 = smul.addr %s1391, 2
      %s1393 = scalar_lea.vmem %s5, %s1392
      // Predicated region
      $region37: #{down_forward.4} parent=35 // pred_check
        %p1394 = pneg %p124
      $region38: #{down_forward.4} parent=35 // pred_check_branch
        %1396 = sbr.rel (%p1394) target = $region40
      $region39: #{down_forward.4} parent=35 // pred_region
        _
      $region40: #{down_forward.4} parent=35 // pred_fallthru
        _
      // Predicated region
      $region41: #{down_forward.4} parent=35 // pred_check
        %p1397 = pneg %p150
      $region42: #{down_forward.4} parent=35 // pred_check_branch
        %1399 = sbr.rel (%p1397) target = $region44
      $region43: #{down_forward.4} parent=35 // pred_region
        _
      $region44: #{down_forward.4} parent=35 // pred_fallthru
        _
    $region36: #{down_forward.4} parent=5 // pred_fallthru
      _
    %p1400 = scmp.le.s32.totalorder 2, %s12
    // Predicated region
    $region45: #{down_forward.4} parent=5 // pred_check
      %p1401 = pneg %p1400
    $region46: #{down_forward.4} parent=5 // pred_check_branch
      %1403 = sbr.rel (%p1401) target = $region48
    $region47: #{down_forward.4} parent=5 // pred_region
      %s1404 = ssub.s32 %s12, 2
      // Predicated region
      $region49: #{down_forward.4} parent=47 // pred_check
        %p1405 = pneg %p130
      $region50: #{down_forward.4} parent=47 // pred_check_branch
        %1407 = sbr.rel (%p1405) target = $region52
      $region51: #{down_forward.4} parent=47 // pred_region
        %p1408 = scmp.lt.s32.totalorder %s18, 1
        %s1409 = scalar_select %p1408, %s18, 1
        %s1410 = smul.addr %s1409, 8
        %s1411 = smul.addr %s1410, 4
        %s1412 = scalar_lea.vmem %s4, %s1411
      $region52: #{down_forward.4} parent=47 // pred_fallthru
        _
      // Predicated region
      $region53: #{down_forward.4} parent=47 // pred_check
        %p1413 = pneg %p156
      $region54: #{down_forward.4} parent=47 // pred_check_branch
        %1415 = sbr.rel (%p1413) target = $region56
      $region55: #{down_forward.4} parent=47 // pred_region
        %p1416 = scmp.lt.s32.totalorder %s18, 1
        %s1417 = scalar_select %p1416, %s18, 1
        %s1418 = smul.addr %s1417, 2
        %s1419 = scalar_lea.vmem %s5, %s1418
      $region56: #{down_forward.4} parent=47 // pred_fallthru
        _
    $region48: #{down_forward.4} parent=5 // pred_fallthru
      _
  $region6: #{down_forward.4} parent=0 // loop_footer
    %s16 = sadd.s32 1, %s12
  $region7: #{down_forward.4} parent=0 // loop_footer_branch
    %11 = sbr.rel target = $region3
  $region8: #{down_forward.4} parent=0 // loop_exit
    _

// kernel: down_forward.3
$region0: #{down_forward.3}
  #allocation0 [shape = 'u32[]', space=smem, size = 0x4, offset = 0x4, fixed_abs, tag = 'smem constant byte address 0x4 - core index']
  #allocation1 [shape = 'u32[72,128]{1,0:T(1,128)}', space=vmem, size = 0x9000, scoped, tag = 'internal scratch']
  #allocation2 [shape = 'bf16[10,10,4]{2,1,0:T(8,128)(2,1)}', space=vmem, size = 0xa000, scoped, tag = 'scratch operand']
  %s0 = inlined_call_operand.vmem [shape: bf16[2,16,8,8], index: 0, kind: input, shape index: {}]
  %s1 = inlined_call_operand.vmem [shape: bf16[3,3,4,8], index: 1, kind: input, shape index: {}]
  %s2 = inlined_call_operand.vmem [shape: bf16[2,64,8], index: 2, kind: output, shape index: {0}]
  %s3 = inlined_call_operand.vmem [shape: f32[2,2,8], index: 3, kind: output, shape index: {1}]
  %4 = xla_tuple %s2, %s3
  %s5 = sld [smem:[#allocation0]]
  $region49: #{down_forward.3} parent=0
    _
  %s7 = ssub.s32 1, %s5
  %s8 = scalar_select 0, %s7, %s5
  loop: start=0, step=1, limit=4
  $region2: #{down_forward.3} parent=0 // loop_pre_header
    _
  $region3: #{down_forward.3} parent=0 // loop_header
    %s10 = sphi 0, %s14
    %p11 = scmp.ge.s32.totalorder %s10, 4
    %s20 = sphi 0, %s22
    %s23 = sphi 0, %s20
    %s24 = sphi 0, %s23
    %s40 = sphi 0, %s24
    %s44 = sphi 0, %s44
    %s46 = sphi 0, %s44
    %s47 = sphi 0, %s46
    %s61 = sphi 0, %s47
    %s67 = sphi 0, %s69
    %s70 = sphi 0, %s67
    %s71 = sphi 0, %s70
    %s87 = sphi 0, %s71
    %s93 = sphi 0, %s95
    %s96 = sphi 0, %s93
    %s97 = sphi 0, %s96
    %s113 = sphi 0, %s97
  $region4: #{down_forward.3} parent=0 // loop_header_branch
    %13 = sbr.rel (%p11) target = $region8
  $region5: #{down_forward.3} parent=0 // loop_body
    %s15 = ssub.s32 %s10, 1
    %s16 = ssub.s32 %s10, 2
    %s17 = sadd.s32 %s10, 1
    %s18 = ssub.s32 %s10, %s17
    %p19 = scmp.eq.s32.totalorder %s18, 0
    %s21 = sadd.s32 %s20, 1
    %s22 = scalar_select %p19, %s20, %s21
    %p25 = pneg %p19
    %p26 = scmp.eq.s32.totalorder %s10, 1
    %p27 = por %p25, %p26
    %p28 = scmp.ne.s32.totalorder %s20, %s23
    %p29 = scmp.eq.s32.totalorder %s10, 0
    %p30 = por %p28, %p29
    %p31 = scmp.ne.s32.totalorder %s20, %s23
    %p32 = scmp.eq.s32.totalorder %s15, 1
    %p33 = por %p31, %p32
    %p34 = scmp.ne.s32.totalorder %s23, %s24
    %p35 = scmp.eq.s32.totalorder %s15, 0
    %p36 = por %p34, %p35
    %p37 = scmp.ne.s32.totalorder %s23, %s24
    %p38 = scmp.eq.s32.totalorder %s16, 1
    %p39 = por %p37, %p38
    %p41 = scmp.ne.s32.totalorder %s24, %s40
    %p42 = scmp.eq.s32.totalorder %s16, 0
    %p43 = por %p41, %p42
    %s45 = sadd.s32 %s44, 1
    %p48 = scmp.eq.s32.totalorder %s10, 1
    %p49 = scmp.ne.s32.totalorder %s44, %s46
    %p50 = scmp.eq.s32.totalorder %s10, 0
    %p51 = por %p49, %p50
    %p52 = scmp.ne.s32.totalorder %s44, %s46
    %p53 = scmp.eq.s32.totalorder %s15, 1
    %p54 = por %p52, %p53
    %p55 = scmp.ne.s32.totalorder %s46, %s47
    %p56 = scmp.eq.s32.totalorder %s15, 0
    %p57 = por %p55, %p56
    %p58 = scmp.ne.s32.totalorder %s46, %s47
    %p59 = scmp.eq.s32.totalorder %s16, 1
    %p60 = por %p58, %p59
    %p62 = scmp.ne.s32.totalorder %s47, %s61
    %p63 = scmp.eq.s32.totalorder %s16, 0
    %p64 = por %p62, %p63
    %s65 = ssub.s32 %s10, %s17
    %p66 = scmp.eq.s32.totalorder %s65, 0
    %s68 = sadd.s32 %s67, 1
    %s69 = scalar_select %p66, %s67, %s68
    %p72 = pneg %p66
    %p73 = scmp.eq.s32.totalorder %s10, 1
    %p74 = por %p72, %p73
    %p75 = scmp.ne.s32.totalorder %s67, %s70
    %p76 = scmp.eq.s32.totalorder %s10, 0
    %p77 = por %p75, %p76
    %p78 = scmp.ne.s32.totalorder %s67, %s70
    %p79 = scmp.eq.s32.totalorder %s15, 1
    %p80 = por %p78, %p79
    %p81 = scmp.ne.s32.totalorder %s70, %s71
    %p82 = scmp.eq.s32.totalorder %s15, 0
    %p83 = por %p81, %p82
    %p84 = scmp.ne.s32.totalorder %s70, %s71
    %p85 = scmp.eq.s32.totalorder %s16, 1
    %p86 = por %p84, %p85
    %p88 = scmp.ne.s32.totalorder %s71, %s87
    %p89 = scmp.eq.s32.totalorder %s16, 0
    %p90 = por %p88, %p89
    %s91 = ssub.s32 %s10, %s17
    %p92 = scmp.eq.s32.totalorder %s91, 0
    %s94 = sadd.s32 %s93, 1
    %s95 = scalar_select %p92, %s93, %s94
    %p98 = pneg %p92
    %p99 = scmp.eq.s32.totalorder %s10, 1
    %p100 = por %p98, %p99
    %p101 = scmp.ne.s32.totalorder %s93, %s96
    %p102 = scmp.eq.s32.totalorder %s10, 0
    %p103 = por %p101, %p102
    %p104 = scmp.ne.s32.totalorder %s93, %s96
    %p105 = scmp.eq.s32.totalorder %s15, 1
    %p106 = por %p104, %p105
    %p107 = scmp.ne.s32.totalorder %s96, %s97
    %p108 = scmp.eq.s32.totalorder %s15, 0
    %p109 = por %p107, %p108
    %p110 = scmp.ne.s32.totalorder %s96, %s97
    %p111 = scmp.eq.s32.totalorder %s16, 1
    %p112 = por %p110, %p111
    %p114 = scmp.ne.s32.totalorder %s97, %s113
    %p115 = scmp.eq.s32.totalorder %s16, 0
    %p116 = por %p114, %p115
    %p117 = scmp.le.s32.totalorder 1, %s10
    %p118 = scmp.lt.s32.totalorder %s10, 3
    %p119 = pnand %p117, %p118
    %p120 = pneg %p119
    // Predicated region
    $region9: #{down_forward.3} parent=5 // pred_check
      _
    $region10: #{down_forward.3} parent=5 // pred_check_branch
      %122 = sbr.rel (%p119) target = $region12
    $region11: #{down_forward.3} parent=5 // pred_region
      %s123 = ssub.s32 %s10, 1
      // Predicated region
      $region13: #{down_forward.3} parent=11 // pred_check
        %p124 = pneg %p57
      $region14: #{down_forward.3} parent=11 // pred_check_branch
        %126 = sbr.rel (%p124) target = $region16
      $region15: #{down_forward.3} parent=11 // pred_region
        _
      $region16: #{down_forward.3} parent=11 // pred_fallthru
        _
    $region12: #{down_forward.3} parent=5 // pred_fallthru
      _
    %p127 = scmp.lt.s32.totalorder %s10, 2
    // Predicated region
    $region17: #{down_forward.3} parent=5 // pred_check
      %p128 = pneg %p127
    $region18: #{down_forward.3} parent=5 // pred_check_branch
      %130 = sbr.rel (%p128) target = $region20
    $region19: #{down_forward.3} parent=5 // pred_region
      // Predicated region
      $region21: #{down_forward.3} parent=19 // pred_check
        %p131 = pneg %p30
      $region22: #{down_forward.3} parent=19 // pred_check_branch
        %133 = sbr.rel (%p131) target = $region24
      $region23: #{down_forward.3} parent=19 // pred_region
        %p134 = scmp.lt.s32.totalorder %s10, 1
        %s135 = scalar_select %p134, %s10, 1
        %s136 = smul.addr %s135, 16
        %s137 = smul.addr %s136, 4
        %s138 = scalar_lea.vmem %s0, %s137
      $region24: #{down_forward.3} parent=19 // pred_fallthru
        _
    $region20: #{down_forward.3} parent=5 // pred_fallthru
      _
    %p139 = scmp.le.s32.totalorder 1, %s10
    %p140 = scmp.lt.s32.totalorder %s10, 3
    %p141 = pnand %p139, %p140
    %p142 = pneg %p141
    // Predicated region
    $region25: #{down_forward.3} parent=5 // pred_check
      _
    $region26: #{down_forward.3} parent=5 // pred_check_branch
      %144 = sbr.rel (%p141) target = $region28
    $region27: #{down_forward.3} parent=5 // pred_region
      %s145 = ssub.s32 %s10, 1
      %p146 = scmp.lt.s32.totalorder %s15, 1
      %s147 = scalar_select %p146, %s15, 1
      %s148 = smul.addr %s147, 16
      %s149 = smul.addr %s148, 4
      %s150 = scalar_lea.vmem %s0, %s149
      %p151 = pneg %p36
      %p152 = pneg %p33
      %p153 = pneg %p57
      %p154 = pneg %p54
      %p155 = pneg %p83
      %p156 = pneg %p80
      %p157 = scmp.lt.s32.totalorder %s15, 1
      %s158 = scalar_select %p157, %s15, 1
      %s159 = smul.addr %s158, 8
      %s160 = smul.addr %s159, 4
      %s161 = scalar_lea.vmem %s2, %s160
      %p162 = pneg %p109
      %p163 = pneg %p106
      %p164 = scmp.lt.s32.totalorder %s15, 1
      %s165 = scalar_select %p164, %s15, 1
      %s166 = smul.addr %s165, 2
      %s167 = scalar_lea.vmem %s3, %s166
      %p168 = scmp.lt.s32.totalorder %s15, 1
      %s169 = scalar_select %p168, %s15, 1
      %s170 = smul.addr %s169, 16
      %s171 = smul.addr %s170, 4
      %s172 = scalar_lea.vmem %s0, %s171
      %p173 = scmp.lt.s32.totalorder %s15, 1
      %s174 = scalar_select %p173, %s15, 1
      %s175 = smul.addr %s174, 8
      %s176 = smul.addr %s175, 4
      %s177 = scalar_lea.vmem %s2, %s176
      %p178 = scmp.lt.s32.totalorder %s15, 1
      %s179 = scalar_select %p178, %s15, 1
      %s180 = smul.addr %s179, 2
      %s181 = scalar_lea.vmem %s3, %s180
      %v183 = vld [vmem:[%s172] sm:$0xf]
      %v184 = vld [vmem:[%s172 + $0x4] sm:$0xf]
      %v185 = vld [vmem:[%s172 + $0x8] sm:$0xf]
      %v186 = vld [vmem:[%s172 + $0xc] sm:$0xf]
      %v187 = vld [vmem:[%s172 + $0x10] sm:$0xf]
      %v188 = vld [vmem:[%s172 + $0x14] sm:$0xf]
      %v189 = vld [vmem:[%s172 + $0x18] sm:$0xf]
      %v190 = vld [vmem:[%s172 + $0x1c] sm:$0xf]
      %v191 = vld [vmem:[%s172 + $0x20] sm:$0xf]
      %v192 = vld [vmem:[%s172 + $0x24] sm:$0xf]
      %v193 = vld [vmem:[%s172 + $0x28] sm:$0xf]
      %v194 = vld [vmem:[%s172 + $0x2c] sm:$0xf]
      %v195 = vld [vmem:[%s172 + $0x30] sm:$0xf]
      %v196 = vld [vmem:[%s172 + $0x34] sm:$0xf]
      %v197 = vld [vmem:[%s172 + $0x38] sm:$0xf]
      %v198 = vld [vmem:[%s172 + $0x3c] sm:$0xf]
      %v199 = vunpack.c.l.bf16 %v183
      %v200 = vunpack.c.l.bf16 %v184
      %v201 = vunpack.c.l.bf16 %v185
      %v202 = vunpack.c.l.bf16 %v186
      %v203 = vunpack.c.l.bf16 %v187
      %v204 = vunpack.c.l.bf16 %v188
      %v205 = vunpack.c.l.bf16 %v189
      %v206 = vunpack.c.l.bf16 %v190
      %v207 = vunpack.c.l.bf16 %v191
      %v208 = vunpack.c.l.bf16 %v192
      %v209 = vunpack.c.l.bf16 %v193
      %v210 = vunpack.c.l.bf16 %v194
      %v211 = vunpack.c.l.bf16 %v195
      %v212 = vunpack.c.l.bf16 %v196
      %v213 = vunpack.c.l.bf16 %v197
      %v214 = vunpack.c.l.bf16 %v198
      %231 = vrot.lane.b32.xlu0 %v199, 124
      %v232 = vpop.permute.xlu0 %231
      %233 = vrot.lane.b32.xlu0 %v200, 124
      %v234 = vpop.permute.xlu0 %233
      %235 = vrot.lane.b32.xlu0 %v201, 124
      %v236 = vpop.permute.xlu0 %235
      %237 = vrot.lane.b32.xlu0 %v202, 124
      %v238 = vpop.permute.xlu0 %237
      %239 = vrot.lane.b32.xlu0 %v203, 124
      %v240 = vpop.permute.xlu0 %239
      %241 = vrot.lane.b32.xlu0 %v204, 124
      %v242 = vpop.permute.xlu0 %241
      %243 = vrot.lane.b32.xlu0 %v205, 124
      %v244 = vpop.permute.xlu0 %243
      %245 = vrot.lane.b32.xlu0 %v206, 124
      %v246 = vpop.permute.xlu0 %245
      %247 = vrot.lane.b32.xlu0 %v207, 124
      %v248 = vpop.permute.xlu0 %247
      %249 = vrot.lane.b32.xlu0 %v208, 124
      %v250 = vpop.permute.xlu0 %249
      %251 = vrot.lane.b32.xlu0 %v209, 124
      %v252 = vpop.permute.xlu0 %251
      %253 = vrot.lane.b32.xlu0 %v210, 124
      %v254 = vpop.permute.xlu0 %253
      %255 = vrot.lane.b32.xlu0 %v211, 124
      %v256 = vpop.permute.xlu0 %255
      %257 = vrot.lane.b32.xlu0 %v212, 124
      %v258 = vpop.permute.xlu0 %257
      %259 = vrot.lane.b32.xlu0 %v213, 124
      %v260 = vpop.permute.xlu0 %259
      %261 = vrot.lane.b32.xlu0 %v214, 124
      %v262 = vpop.permute.xlu0 %261
      %v279 = vmax.f32 %v199, %v232
      %v280 = vmax.f32 %v200, %v234
      %v281 = vmax.f32 %v201, %v236
      %v282 = vmax.f32 %v202, %v238
      %v283 = vmax.f32 %v203, %v240
      %v284 = vmax.f32 %v204, %v242
      %v285 = vmax.f32 %v205, %v244
      %v286 = vmax.f32 %v206, %v246
      %v287 = vmax.f32 %v207, %v248
      %v288 = vmax.f32 %v208, %v250
      %v289 = vmax.f32 %v209, %v252
      %v290 = vmax.f32 %v210, %v254
      %v291 = vmax.f32 %v211, %v256
      %v292 = vmax.f32 %v212, %v258
      %v293 = vmax.f32 %v213, %v260
      %v294 = vmax.f32 %v214, %v262
      %v295 = vpack.c.bf16 %v279, %v279
      %v296 = vpack.c.bf16 %v280, %v280
      %v297 = vpack.c.bf16 %v281, %v281
      %v298 = vpack.c.bf16 %v282, %v282
      %v299 = vpack.c.bf16 %v283, %v283
      %v300 = vpack.c.bf16 %v284, %v284
      %v301 = vpack.c.bf16 %v285, %v285
      %v302 = vpack.c.bf16 %v286, %v286
      %v303 = vpack.c.bf16 %v287, %v287
      %v304 = vpack.c.bf16 %v288, %v288
      %v305 = vpack.c.bf16 %v289, %v289
      %v306 = vpack.c.bf16 %v290, %v290
      %v307 = vpack.c.bf16 %v291, %v291
      %v308 = vpack.c.bf16 %v292, %v292
      %v309 = vpack.c.bf16 %v293, %v293
      %v310 = vpack.c.bf16 %v294, %v294
      %v311 = vunpack.c.l.bf16 %v295
      %v312 = vunpack.c.l.bf16 %v297
      %v313 = vunpack.c.l.bf16 %v299
      %v314 = vunpack.c.l.bf16 %v301
      %v315 = vunpack.c.l.bf16 %v303
      %v316 = vunpack.c.l.bf16 %v305
      %v317 = vunpack.c.l.bf16 %v307
      %v318 = vunpack.c.l.bf16 %v309
      %v319 = vunpack.c.l.bf16 %v296
      %v320 = vunpack.c.l.bf16 %v298
      %v321 = vunpack.c.l.bf16 %v300
      %v322 = vunpack.c.l.bf16 %v302
      %v323 = vunpack.c.l.bf16 %v304
      %v324 = vunpack.c.l.bf16 %v306
      %v325 = vunpack.c.l.bf16 %v308
      %v326 = vunpack.c.l.bf16 %v310
      %v327 = vmax.f32 %v311, %v319
      %v328 = vmax.f32 %v312, %v320
      %v329 = vmax.f32 %v313, %v321
      %v330 = vmax.f32 %v314, %v322
      %v331 = vmax.f32 %v315, %v323
      %v332 = vmax.f32 %v316, %v324
      %v333 = vmax.f32 %v317, %v325
      %v334 = vmax.f32 %v318, %v326
      %v335 = vpack.c.bf16 %v327, %v327
      %v336 = vpack.c.bf16 %v328, %v328
      %v337 = vpack.c.bf16 %v329, %v329
      %v338 = vpack.c.bf16 %v330, %v330
      %v339 = vpack.c.bf16 %v331, %v331
      %v340 = vpack.c.bf16 %v332, %v332
      %v341 = vpack.c.bf16 %v333, %v333
      %v342 = vpack.c.bf16 %v334, %v334
      %vm343 = vcmask 27648
      %344 = vst.msk [vmem:[#allocation2] sm:$0xf] %vm343, 0
      %vm345 = vcmask 24576
      %346 = vst.msk [vmem:[#allocation2 + $0x4] sm:$0x1] %vm345, 0
      %s347 = scalar_lea.vmem [#allocation2], 72
      %348 = vst.msk [vmem:[%s347] sm:$0xf] %vm343, 0
      %349 = vst.msk [vmem:[%s347 + $0x4] sm:$0x1] %vm345, 0
      %vm350 = vcmask 24576
      %vm351 = vsmask.f32 256
      %vm352 = vmand %vm350, %vm351
      %v353 = vld [vmem:[#allocation2] sm:$0x1]
      %v354 = vsel %vm352, 0, %v353
      %355 = vst [vmem:[#allocation2] sm:$0x1] %v354
      %v356 = vld [vmem:[#allocation2 + $0x8] sm:$0x1]
      %v357 = vsel %vm352, 0, %v356
      %358 = vst [vmem:[#allocation2 + $0x8] sm:$0x1] %v357
      %v359 = vld [vmem:[#allocation2 + $0x10] sm:$0x1]
      %v360 = vsel %vm352, 0, %v359
      %361 = vst [vmem:[#allocation2 + $0x10] sm:$0x1] %v360
      %v362 = vld [vmem:[#allocation2 + $0x18] sm:$0x1]
      %v363 = vsel %vm352, 0, %v362
      %364 = vst [vmem:[#allocation2 + $0x18] sm:$0x1] %v363
      %v365 = vld [vmem:[#allocation2 + $0x20] sm:$0x1]
      %v366 = vsel %vm352, 0, %v365
      %367 = vst [vmem:[#allocation2 + $0x20] sm:$0x1] %v366
      %v368 = vld [vmem:[#allocation2 + $0x28] sm:$0x1]
      %v369 = vsel %vm352, 0, %v368
      %370 = vst [vmem:[#allocation2 + $0x28] sm:$0x1] %v369
      %v371 = vld [vmem:[#allocation2 + $0x30] sm:$0x1]
      %v372 = vsel %vm352, 0, %v371
      %373 = vst [vmem:[#allocation2 + $0x30] sm:$0x1] %v372
      %v374 = vld [vmem:[#allocation2 + $0x38] sm:$0x1]
      %v375 = vsel %vm352, 0, %v374
      %376 = vst [vmem:[#allocation2 + $0x38] sm:$0x1] %v375
      %v377 = vld [vmem:[#allocation2 + $0x40] sm:$0x1]
      %v378 = vsel %vm352, 0, %v377
      %379 = vst [vmem:[#allocation2 + $0x40] sm:$0x1] %v378
      %v380 = vld [vmem:[#allocation2 + $0x48] sm:$0x1]
      %v381 = vsel %vm352, 0, %v380
      %382 = vst [vmem:[#allocation2 + $0x48] sm:$0x1] %v381
      %vm383 = vsmask.f32 7938
      %vm384 = vmand %vm350, %vm383
      %v385 = vld [vmem:[#allocation2 + $0x4] sm:$0x1]
      %v386 = vsel %vm384, 0, %v385
      %387 = vst [vmem:[#allocation2 + $0x4] sm:$0x1] %v386
      %v388 = vld [vmem:[#allocation2 + $0xc] sm:$0x1]
      %v389 = vsel %vm384, 0, %v388
      %390 = vst [vmem:[#allocation2 + $0xc] sm:$0x1] %v389
      %v391 = vld [vmem:[#allocation2 + $0x14] sm:$0x1]
      %v392 = vsel %vm384, 0, %v391
      %393 = vst [vmem:[#allocation2 + $0x14] sm:$0x1] %v392
      %v394 = vld [vmem:[#allocation2 + $0x1c] sm:$0x1]
      %v395 = vsel %vm384, 0, %v394
      %396 = vst [vmem:[#allocation2 + $0x1c] sm:$0x1] %v395
      %v397 = vld [vmem:[#allocation2 + $0x24] sm:$0x1]
      %v398 = vsel %vm384, 0, %v397
      %399 = vst [vmem:[#allocation2 + $0x24] sm:$0x1] %v398
      %v400 = vld [vmem:[#allocation2 + $0x2c] sm:$0x1]
      %v401 = vsel %vm384, 0, %v400
      %402 = vst [vmem:[#allocation2 + $0x2c] sm:$0x1] %v401
      %v403 = vld [vmem:[#allocation2 + $0x34] sm:$0x1]
      %v404 = vsel %vm384, 0, %v403
      %405 = vst [vmem:[#allocation2 + $0x34] sm:$0x1] %v404
      %v406 = vld [vmem:[#allocation2 + $0x3c] sm:$0x1]
      %v407 = vsel %vm384, 0, %v406
      %408 = vst [vmem:[#allocation2 + $0x3c] sm:$0x1] %v407
      %v409 = vld [vmem:[#allocation2 + $0x44] sm:$0x1]
      %v410 = vsel %vm384, 0, %v409
      %411 = vst [vmem:[#allocation2 + $0x44] sm:$0x1] %v410
      %v412 = vld [vmem:[#allocation2 + $0x4c] sm:$0x1]
      %v413 = vsel %vm384, 0, %v412
      %414 = vst [vmem:[#allocation2 + $0x4c] sm:$0x1] %v413
      %v416 = vshrl.u32 %v335, 16
      %v418 = vrot.slane %v416, 7
      %v419 = vshll.u32 %v335, 16
      %v421 = vor.u32 %v418, %v419
      %v422 = vrot.slane %v418, 4
      %v424 = vshrl.u32 %v336, 16
      %v426 = vrot.slane %v424, 7
      %v427 = vshll.u32 %v336, 16
      %v429 = vor.u32 %v426, %v427
      %v430 = vrot.slane %v426, 4
      %v432 = vshrl.u32 %v337, 16
      %v434 = vrot.slane %v432, 7
      %v435 = vshll.u32 %v337, 16
      %v437 = vor.u32 %v434, %v435
      %v438 = vrot.slane %v434, 4
      %v440 = vshrl.u32 %v338, 16
      %v442 = vrot.slane %v440, 7
      %v443 = vshll.u32 %v338, 16
      %v445 = vor.u32 %v442, %v443
      %v446 = vrot.slane %v442, 4
      %v448 = vshrl.u32 %v339, 16
      %v450 = vrot.slane %v448, 7
      %v451 = vshll.u32 %v339, 16
      %v453 = vor.u32 %v450, %v451
      %v454 = vrot.slane %v450, 4
      %v456 = vshrl.u32 %v340, 16
      %v458 = vrot.slane %v456, 7
      %v459 = vshll.u32 %v340, 16
      %v461 = vor.u32 %v458, %v459
      %v462 = vrot.slane %v458, 4
      %v464 = vshrl.u32 %v341, 16
      %v466 = vrot.slane %v464, 7
      %v467 = vshll.u32 %v341, 16
      %v469 = vor.u32 %v466, %v467
      %v470 = vrot.slane %v466, 4
      %v472 = vshrl.u32 %v342, 16
      %v474 = vrot.slane %v472, 7
      %v475 = vshll.u32 %v342, 16
      %v477 = vor.u32 %v474, %v475
      %v478 = vrot.slane %v474, 4
      %s495 = scalar_lea.vmem [#allocation2], 8
      %vm496 = vcmask 27648
      %vm497 = vmand %vm496, %vm383
      %v498 = vld [vmem:[%s495] sm:$0xf]
      %v499 = vsel %vm497, %v421, %v498
      %500 = vst [vmem:[%s495] sm:$0xf] %v499
      %v501 = vld [vmem:[%s495 + $0x4] sm:$0x1]
      %v502 = vsel %vm352, %v422, %v501
      %503 = vst [vmem:[%s495 + $0x4] sm:$0x1] %v502
      %v504 = vld [vmem:[%s495 + $0x8] sm:$0xf]
      %v505 = vsel %vm497, %v429, %v504
      %506 = vst [vmem:[%s495 + $0x8] sm:$0xf] %v505
      %v507 = vld [vmem:[%s495 + $0xc] sm:$0x1]
      %v508 = vsel %vm352, %v430, %v507
      %509 = vst [vmem:[%s495 + $0xc] sm:$0x1] %v508
      %v510 = vld [vmem:[%s495 + $0x10] sm:$0xf]
      %v511 = vsel %vm497, %v437, %v510
      %512 = vst [vmem:[%s495 + $0x10] sm:$0xf] %v511
      %v513 = vld [vmem:[%s495 + $0x14] sm:$0x1]
      %v514 = vsel %vm352, %v438, %v513
      %515 = vst [vmem:[%s495 + $0x14] sm:$0x1] %v514
      %v516 = vld [vmem:[%s495 + $0x18] sm:$0xf]
      %v517 = vsel %vm497, %v445, %v516
      %518 = vst [vmem:[%s495 + $0x18] sm:$0xf] %v517
      %v519 = vld [vmem:[%s495 + $0x1c] sm:$0x1]
      %v520 = vsel %vm352, %v446, %v519
      %521 = vst [vmem:[%s495 + $0x1c] sm:$0x1] %v520
      %v522 = vld [vmem:[%s495 + $0x20] sm:$0xf]
      %v523 = vsel %vm497, %v453, %v522
      %524 = vst [vmem:[%s495 + $0x20] sm:$0xf] %v523
      %v525 = vld [vmem:[%s495 + $0x24] sm:$0x1]
      %v526 = vsel %vm352, %v454, %v525
      %527 = vst [vmem:[%s495 + $0x24] sm:$0x1] %v526
      %v528 = vld [vmem:[%s495 + $0x28] sm:$0xf]
      %v529 = vsel %vm497, %v461, %v528
      %530 = vst [vmem:[%s495 + $0x28] sm:$0xf] %v529
      %v531 = vld [vmem:[%s495 + $0x2c] sm:$0x1]
      %v532 = vsel %vm352, %v462, %v531
      %533 = vst [vmem:[%s495 + $0x2c] sm:$0x1] %v532
      %v534 = vld [vmem:[%s495 + $0x30] sm:$0xf]
      %v535 = vsel %vm497, %v469, %v534
      %536 = vst [vmem:[%s495 + $0x30] sm:$0xf] %v535
      %v537 = vld [vmem:[%s495 + $0x34] sm:$0x1]
      %v538 = vsel %vm352, %v470, %v537
      %539 = vst [vmem:[%s495 + $0x34] sm:$0x1] %v538
      %v540 = vld [vmem:[%s495 + $0x38] sm:$0xf]
      %v541 = vsel %vm497, %v477, %v540
      %542 = vst [vmem:[%s495 + $0x38] sm:$0xf] %v541
      %v543 = vld [vmem:[%s495 + $0x3c] sm:$0x1]
      %v544 = vsel %vm352, %v478, %v543
      %545 = vst [vmem:[%s495 + $0x3c] sm:$0x1] %v544
      %v546 = vld [vmem:[#allocation2] sm:$0xf]
      %v547 = vld [vmem:[#allocation2 + $0x4] sm:$0x1]
      %v548 = vld [vmem:[#allocation2 + $0x8] sm:$0xf]
      %v549 = vld [vmem:[#allocation2 + $0xc] sm:$0x1]
      %v550 = vld [vmem:[#allocation2 + $0x10] sm:$0xf]
      %v551 = vld [vmem:[#allocation2 + $0x14] sm:$0x1]
      %v552 = vld [vmem:[#allocation2 + $0x18] sm:$0xf]
      %v553 = vld [vmem:[#allocation2 + $0x1c] sm:$0x1]
      %v554 = vld [vmem:[#allocation2 + $0x20] sm:$0xf]
      %v555 = vld [vmem:[#allocation2 + $0x24] sm:$0x1]
      %v556 = vld [vmem:[#allocation2 + $0x28] sm:$0xf]
      %v557 = vld [vmem:[#allocation2 + $0x2c] sm:$0x1]
      %v558 = vld [vmem:[#allocation2 + $0x30] sm:$0xf]
      %v559 = vld [vmem:[#allocation2 + $0x34] sm:$0x1]
      %v560 = vld [vmem:[#allocation2 + $0x38] sm:$0xf]
      %v561 = vld [vmem:[#allocation2 + $0x3c] sm:$0x1]
      %v578 = vunpack.c.l.b16 %v546
      %v579 = vunpack.c.l.b16 %v547
      %v580 = vunpack.c.l.b16 %v548
      %v581 = vunpack.c.l.b16 %v549
      %v582 = vunpack.c.l.b16 %v550
      %v583 = vunpack.c.l.b16 %v551
      %v584 = vunpack.c.l.b16 %v552
      %v585 = vunpack.c.l.b16 %v553
      %v586 = vunpack.c.l.b16 %v554
      %v587 = vunpack.c.l.b16 %v555
      %v588 = vunpack.c.l.b16 %v556
      %v589 = vunpack.c.l.b16 %v557
      %v590 = vunpack.c.l.b16 %v558
      %v591 = vunpack.c.l.b16 %v559
      %v592 = vunpack.c.l.b16 %v560
      %v593 = vunpack.c.l.b16 %v561
      %v594 = vpack.c.b16 %v579, %v578
      %v595 = vpack.c.b16 %v581, %v580
      %v596 = vpack.c.b16 %v583, %v582
      %v597 = vpack.c.b16 %v585, %v584
      %v598 = vpack.c.b16 %v587, %v586
      %v599 = vpack.c.b16 %v589, %v588
      %v600 = vpack.c.b16 %v591, %v590
      %v601 = vpack.c.b16 %v593, %v592
      %v603 = vshrl.u32 %v594, 16
      %v605 = vshll.u32 %v594, 16
      %v607 = vrot.slane %v605, 1
      %v608 = vor.u32 %v603, %v607
      %v610 = vshrl.u32 %v595, 16
      %v612 = vshll.u32 %v595, 16
      %v614 = vrot.slane %v612, 1
      %v615 = vor.u32 %v610, %v614
      %v617 = vshrl.u32 %v596, 16
      %v619 = vshll.u32 %v596, 16
      %v621 = vrot.slane %v619, 1
      %v622 = vor.u32 %v617, %v621
      %v624 = vshrl.u32 %v597, 16
      %v626 = vshll.u32 %v597, 16
      %v628 = vrot.slane %v626, 1
      %v629 = vor.u32 %v624, %v628
      %v631 = vshrl.u32 %v598, 16
      %v633 = vshll.u32 %v598, 16
      %v635 = vrot.slane %v633, 1
      %v636 = vor.u32 %v631, %v635
      %v638 = vshrl.u32 %v599, 16
      %v640 = vshll.u32 %v599, 16
      %v642 = vrot.slane %v640, 1
      %v643 = vor.u32 %v638, %v642
      %v645 = vshrl.u32 %v600, 16
      %v647 = vshll.u32 %v600, 16
      %v649 = vrot.slane %v647, 1
      %v650 = vor.u32 %v645, %v649
      %v652 = vshrl.u32 %v601, 16
      %v654 = vshll.u32 %v601, 16
      %v656 = vrot.slane %v654, 1
      %v657 = vor.u32 %v652, %v656
      %658 = vrot.lane.b32.xlu0 %v608, 4
      %v659 = vpop.permute.xlu0 %658
      %660 = vrot.lane.b32.xlu0 %v615, 4
      %v661 = vpop.permute.xlu0 %660
      %662 = vrot.lane.b32.xlu0 %v622, 4
      %v663 = vpop.permute.xlu0 %662
      %664 = vrot.lane.b32.xlu0 %v629, 4
      %v665 = vpop.permute.xlu0 %664
      %666 = vrot.lane.b32.xlu0 %v636, 4
      %v667 = vpop.permute.xlu0 %666
      %668 = vrot.lane.b32.xlu0 %v643, 4
      %v669 = vpop.permute.xlu0 %668
      %670 = vrot.lane.b32.xlu0 %v650, 4
      %v671 = vpop.permute.xlu0 %670
      %672 = vrot.lane.b32.xlu0 %v657, 4
      %v673 = vpop.permute.xlu0 %672
      %v674 = vrot.slane %v594, 1
      %v675 = vrot.slane %v595, 1
      %v676 = vrot.slane %v596, 1
      %v677 = vrot.slane %v597, 1
      %v678 = vrot.slane %v598, 1
      %v679 = vrot.slane %v599, 1
      %v680 = vrot.slane %v600, 1
      %v681 = vrot.slane %v601, 1
      %682 = vrot.lane.b32.xlu0 %v674, 8
      %v683 = vpop.permute.xlu0 %682
      %684 = vrot.lane.b32.xlu0 %v675, 8
      %v685 = vpop.permute.xlu0 %684
      %686 = vrot.lane.b32.xlu0 %v676, 8
      %v687 = vpop.permute.xlu0 %686
      %688 = vrot.lane.b32.xlu0 %v677, 8
      %v689 = vpop.permute.xlu0 %688
      %690 = vrot.lane.b32.xlu0 %v678, 8
      %v691 = vpop.permute.xlu0 %690
      %692 = vrot.lane.b32.xlu0 %v679, 8
      %v693 = vpop.permute.xlu0 %692
      %694 = vrot.lane.b32.xlu0 %v680, 8
      %v695 = vpop.permute.xlu0 %694
      %696 = vrot.lane.b32.xlu0 %v681, 8
      %v697 = vpop.permute.xlu0 %696
      %vm698 = vcmask 31744
      %v701 = vsel %vm698, %v546, %v659
      %v704 = vsel %vm698, %v548, %v661
      %v707 = vsel %vm698, %v550, %v663
      %v710 = vsel %vm698, %v552, %v665
      %v713 = vsel %vm698, %v554, %v667
      %v716 = vsel %vm698, %v556, %v669
      %v719 = vsel %vm698, %v558, %v671
      %v722 = vsel %vm698, %v560, %v673
      %vm723 = vcmask 64512
      %v725 = vsel %vm723, %v701, %v683
      %v727 = vsel %vm723, %v704, %v685
      %v729 = vsel %vm723, %v707, %v687
      %v731 = vsel %vm723, %v710, %v689
      %v733 = vsel %vm723, %v713, %v691
      %v735 = vsel %vm723, %v716, %v693
      %v737 = vsel %vm723, %v719, %v695
      %v739 = vsel %vm723, %v722, %v697
      %v740 = vld [vmem:[%s1] sm:$0x3]
      %v741 = vld [vmem:[%s1 + $0x2] sm:$0x3]
      %v742 = vld [vmem:[%s1 + $0x4] sm:$0x3]
      %v743 = vld [vmem:[%s495] sm:$0xf]
      %v744 = vld [vmem:[%s495 + $0x4] sm:$0x1]
      %v745 = vld [vmem:[%s495 + $0x8] sm:$0xf]
      %v746 = vld [vmem:[%s495 + $0xc] sm:$0x1]
      %v747 = vld [vmem:[%s495 + $0x10] sm:$0xf]
      %v748 = vld [vmem:[%s495 + $0x14] sm:$0x1]
      %v749 = vld [vmem:[%s495 + $0x18] sm:$0xf]
      %v750 = vld [vmem:[%s495 + $0x1c] sm:$0x1]
      %v751 = vld [vmem:[%s495 + $0x20] sm:$0xf]
      %v752 = vld [vmem:[%s495 + $0x24] sm:$0x1]
      %v753 = vld [vmem:[%s495 + $0x28] sm:$0xf]
      %v754 = vld [vmem:[%s495 + $0x2c] sm:$0x1]
      %v755 = vld [vmem:[%s495 + $0x30] sm:$0xf]
      %v756 = vld [vmem:[%s495 + $0x34] sm:$0x1]
      %v757 = vld [vmem:[%s495 + $0x38] sm:$0xf]
      %v758 = vld [vmem:[%s495 + $0x3c] sm:$0x1]
      %v775 = vunpack.c.l.b16 %v743
      %v776 = vunpack.c.l.b16 %v744
      %v777 = vunpack.c.l.b16 %v745
      %v778 = vunpack.c.l.b16 %v746
      %v779 = vunpack.c.l.b16 %v747
      %v780 = vunpack.c.l.b16 %v748
      %v781 = vunpack.c.l.b16 %v749
      %v782 = vunpack.c.l.b16 %v750
      %v783 = vunpack.c.l.b16 %v751
      %v784 = vunpack.c.l.b16 %v752
      %v785 = vunpack.c.l.b16 %v753
      %v786 = vunpack.c.l.b16 %v754
      %v787 = vunpack.c.l.b16 %v755
      %v788 = vunpack.c.l.b16 %v756
      %v789 = vunpack.c.l.b16 %v757
      %v790 = vunpack.c.l.b16 %v758
      %v791 = vpack.c.b16 %v776, %v775
      %v792 = vpack.c.b16 %v778, %v777
      %v793 = vpack.c.b16 %v780, %v779
      %v794 = vpack.c.b16 %v782, %v781
      %v795 = vpack.c.b16 %v784, %v783
      %v796 = vpack.c.b16 %v786, %v785
      %v797 = vpack.c.b16 %v788, %v787
      %v798 = vpack.c.b16 %v790, %v789
      %v800 = vshrl.u32 %v791, 16
      %v802 = vshll.u32 %v791, 16
      %v804 = vrot.slane %v802, 1
      %v805 = vor.u32 %v800, %v804
      %v807 = vshrl.u32 %v792, 16
      %v809 = vshll.u32 %v792, 16
      %v811 = vrot.slane %v809, 1
      %v812 = vor.u32 %v807, %v811
      %v814 = vshrl.u32 %v793, 16
      %v816 = vshll.u32 %v793, 16
      %v818 = vrot.slane %v816, 1
      %v819 = vor.u32 %v814, %v818
      %v821 = vshrl.u32 %v794, 16
      %v823 = vshll.u32 %v794, 16
      %v825 = vrot.slane %v823, 1
      %v826 = vor.u32 %v821, %v825
      %v828 = vshrl.u32 %v795, 16
      %v830 = vshll.u32 %v795, 16
      %v832 = vrot.slane %v830, 1
      %v833 = vor.u32 %v828, %v832
      %v835 = vshrl.u32 %v796, 16
      %v837 = vshll.u32 %v796, 16
      %v839 = vrot.slane %v837, 1
      %v840 = vor.u32 %v835, %v839
      %v842 = vshrl.u32 %v797, 16
      %v844 = vshll.u32 %v797, 16
      %v846 = vrot.slane %v844, 1
      %v847 = vor.u32 %v842, %v846
      %v849 = vshrl.u32 %v798, 16
      %v851 = vshll.u32 %v798, 16
      %v853 = vrot.slane %v851, 1
      %v854 = vor.u32 %v849, %v853
      %855 = vrot.lane.b32.xlu0 %v805, 4
      %v856 = vpop.permute.xlu0 %855
      %857 = vrot.lane.b32.xlu0 %v812, 4
      %v858 = vpop.permute.xlu0 %857
      %859 = vrot.lane.b32.xlu0 %v819, 4
      %v860 = vpop.permute.xlu0 %859
      %861 = vrot.lane.b32.xlu0 %v826, 4
      %v862 = vpop.permute.xlu0 %861
      %863 = vrot.lane.b32.xlu0 %v833, 4
      %v864 = vpop.permute.xlu0 %863
      %865 = vrot.lane.b32.xlu0 %v840, 4
      %v866 = vpop.permute.xlu0 %865
      %867 = vrot.lane.b32.xlu0 %v847, 4
      %v868 = vpop.permute.xlu0 %867
      %869 = vrot.lane.b32.xlu0 %v854, 4
      %v870 = vpop.permute.xlu0 %869
      %v871 = vrot.slane %v791, 1
      %v872 = vrot.slane %v792, 1
      %v873 = vrot.slane %v793, 1
      %v874 = vrot.slane %v794, 1
      %v875 = vrot.slane %v795, 1
      %v876 = vrot.slane %v796, 1
      %v877 = vrot.slane %v797, 1
      %v878 = vrot.slane %v798, 1
      %879 = vrot.lane.b32.xlu0 %v871, 8
      %v880 = vpop.permute.xlu0 %879
      %881 = vrot.lane.b32.xlu0 %v872, 8
      %v882 = vpop.permute.xlu0 %881
      %883 = vrot.lane.b32.xlu0 %v873, 8
      %v884 = vpop.permute.xlu0 %883
      %885 = vrot.lane.b32.xlu0 %v874, 8
      %v886 = vpop.permute.xlu0 %885
      %887 = vrot.lane.b32.xlu0 %v875, 8
      %v888 = vpop.permute.xlu0 %887
      %889 = vrot.lane.b32.xlu0 %v876, 8
      %v890 = vpop.permute.xlu0 %889
      %891 = vrot.lane.b32.xlu0 %v877, 8
      %v892 = vpop.permute.xlu0 %891
      %893 = vrot.lane.b32.xlu0 %v878, 8
      %v894 = vpop.permute.xlu0 %893
      %v897 = vsel %vm698, %v743, %v856
      %v900 = vsel %vm698, %v745, %v858
      %v903 = vsel %vm698, %v747, %v860
      %v906 = vsel %vm698, %v749, %v862
      %v909 = vsel %vm698, %v751, %v864
      %v912 = vsel %vm698, %v753, %v866
      %v915 = vsel %vm698, %v755, %v868
      %v918 = vsel %vm698, %v757, %v870
      %v920 = vsel %vm723, %v897, %v880
      %v922 = vsel %vm723, %v900, %v882
      %v924 = vsel %vm723, %v903, %v884
      %v926 = vsel %vm723, %v906, %v886
      %v928 = vsel %vm723, %v909, %v888
      %v930 = vsel %vm723, %v912, %v890
      %v932 = vsel %vm723, %v915, %v892
      %v934 = vsel %vm723, %v918, %v894
      %s935 = scalar_lea.vmem %s1, 6
      %v936 = vld [vmem:[%s935] sm:$0x3]
      %v937 = vld [vmem:[%s935 + $0x2] sm:$0x3]
      %v938 = vld [vmem:[%s935 + $0x4] sm:$0x3]
      %v947 = vunpack.c.l.b16 %v920
      %v948 = vunpack.c.l.b16 %v922
      %v949 = vunpack.c.l.b16 %v924
      %v950 = vunpack.c.l.b16 %v926
      %v951 = vunpack.c.l.b16 %v928
      %v952 = vunpack.c.l.b16 %v930
      %v953 = vunpack.c.l.b16 %v932
      %v954 = vunpack.c.l.b16 %v934
      %v955 = vpack.c.b16 %v948, %v947
      %v956 = vpack.c.b16 %v950, %v949
      %v957 = vpack.c.b16 %v952, %v951
      %v958 = vpack.c.b16 %v954, %v953
      %960 = vst [vmem:[#allocation1] ss:$4 sm:$0xff] %v936
      %s962 = scalar_lea.vmem [#allocation1], 1
      %963 = vst [vmem:[%s962] ss:$4 sm:$0xff] %v937
      %s965 = scalar_lea.vmem [#allocation1], 2
      %966 = vst [vmem:[%s965] ss:$4 sm:$0xff] %v938
      %v967 = vld.sshfl [vmem:[#allocation1] sm:$0xff pattern:$0x73625140]
      %vm968 = vcmask 97280
      %v970 = vsel %vm968, %v955, 0
      %v973 = vsel %vm968, %v956, 0
      %v976 = vsel %vm968, %v957, 0
      %v979 = vsel %vm968, %v958, 0
      %vm981 = vcmask 1045504
      %v982 = vsel %vm981, %v967, 0
      %984 = vmatpush.bf16.msra.mxu0 0
      %985 = vmatpush.bf16.msra.mxu0 0
      %986 = vmatpush.bf16.msra.mxu0 0
      %987 = vmatpush.bf16.msra.mxu0 0
      %988 = vmatpush.bf16.msra.mxu0 0
      %989 = vmatpush.bf16.msra.mxu0 0
      %990 = vmatpush.bf16.msra.mxu0 0
      %991 = vmatpush.bf16.msra.mxu0 %v982
      %992 = vmatmul.bf16.gmra.mxu0 %v970
      %v993 = vpop.f32.mrf.mxu0
      %v994 = vadd.f32 0.0, %v993
      %v995 = vpop.f32.mrf.mxu0
      %v996 = vadd.f32 0.0, %v995
      %997 = vmatmul.bf16.gmra.mxu0 %v973
      %v998 = vpop.f32.mrf.mxu0
      %v999 = vadd.f32 0.0, %v998
      %v1000 = vpop.f32.mrf.mxu0
      %v1001 = vadd.f32 0.0, %v1000
      %1002 = vmatmul.bf16.gmra.mxu0 %v976
      %v1003 = vpop.f32.mrf.mxu0
      %v1004 = vadd.f32 0.0, %v1003
      %v1005 = vpop.f32.mrf.mxu0
      %v1006 = vadd.f32 0.0, %v1005
      %1007 = vmatmul.bf16.gmra.mxu0 %v979
      %v1008 = vpop.f32.mrf.mxu0
      %v1009 = vadd.f32 0.0, %v1008
      %v1010 = vpop.f32.mrf.mxu0
      %v1011 = vadd.f32 0.0, %v1010
      %1012 = vdwg.mxu0
      %v1021 = vunpack.c.l.b16 %v725
      %v1022 = vunpack.c.l.b16 %v727
      %v1023 = vunpack.c.l.b16 %v729
      %v1024 = vunpack.c.l.b16 %v731
      %v1025 = vunpack.c.l.b16 %v733
      %v1026 = vunpack.c.l.b16 %v735
      %v1027 = vunpack.c.l.b16 %v737
      %v1028 = vunpack.c.l.b16 %v739
      %v1029 = vpack.c.b16 %v1022, %v1021
      %v1030 = vpack.c.b16 %v1024, %v1023
      %v1031 = vpack.c.b16 %v1026, %v1025
      %v1032 = vpack.c.b16 %v1028, %v1027
      %1034 = vst [vmem:[#allocation1] ss:$4 sm:$0xff] %v740
      %s1036 = scalar_lea.vmem [#allocation1], 1
      %1037 = vst [vmem:[%s1036] ss:$4 sm:$0xff] %v741
      %s1039 = scalar_lea.vmem [#allocation1], 2
      %1040 = vst [vmem:[%s1039] ss:$4 sm:$0xff] %v742
      %v1041 = vld.sshfl [vmem:[#allocation1] sm:$0xff pattern:$0x73625140]
      %v1043 = vsel %vm968, %v1029, 0
      %v1046 = vsel %vm968, %v1030, 0
      %v1049 = vsel %vm968, %v1031, 0
      %v1052 = vsel %vm968, %v1032, 0
      %v1054 = vsel %vm981, %v1041, 0
      %1056 = vmatpush.bf16.msra.mxu0 0
      %1057 = vmatpush.bf16.msra.mxu0 0
      %1058 = vmatpush.bf16.msra.mxu0 0
      %1059 = vmatpush.bf16.msra.mxu0 0
      %1060 = vmatpush.bf16.msra.mxu0 0
      %1061 = vmatpush.bf16.msra.mxu0 0
      %1062 = vmatpush.bf16.msra.mxu0 0
      %1063 = vmatpush.bf16.msra.mxu0 %v1054
      %1064 = vmatmul.bf16.gmra.mxu0 %v1043
      %v1065 = vpop.f32.mrf.mxu0
      %v1066 = vadd.f32 %v994, %v1065
      %v1067 = vpop.f32.mrf.mxu0
      %v1068 = vadd.f32 %v996, %v1067
      %1069 = vmatmul.bf16.gmra.mxu0 %v1046
      %v1070 = vpop.f32.mrf.mxu0
      %v1071 = vadd.f32 %v999, %v1070
      %v1072 = vpop.f32.mrf.mxu0
      %v1073 = vadd.f32 %v1001, %v1072
      %1074 = vmatmul.bf16.gmra.mxu0 %v1049
      %v1075 = vpop.f32.mrf.mxu0
      %v1076 = vadd.f32 %v1004, %v1075
      %v1077 = vpop.f32.mrf.mxu0
      %v1078 = vadd.f32 %v1006, %v1077
      %1079 = vmatmul.bf16.gmra.mxu0 %v1052
      %v1080 = vpop.f32.mrf.mxu0
      %v1081 = vadd.f32 %v1009, %v1080
      %v1082 = vpop.f32.mrf.mxu0
      %v1083 = vadd.f32 %v1011, %v1082
      %1084 = vdwg.mxu0
      %s1085 = scalar_lea.vmem [#allocation2], 16
      %v1086 = vld [vmem:[%s1085] sm:$0xf]
      %v1087 = vld [vmem:[%s1085 + $0x4] sm:$0x1]
      %v1088 = vld [vmem:[%s1085 + $0x8] sm:$0xf]
      %v1089 = vld [vmem:[%s1085 + $0xc] sm:$0x1]
      %v1090 = vld [vmem:[%s1085 + $0x10] sm:$0xf]
      %v1091 = vld [vmem:[%s1085 + $0x14] sm:$0x1]
      %v1092 = vld [vmem:[%s1085 + $0x18] sm:$0xf]
      %v1093 = vld [vmem:[%s1085 + $0x1c] sm:$0x1]
      %v1094 = vld [vmem:[%s1085 + $0x20] sm:$0xf]
      %v1095 = vld [vmem:[%s1085 + $0x24] sm:$0x1]
      %v1096 = vld [vmem:[%s1085 + $0x28] sm:$0xf]
      %v1097 = vld [vmem:[%s1085 + $0x2c] sm:$0x1]
      %v1098 = vld [vmem:[%s1085 + $0x30] sm:$0xf]
      %v1099 = vld [vmem:[%s1085 + $0x34] sm:$0x1]
      %v1100 = vld [vmem:[%s1085 + $0x38] sm:$0xf]
      %v1101 = vld [vmem:[%s1085 + $0x3c] sm:$0x1]
      %v1118 = vunpack.c.l.b16 %v1086
      %v1119 = vunpack.c.l.b16 %v1087
      %v1120 = vunpack.c.l.b16 %v1088
      %v1121 = vunpack.c.l.b16 %v1089
      %v1122 = vunpack.c.l.b16 %v1090
      %v1123 = vunpack.c.l.b16 %v1091
      %v1124 = vunpack.c.l.b16 %v1092
      %v1125 = vunpack.c.l.b16 %v1093
      %v1126 = vunpack.c.l.b16 %v1094
      %v1127 = vunpack.c.l.b16 %v1095
      %v1128 = vunpack.c.l.b16 %v1096
      %v1129 = vunpack.c.l.b16 %v1097
      %v1130 = vunpack.c.l.b16 %v1098
      %v1131 = vunpack.c.l.b16 %v1099
      %v1132 = vunpack.c.l.b16 %v1100
      %v1133 = vunpack.c.l.b16 %v1101
      %v1134 = vpack.c.b16 %v1119, %v1118
      %v1135 = vpack.c.b16 %v1121, %v1120
      %v1136 = vpack.c.b16 %v1123, %v1122
      %v1137 = vpack.c.b16 %v1125, %v1124
      %v1138 = vpack.c.b16 %v1127, %v1126
      %v1139 = vpack.c.b16 %v1129, %v1128
      %v1140 = vpack.c.b16 %v1131, %v1130
      %v1141 = vpack.c.b16 %v1133, %v1132
      %v1143 = vshrl.u32 %v1134, 16
      %v1145 = vshll.u32 %v1134, 16
      %v1147 = vrot.slane %v1145, 1
      %v1148 = vor.u32 %v1143, %v1147
      %v1150 = vshrl.u32 %v1135, 16
      %v1152 = vshll.u32 %v1135, 16
      %v1154 = vrot.slane %v1152, 1
      %v1155 = vor.u32 %v1150, %v1154
      %v1157 = vshrl.u32 %v1136, 16
      %v1159 = vshll.u32 %v1136, 16
      %v1161 = vrot.slane %v1159, 1
      %v1162 = vor.u32 %v1157, %v1161
      %v1164 = vshrl.u32 %v1137, 16
      %v1166 = vshll.u32 %v1137, 16
      %v1168 = vrot.slane %v1166, 1
      %v1169 = vor.u32 %v1164, %v1168
      %v1171 = vshrl.u32 %v1138, 16
      %v1173 = vshll.u32 %v1138, 16
      %v1175 = vrot.slane %v1173, 1
      %v1176 = vor.u32 %v1171, %v1175
      %v1178 = vshrl.u32 %v1139, 16
      %v1180 = vshll.u32 %v1139, 16
      %v1182 = vrot.slane %v1180, 1
      %v1183 = vor.u32 %v1178, %v1182
      %v1185 = vshrl.u32 %v1140, 16
      %v1187 = vshll.u32 %v1140, 16
      %v1189 = vrot.slane %v1187, 1
      %v1190 = vor.u32 %v1185, %v1189
      %v1192 = vshrl.u32 %v1141, 16
      %v1194 = vshll.u32 %v1141, 16
      %v1196 = vrot.slane %v1194, 1
      %v1197 = vor.u32 %v1192, %v1196
      %1198 = vrot.lane.b32.xlu0 %v1148, 4
      %v1199 = vpop.permute.xlu0 %1198
      %1200 = vrot.lane.b32.xlu0 %v1155, 4
      %v1201 = vpop.permute.xlu0 %1200
      %1202 = vrot.lane.b32.xlu0 %v1162, 4
      %v1203 = vpop.permute.xlu0 %1202
      %1204 = vrot.lane.b32.xlu0 %v1169, 4
      %v1205 = vpop.permute.xlu0 %1204
      %1206 = vrot.lane.b32.xlu0 %v1176, 4
      %v1207 = vpop.permute.xlu0 %1206
      %1208 = vrot.lane.b32.xlu0 %v1183, 4
      %v1209 = vpop.permute.xlu0 %1208
      %1210 = vrot.lane.b32.xlu0 %v1190, 4
      %v1211 = vpop.permute.xlu0 %1210
      %1212 = vrot.lane.b32.xlu0 %v1197, 4
      %v1213 = vpop.permute.xlu0 %1212
      %v1214 = vrot.slane %v1134, 1
      %v1215 = vrot.slane %v1135, 1
      %v1216 = vrot.slane %v1136, 1
      %v1217 = vrot.slane %v1137, 1
      %v1218 = vrot.slane %v1138, 1
      %v1219 = vrot.slane %v1139, 1
      %v1220 = vrot.slane %v1140, 1
      %v1221 = vrot.slane %v1141, 1
      %1222 = vrot.lane.b32.xlu0 %v1214, 8
      %v1223 = vpop.permute.xlu0 %1222
      %1224 = vrot.lane.b32.xlu0 %v1215, 8
      %v1225 = vpop.permute.xlu0 %1224
      %1226 = vrot.lane.b32.xlu0 %v1216, 8
      %v1227 = vpop.permute.xlu0 %1226
      %1228 = vrot.lane.b32.xlu0 %v1217, 8
      %v1229 = vpop.permute.xlu0 %1228
      %1230 = vrot.lane.b32.xlu0 %v1218, 8
      %v1231 = vpop.permute.xlu0 %1230
      %1232 = vrot.lane.b32.xlu0 %v1219, 8
      %v1233 = vpop.permute.xlu0 %1232
      %1234 = vrot.lane.b32.xlu0 %v1220, 8
      %v1235 = vpop.permute.xlu0 %1234
      %1236 = vrot.lane.b32.xlu0 %v1221, 8
      %v1237 = vpop.permute.xlu0 %1236
      %v1240 = vsel %vm698, %v1086, %v1199
      %v1243 = vsel %vm698, %v1088, %v1201
      %v1246 = vsel %vm698, %v1090, %v1203
      %v1249 = vsel %vm698, %v1092, %v1205
      %v1252 = vsel %vm698, %v1094, %v1207
      %v1255 = vsel %vm698, %v1096, %v1209
      %v1258 = vsel %vm698, %v1098, %v1211
      %v1261 = vsel %vm698, %v1100, %v1213
      %v1263 = vsel %vm723, %v1240, %v1223
      %v1265 = vsel %vm723, %v1243, %v1225
      %v1267 = vsel %vm723, %v1246, %v1227
      %v1269 = vsel %vm723, %v1249, %v1229
      %v1271 = vsel %vm723, %v1252, %v1231
      %v1273 = vsel %vm723, %v1255, %v1233
      %v1275 = vsel %vm723, %v1258, %v1235
      %v1277 = vsel %vm723, %v1261, %v1237
      %s1278 = scalar_lea.vmem %s1, 12
      %v1279 = vld [vmem:[%s1278] sm:$0x3]
      %v1280 = vld [vmem:[%s1278 + $0x2] sm:$0x3]
      %v1281 = vld [vmem:[%s1278 + $0x4] sm:$0x3]
      %v1290 = vunpack.c.l.b16 %v1263
      %v1291 = vunpack.c.l.b16 %v1265
      %v1292 = vunpack.c.l.b16 %v1267
      %v1293 = vunpack.c.l.b16 %v1269
      %v1294 = vunpack.c.l.b16 %v1271
      %v1295 = vunpack.c.l.b16 %v1273
      %v1296 = vunpack.c.l.b16 %v1275
      %v1297 = vunpack.c.l.b16 %v1277
      %v1298 = vpack.c.b16 %v1291, %v1290
      %v1299 = vpack.c.b16 %v1293, %v1292
      %v1300 = vpack.c.b16 %v1295, %v1294
      %v1301 = vpack.c.b16 %v1297, %v1296
      %1303 = vst [vmem:[#allocation1] ss:$4 sm:$0xff] %v1279
      %s1305 = scalar_lea.vmem [#allocation1], 1
      %1306 = vst [vmem:[%s1305] ss:$4 sm:$0xff] %v1280
      %s1308 = scalar_lea.vmem [#allocation1], 2
      %1309 = vst [vmem:[%s1308] ss:$4 sm:$0xff] %v1281
      %v1310 = vld.sshfl [vmem:[#allocation1] sm:$0xff pattern:$0x73625140]
      %v1312 = vsel %vm968, %v1298, 0
      %v1315 = vsel %vm968, %v1299, 0
      %v1318 = vsel %vm968, %v1300, 0
      %v1321 = vsel %vm968, %v1301, 0
      %v1323 = vsel %vm981, %v1310, 0
      %1325 = vmatpush.bf16.msra.mxu0 0
      %1326 = vmatpush.bf16.msra.mxu0 0
      %1327 = vmatpush.bf16.msra.mxu0 0
      %1328 = vmatpush.bf16.msra.mxu0 0
      %1329 = vmatpush.bf16.msra.mxu0 0
      %1330 = vmatpush.bf16.msra.mxu0 0
      %1331 = vmatpush.bf16.msra.mxu0 0
      %1332 = vmatpush.bf16.msra.mxu0 %v1323
      %1333 = vmatmul.bf16.gmra.mxu0 %v1312
      %v1334 = vpop.f32.mrf.mxu0
      %v1335 = vadd.f32 0.0, %v1334
      %v1336 = vpop.f32.mrf.mxu0
      %v1337 = vadd.f32 0.0, %v1336
      %1338 = vmatmul.bf16.gmra.mxu0 %v1315
      %v1339 = vpop.f32.mrf.mxu0
      %v1340 = vadd.f32 0.0, %v1339
      %v1341 = vpop.f32.mrf.mxu0
      %v1342 = vadd.f32 0.0, %v1341
      %1343 = vmatmul.bf16.gmra.mxu0 %v1318
      %v1344 = vpop.f32.mrf.mxu0
      %v1345 = vadd.f32 0.0, %v1344
      %v1346 = vpop.f32.mrf.mxu0
      %v1347 = vadd.f32 0.0, %v1346
      %1348 = vmatmul.bf16.gmra.mxu0 %v1321
      %v1349 = vpop.f32.mrf.mxu0
      %v1350 = vadd.f32 0.0, %v1349
      %v1351 = vpop.f32.mrf.mxu0
      %v1352 = vadd.f32 0.0, %v1351
      %1353 = vdwg.mxu0
      %v1354 = vadd.f32 %v1066, %v1335
      %v1355 = vadd.f32 %v1068, %v1337
      %v1356 = vadd.f32 %v1071, %v1340
      %v1357 = vadd.f32 %v1073, %v1342
      %v1358 = vadd.f32 %v1076, %v1345
      %v1359 = vadd.f32 %v1078, %v1347
      %v1360 = vadd.f32 %v1081, %v1350
      %v1361 = vadd.f32 %v1083, %v1352
      %v1362 = vpack.c.bf16 %v1354, %v1354
      %v1363 = vpack.c.bf16 %v1355, %v1355
      %v1364 = vpack.c.bf16 %v1356, %v1356
      %v1365 = vpack.c.bf16 %v1357, %v1357
      %v1366 = vpack.c.bf16 %v1358, %v1358
      %v1367 = vpack.c.bf16 %v1359, %v1359
      %v1368 = vpack.c.bf16 %v1360, %v1360
      %v1369 = vpack.c.bf16 %v1361, %v1361
      %vm1370 = vcmask 60416
      %1371 = vst.msk [vmem:[%s177] sm:$0xf] %vm1370, %v1362
      %1372 = vst.msk [vmem:[%s177 + $0x4] sm:$0xf] %vm1370, %v1363
      %1373 = vst.msk [vmem:[%s177 + $0x8] sm:$0xf] %vm1370, %v1364
      %1374 = vst.msk [vmem:[%s177 + $0xc] sm:$0xf] %vm1370, %v1365
      %1375 = vst.msk [vmem:[%s177 + $0x10] sm:$0xf] %vm1370, %v1366
      %1376 = vst.msk [vmem:[%s177 + $0x14] sm:$0xf] %vm1370, %v1367
      %1377 = vst.msk [vmem:[%s177 + $0x18] sm:$0xf] %vm1370, %v1368
      %1378 = vst.msk [vmem:[%s177 + $0x1c] sm:$0xf] %vm1370, %v1369
      %v1379 = vsel %vm723, %v1354, 0.0
      %v1380 = vsel %vm723, %v1355, 0.0
      %v1381 = vadd.f32 %v1379, %v1380
      %v1382 = vsel %vm723, %v1356, 0.0
      %v1383 = vadd.f32 %v1381, %v1382
      %v1384 = vsel %vm723, %v1357, 0.0
      %v1385 = vadd.f32 %v1383, %v1384
      %v1386 = vsel %vm723, %v1358, 0.0
      %v1387 = vadd.f32 %v1385, %v1386
      %v1388 = vsel %vm723, %v1359, 0.0
      %v1389 = vadd.f32 %v1387, %v1388
      %v1390 = vsel %vm723, %v1360, 0.0
      %v1391 = vadd.f32 %v1389, %v1390
      %v1392 = vsel %vm723, %v1361, 0.0
      %v1393 = vadd.f32 %v1391, %v1392
      %v1394 = vrot.slane %v1393, 4
      %v1395 = vadd.f32 %v1393, %v1394
      %v1396 = vrot.slane %v1395, 2
      %v1397 = vadd.f32 %v1395, %v1396
      %v1398 = vrot.slane %v1397, 1
      %v1399 = vadd.f32 %v1397, %v1398
      %v1400 = vmul.f32 %v1354, %v1354
      %v1401 = vmul.f32 %v1355, %v1355
      %v1402 = vmul.f32 %v1356, %v1356
      %v1403 = vmul.f32 %v1357, %v1357
      %v1404 = vmul.f32 %v1358, %v1358
      %v1405 = vmul.f32 %v1359, %v1359
      %v1406 = vmul.f32 %v1360, %v1360
      %v1407 = vmul.f32 %v1361, %v1361
      %v1408 = vsel %vm723, %v1400, 0.0
      %v1409 = vsel %vm723, %v1401, 0.0
      %v1410 = vadd.f32 %v1408, %v1409
      %v1411 = vsel %vm723, %v1402, 0.0
      %v1412 = vadd.f32 %v1410, %v1411
      %v1413 = vsel %vm723, %v1403, 0.0
      %v1414 = vadd.f32 %v1412, %v1413
      %v1415 = vsel %vm723, %v1404, 0.0
      %v1416 = vadd.f32 %v1414, %v1415
      %v1417 = vsel %vm723, %v1405, 0.0
      %v1418 = vadd.f32 %v1416, %v1417
      %v1419 = vsel %vm723, %v1406, 0.0
      %v1420 = vadd.f32 %v1418, %v1419
      %v1421 = vsel %vm723, %v1407, 0.0
      %v1422 = vadd.f32 %v1420, %v1421
      %v1423 = vrot.slane %v1422, 4
      %v1424 = vadd.f32 %v1422, %v1423
      %v1425 = vrot.slane %v1424, 2
      %v1426 = vadd.f32 %v1424, %v1425
      %v1427 = vrot.slane %v1426, 1
      %v1428 = vadd.f32 %v1426, %v1427
      %vm1429 = vcmask 1040384
      %v1430 = vsel %vm1429, %v1399, %v1428
      %vm1431 = vcmask 58368
      %1432 = vst.msk [vmem:[%s181] sm:$0x3] %vm1431, %v1430
      %p1433 = scmp.lt.s32.totalorder %s15, 1
      %s1434 = scalar_select %p1433, %s15, 1
      %s1435 = smul.addr %s1434, 8
      %s1436 = smul.addr %s1435, 4
      %s1437 = scalar_lea.vmem %s2, %s1436
      %p1438 = scmp.lt.s32.totalorder %s15, 1
      %s1439 = scalar_select %p1438, %s15, 1
      %s1440 = smul.addr %s1439, 2
      %s1441 = scalar_lea.vmem %s3, %s1440
      // Predicated region
      $region29: #{down_forward.3} parent=27 // pred_check
        %p1442 = pneg %p80
      $region30: #{down_forward.3} parent=27 // pred_check_branch
        %1444 = sbr.rel (%p1442) target = $region32
      $region31: #{down_forward.3} parent=27 // pred_region
        _
      $region32: #{down_forward.3} parent=27 // pred_fallthru
        _
      // Predicated region
      $region33: #{down_forward.3} parent=27 // pred_check
        %p1445 = pneg %p106
      $region34: #{down_forward.3} parent=27 // pred_check_branch
        %1447 = sbr.rel (%p1445) target = $region36
      $region35: #{down_forward.3} parent=27 // pred_region
        _
      $region36: #{down_forward.3} parent=27 // pred_fallthru
        _
    $region28: #{down_forward.3} parent=5 // pred_fallthru
      _
    %p1448 = scmp.le.s32.totalorder 2, %s10
    // Predicated region
    $region37: #{down_forward.3} parent=5 // pred_check
      %p1449 = pneg %p1448
    $region38: #{down_forward.3} parent=5 // pred_check_branch
      %1451 = sbr.rel (%p1449) target = $region40
    $region39: #{down_forward.3} parent=5 // pred_region
      %s1452 = ssub.s32 %s10, 2
      // Predicated region
      $region41: #{down_forward.3} parent=39 // pred_check
        %p1453 = pneg %p86
      $region42: #{down_forward.3} parent=39 // pred_check_branch
        %1455 = sbr.rel (%p1453) target = $region44
      $region43: #{down_forward.3} parent=39 // pred_region
        %p1456 = scmp.lt.s32.totalorder %s16, 1
        %s1457 = scalar_select %p1456, %s16, 1
        %s1458 = smul.addr %s1457, 8
        %s1459 = smul.addr %s1458, 4
        %s1460 = scalar_lea.vmem %s2, %s1459
      $region44: #{down_forward.3} parent=39 // pred_fallthru
        _
      // Predicated region
      $region45: #{down_forward.3} parent=39 // pred_check
        %p1461 = pneg %p112
      $region46: #{down_forward.3} parent=39 // pred_check_branch
        %1463 = sbr.rel (%p1461) target = $region48
      $region47: #{down_forward.3} parent=39 // pred_region
        %p1464 = scmp.lt.s32.totalorder %s16, 1
        %s1465 = scalar_select %p1464, %s16, 1
        %s1466 = smul.addr %s1465, 2
        %s1467 = scalar_lea.vmem %s3, %s1466
      $region48: #{down_forward.3} parent=39 // pred_fallthru
        _
    $region40: #{down_forward.3} parent=5 // pred_fallthru
      _
  $region6: #{down_forward.3} parent=0 // loop_footer
    %s14 = sadd.s32 1, %s10
  $region7: #{down_forward.3} parent=0 // loop_footer_branch
    %9 = sbr.rel target = $region3
  $region8: #{down_forward.3} parent=0 // loop_exit
    _

</llo_original>
